<compile_context>
chip_gen: v7x
topology: tpu7x:2x2x1
jax: 0.10.0
libtpu: 0.0.40
codegen_flags: <defaults>
</compile_context>

<pallas_src>
import functools

import jax
import jax.numpy as jnp
from jax import lax
from jax.experimental import pallas as pl
from jax.experimental.pallas import tpu as pltpu


def _round_up(x, m):
    return (x + m - 1) // m * m


# ------------------------------ Pallas kernel --------------------------------

def _matmul_bias_kernel(x_ref, w_ref, b_ref, o_ref, acc_ref, *, relu):
    """o = maybe_relu(x @ w + b); K-tiled with an f32 VMEM accumulator."""
    k = pl.program_id(2)

    @pl.when(k == 0)
    def _():
        acc_ref[...] = jnp.zeros_like(acc_ref)

    acc_ref[...] += jnp.dot(x_ref[...], w_ref[...],
                            preferred_element_type=jnp.float32)

    @pl.when(k == pl.num_programs(2) - 1)
    def _():
        y = acc_ref[...] + b_ref[...]          # f32 epilogue
        if relu:
            y = jnp.maximum(y, 0.0)
        o_ref[...] = y


def matmul_bias_act(x, w, b, *, relu):
    """y = maybe_relu(x @ w + b). x:(M,K) f32, w:(K,N) f32, b:(N,) f32."""
    M, K = x.shape
    N = w.shape[1]

    # M tiling: multiples of 8 sublanes, at most 128 rows per tile.
    tm = min(128, _round_up(M, 8))
    Mp = _round_up(M, tm)
    # N (lane) dim: pad to a multiple of 128 so stores are lane-dense.
    Np = _round_up(N, 128)
    tn = Np if Np <= 512 else 256
    Np = _round_up(Np, tn)
    # K tiling: single step if small, else 512-wide reduction steps.
    Kp = _round_up(K, 128)
    if Kp <= 1024:
        tk = Kp
    else:
        tk = 512
        Kp = _round_up(K, tk)

    # bf16 MXU inputs, zero padding (zeros do not change the dot product).
    xp = jnp.pad(x.astype(jnp.bfloat16), ((0, Mp - M), (0, Kp - K)))
    wp = jnp.pad(w.astype(jnp.bfloat16), ((0, Kp - K), (0, Np - N)))
    bp = jnp.pad(b.astype(jnp.float32), (0, Np - N)).reshape(1, Np)

    grid = (Mp // tm, Np // tn, Kp // tk)
    out = pl.pallas_call(
        functools.partial(_matmul_bias_kernel, relu=relu),
        grid_spec=pltpu.PrefetchScalarGridSpec(
            num_scalar_prefetch=0,
            grid=grid,
            in_specs=[
                pl.BlockSpec((tm, tk), lambda i, j, k: (i, k)),
                pl.BlockSpec((tk, tn), lambda i, j, k: (k, j)),
                pl.BlockSpec((1, tn), lambda i, j, k: (0, j)),
            ],
            out_specs=pl.BlockSpec((tm, tn), lambda i, j, k: (i, j)),
            scratch_shapes=[pltpu.VMEM((tm, tn), jnp.float32)],
        ),
        out_shape=jax.ShapeDtypeStruct((Mp, Np), jnp.float32),
        compiler_params=pltpu.CompilerParams(
            dimension_semantics=("parallel", "parallel", "arbitrary")),
    )(xp, wp, bp)
    return out[:M, :N]


# ------------------------------ conv helpers ---------------------------------

def _im2col(x, kh, kw, stride):
    """x: (B,H,W,C) NHWC -> patches (B*Ho*Wo, kh*kw*C); VALID padding."""
    B, H, W, C = x.shape
    Ho = (H - kh) // stride + 1
    Wo = (W - kw) // stride + 1
    cols = []
    for di in range(kh):
        for dj in range(kw):
            sl = x[:, di:di + stride * (Ho - 1) + 1:stride,
                      dj:dj + stride * (Wo - 1) + 1:stride, :]
            cols.append(sl)
    p = jnp.stack(cols, axis=3)                        # (B, Ho, Wo, kh*kw, C)
    return p.reshape(B * Ho * Wo, kh * kw * C), (B, Ho, Wo)


def conv_bias_relu(x, w, b, stride):
    """x: (B,H,W,Cin), w: (kh,kw,Cin,Cout), b: (Cout,) -> relu(conv(x)+b)."""
    kh, kw, cin, cout = w.shape
    patches, (B, Ho, Wo) = _im2col(x, kh, kw, stride)
    y = matmul_bias_act(patches, w.reshape(kh * kw * cin, cout), b, relu=True)
    return y.reshape(B, Ho, Wo, cout)


# ------------------------------ DQN forward ----------------------------------

def dqn_forward(x_nchw, params):
    # NCHW -> NHWC once at the boundary; /255 as in the PyTorch module.
    x = jnp.transpose(x_nchw, (0, 2, 3, 1)).astype(jnp.float32) / 255.0
    h = conv_bias_relu(x, params['conv1_w'], params['conv1_b'], stride=4)
    h = conv_bias_relu(h, params['conv2_w'], params['conv2_b'], stride=2)
    h = conv_bias_relu(h, params['conv3_w'], params['conv3_b'], stride=1)
    # PyTorch's x.view(B, -1) flattens in (C, H, W) order -> go back to NCHW.
    B = h.shape[0]
    feats = jnp.transpose(h, (0, 3, 1, 2)).reshape(B, -1)
    hid = matmul_bias_act(feats, params['hidden_w'], params['hidden_b'],
                          relu=True)
    return matmul_bias_act(hid, params['head_w'], params['head_b'], relu=False)


# ------------------------------ reference (pure JAX) -------------------------

def _ref_forward(x_nchw, params):
    """Pure-JAX reference with the same bf16-input / f32-accumulate recipe."""
    x = jnp.transpose(x_nchw, (0, 2, 3, 1)).astype(jnp.float32) / 255.0

    def conv(x, w, b, s):
        y = lax.conv_general_dilated(
            x.astype(jnp.bfloat16), w.astype(jnp.bfloat16),
            window_strides=(s, s), padding='VALID',
            dimension_numbers=('NHWC', 'HWIO', 'NHWC'),
            preferred_element_type=jnp.float32)
        return jnp.maximum(y + b, 0.0)

    h = conv(x, params['conv1_w'], params['conv1_b'], 4)
    h = conv(h, params['conv2_w'], params['conv2_b'], 2)
    h = conv(h, params['conv3_w'], params['conv3_b'], 1)
    feats = jnp.transpose(h, (0, 3, 1, 2)).reshape(h.shape[0], -1)
    hid = jnp.maximum(
        jnp.dot(feats.astype(jnp.bfloat16),
                params['hidden_w'].astype(jnp.bfloat16),
                preferred_element_type=jnp.float32) + params['hidden_b'], 0.0)
    return jnp.dot(hid.astype(jnp.bfloat16),
                   params['head_w'].astype(jnp.bfloat16),
                   preferred_element_type=jnp.float32) + params['head_b']


# ------------------------------ parameter init -------------------------------

def _kaiming_uniform_relu(key, shape, fan_in):
    bound = (6.0 / fan_in) ** 0.5            # kaiming_uniform_, relu gain
    return jax.random.uniform(key, shape, jnp.float32, -bound, bound)


def _uniform_fan_in(key, shape, fan_in):
    bound = (1.0 / fan_in) ** 0.5            # PyTorch default bias / Linear
    return jax.random.uniform(key, shape, jnp.float32, -bound, bound)


def _conv_out(size, k, s):
    return (size - (k - 1) - 1) // s + 1


def init_params(key, c, h, w, outputs):
    convw = _conv_out(_conv_out(_conv_out(w, 8, 4), 4, 2), 3, 1)
    convh = _conv_out(_conv_out(_conv_out(h, 8, 4), 4, 2), 3, 1)
    lin_in = convw * convh * 64

    ks = jax.random.split(key, 10)
    params = {
        'conv1_w': _kaiming_uniform_relu(ks[0], (8, 8, c, 32), 8 * 8 * c),
        'conv1_b': _uniform_fan_in(ks[1], (32,), 8 * 8 * c),
        'conv2_w': _kaiming_uniform_relu(ks[2], (4, 4, 32, 64), 4 * 4 * 32),
        'conv2_b': _uniform_fan_in(ks[3], (64,), 4 * 4 * 32),
        'conv3_w': _kaiming_uniform_relu(ks[4], (3, 3, 64, 64), 3 * 3 * 64),
        'conv3_b': _uniform_fan_in(ks[5], (64,), 3 * 3 * 64),
        'hidden_w': _uniform_fan_in(ks[6], (lin_in, 512), lin_in),
        'hidden_b': _uniform_fan_in(ks[7], (512,), lin_in),
        'head_w': _uniform_fan_in(ks[8], (512, outputs), 512),
        'head_b': _uniform_fan_in(ks[9], (outputs,), 512),
    }
    return params


# ---------------------------------- main --------------------------------------

if __name__ == "__main__":
    key = jax.random.PRNGKey(0)
    kx, kp = jax.random.split(key)

    # Canonical Atari DQN input: 4 stacked 84x84 frames, pixel values [0,255].
    B, C, H, W, OUT = 2, 4, 84, 84, 6
    x = jax.random.uniform(kx, (B, C, H, W), jnp.float32, 0.0, 255.0)
    params = init_params(kp, C, H, W, OUT)

    fwd = jax.jit(dqn_forward)
    out = jax.block_until_ready(fwd(x, params))

    assert out.shape == (B, OUT), out.shape
    assert bool(jnp.all(jnp.isfinite(out)))

    ref = jax.block_until_ready(_ref_forward(x, params))
    max_err = float(jnp.max(jnp.abs(out - ref)))
    assert jnp.allclose(out, ref, rtol=2e-2, atol=2e-2), max_err

    print("KERNEL_OK")
</pallas_src>

<mosaic_0001>
module attributes {stable_mosaic.version = 11 : i64} {
  func.func @_matmul_bias_kernel(%arg0: i32, %arg1: i32, %arg2: i32, %arg3: memref<128x256xbf16, #tpu.memory_space<vmem>>, %arg4: memref<256x128xbf16, #tpu.memory_space<vmem>>, %arg5: memref<1x128xf32, #tpu.memory_space<vmem>>, %arg6: memref<128x128xf32, #tpu.memory_space<vmem>>, %arg7: memref<128x128xf32, #tpu.memory_space<vmem>>) attributes {dimension_semantics = [#tpu.dimension_semantics<parallel>, #tpu.dimension_semantics<parallel>, #tpu.dimension_semantics<arbitrary>], iteration_bounds = array<i64: 7, 1, 1>, scalar_prefetch = 0 : i64, scratch_operands = 1 : i64, tpu.core_type = #tpu.core_type<tc>, window_params = [{transform_indices = @transform_0, window_bounds = array<i64: 128, 256>}, {transform_indices = @transform_1, window_bounds = array<i64: 256, 128>}, {transform_indices = @transform_2, window_bounds = array<i64: 1, 128>}, {transform_indices = @transform_3, window_bounds = array<i64: 128, 128>}]} {
    %c0_i32 = arith.constant 0 : i32
    %0 = arith.cmpi eq, %arg2, %c0_i32 : i32
    %1 = arith.extui %0 : i1 to i32
    %c0_i32_0 = arith.constant 0 : i32
    %2 = arith.cmpi ne, %1, %c0_i32_0 : i32
    scf.if %2 {
      %cst_10 = arith.constant 0.000000e+00 : f32
      %12 = vector.broadcast %cst_10 : f32 to vector<128x128xf32>
      %c0_11 = arith.constant 0 : index
      %c0_12 = arith.constant 0 : index
      %13 = vector.load %arg7[%c0_11, %c0_12] : memref<128x128xf32, #tpu.memory_space<vmem>>, vector<128x128xf32>
      tpu.vector_store %arg7[%c0_11, %c0_12], %12 {strides = array<i32>} : memref<128x128xf32, #tpu.memory_space<vmem>>, vector<128x128xf32>,
    } else {
    }
    %c0 = arith.constant 0 : index
    %c0_1 = arith.constant 0 : index
    %3 = vector.load %arg7[%c0, %c0_1] : memref<128x128xf32, #tpu.memory_space<vmem>>, vector<128x128xf32>
    %c0_2 = arith.constant 0 : index
    %c0_3 = arith.constant 0 : index
    %4 = vector.load %arg3[%c0_2, %c0_3] : memref<128x256xbf16, #tpu.memory_space<vmem>>, vector<128x256xbf16>
    %c0_4 = arith.constant 0 : index
    %c0_5 = arith.constant 0 : index
    %5 = vector.load %arg4[%c0_4, %c0_5] : memref<256x128xbf16, #tpu.memory_space<vmem>>, vector<256x128xbf16>
    %cst = arith.constant dense<0.000000e+00> : vector<128x128xf32>
    %6 = tpu.matmul %4, %5, %cst {dimension_numbers = #tpu.dot_dimension_numbers<[1], [0], [0], [1], [0, 0, 1, 1], [], []>} : vector<128x256xbf16>, vector<256x128xbf16>, vector<128x128xf32> -> vector<128x128xf32>
    %7 = arith.addf %3, %6 : vector<128x128xf32>
    %c0_6 = arith.constant 0 : index
    %c0_7 = arith.constant 0 : index
    %8 = vector.load %arg7[%c0_6, %c0_7] : memref<128x128xf32, #tpu.memory_space<vmem>>, vector<128x128xf32>
    tpu.vector_store %arg7[%c0_6, %c0_7], %7 {strides = array<i32>} : memref<128x128xf32, #tpu.memory_space<vmem>>, vector<128x128xf32>,
    %c0_i32_8 = arith.constant 0 : i32
    %9 = arith.cmpi eq, %arg2, %c0_i32_8 : i32
    %10 = arith.extui %9 : i1 to i32
    %c0_i32_9 = arith.constant 0 : i32
    %11 = arith.cmpi ne, %10, %c0_i32_9 : i32
    scf.if %11 {
      %c0_10 = arith.constant 0 : index
      %c0_11 = arith.constant 0 : index
      %12 = vector.load %arg7[%c0_10, %c0_11] : memref<128x128xf32, #tpu.memory_space<vmem>>, vector<128x128xf32>
      %c0_12 = arith.constant 0 : index
      %c0_13 = arith.constant 0 : index
      %13 = vector.load %arg5[%c0_12, %c0_13] : memref<1x128xf32, #tpu.memory_space<vmem>>, vector<1x128xf32>
      %14 = vector.broadcast %13 : vector<1x128xf32> to vector<128x128xf32>
      %15 = arith.addf %12, %14 : vector<128x128xf32>
      %cst_14 = arith.constant 0.000000e+00 : f32
      %16 = vector.broadcast %cst_14 : f32 to vector<128x128xf32>
      %17 = arith.maximumf %15, %16 : vector<128x128xf32>
      %c0_15 = arith.constant 0 : index
      %c0_16 = arith.constant 0 : index
      %18 = vector.load %arg6[%c0_15, %c0_16] : memref<128x128xf32, #tpu.memory_space<vmem>>, vector<128x128xf32>
      tpu.vector_store %arg6[%c0_15, %c0_16], %17 {strides = array<i32>} : memref<128x128xf32, #tpu.memory_space<vmem>>, vector<128x128xf32>,
    } else {
    }
    return
  }
  func.func @transform_0(%arg0: i32, %arg1: i32, %arg2: i32) -> (i32, i32) {
    %c0_i32 = arith.constant 0 : i32
    return %arg0, %arg2 : i32, i32
  }
  func.func @transform_1(%arg0: i32, %arg1: i32, %arg2: i32) -> (i32, i32) {
    %c0_i32 = arith.constant 0 : i32
    return %arg2, %arg1 : i32, i32
  }
  func.func @transform_2(%arg0: i32, %arg1: i32, %arg2: i32) -> (i32, i32) {
    %c0_i32 = arith.constant 0 : i32
    %c0_i32_0 = arith.constant 0 : i32
    return %c0_i32, %arg1 : i32, i32
  }
  func.func @transform_3(%arg0: i32, %arg1: i32, %arg2: i32) -> (i32, i32) {
    %c0_i32 = arith.constant 0 : i32
    return %arg0, %arg1 : i32, i32
  }
}

module attributes {stable_mosaic.version = 11 : i64} {
  func.func @_matmul_bias_kernel(%arg0: i32, %arg1: i32, %arg2: i32, %arg3: memref<128x512xbf16, #tpu.memory_space<vmem>>, %arg4: memref<512x128xbf16, #tpu.memory_space<vmem>>, %arg5: memref<1x128xf32, #tpu.memory_space<vmem>>, %arg6: memref<128x128xf32, #tpu.memory_space<vmem>>, %arg7: memref<128x128xf32, #tpu.memory_space<vmem>>) attributes {dimension_semantics = [#tpu.dimension_semantics<parallel>, #tpu.dimension_semantics<parallel>, #tpu.dimension_semantics<arbitrary>], iteration_bounds = array<i64: 2, 1, 1>, scalar_prefetch = 0 : i64, scratch_operands = 1 : i64, tpu.core_type = #tpu.core_type<tc>, window_params = [{transform_indices = @transform_0, window_bounds = array<i64: 128, 512>}, {transform_indices = @transform_1, window_bounds = array<i64: 512, 128>}, {transform_indices = @transform_2, window_bounds = array<i64: 1, 128>}, {transform_indices = @transform_3, window_bounds = array<i64: 128, 128>}]} {
    %c0_i32 = arith.constant 0 : i32
    %0 = arith.cmpi eq, %arg2, %c0_i32 : i32
    %1 = arith.extui %0 : i1 to i32
    %c0_i32_0 = arith.constant 0 : i32
    %2 = arith.cmpi ne, %1, %c0_i32_0 : i32
    scf.if %2 {
      %cst_10 = arith.constant 0.000000e+00 : f32
      %12 = vector.broadcast %cst_10 : f32 to vector<128x128xf32>
      %c0_11 = arith.constant 0 : index
      %c0_12 = arith.constant 0 : index
      %13 = vector.load %arg7[%c0_11, %c0_12] : memref<128x128xf32, #tpu.memory_space<vmem>>, vector<128x128xf32>
      tpu.vector_store %arg7[%c0_11, %c0_12], %12 {strides = array<i32>} : memref<128x128xf32, #tpu.memory_space<vmem>>, vector<128x128xf32>,
    } else {
    }
    %c0 = arith.constant 0 : index
    %c0_1 = arith.constant 0 : index
    %3 = vector.load %arg7[%c0, %c0_1] : memref<128x128xf32, #tpu.memory_space<vmem>>, vector<128x128xf32>
    %c0_2 = arith.constant 0 : index
    %c0_3 = arith.constant 0 : index
    %4 = vector.load %arg3[%c0_2, %c0_3] : memref<128x512xbf16, #tpu.memory_space<vmem>>, vector<128x512xbf16>
    %c0_4 = arith.constant 0 : index
    %c0_5 = arith.constant 0 : index
    %5 = vector.load %arg4[%c0_4, %c0_5] : memref<512x128xbf16, #tpu.memory_space<vmem>>, vector<512x128xbf16>
    %cst = arith.constant dense<0.000000e+00> : vector<128x128xf32>
    %6 = tpu.matmul %4, %5, %cst {dimension_numbers = #tpu.dot_dimension_numbers<[1], [0], [0], [1], [0, 0, 1, 1], [], []>} : vector<128x512xbf16>, vector<512x128xbf16>, vector<128x128xf32> -> vector<128x128xf32>
    %7 = arith.addf %3, %6 : vector<128x128xf32>
    %c0_6 = arith.constant 0 : index
    %c0_7 = arith.constant 0 : index
    %8 = vector.load %arg7[%c0_6, %c0_7] : memref<128x128xf32, #tpu.memory_space<vmem>>, vector<128x128xf32>
    tpu.vector_store %arg7[%c0_6, %c0_7], %7 {strides = array<i32>} : memref<128x128xf32, #tpu.memory_space<vmem>>, vector<128x128xf32>,
    %c0_i32_8 = arith.constant 0 : i32
    %9 = arith.cmpi eq, %arg2, %c0_i32_8 : i32
    %10 = arith.extui %9 : i1 to i32
    %c0_i32_9 = arith.constant 0 : i32
    %11 = arith.cmpi ne, %10, %c0_i32_9 : i32
    scf.if %11 {
      %c0_10 = arith.constant 0 : index
      %c0_11 = arith.constant 0 : index
      %12 = vector.load %arg7[%c0_10, %c0_11] : memref<128x128xf32, #tpu.memory_space<vmem>>, vector<128x128xf32>
      %c0_12 = arith.constant 0 : index
      %c0_13 = arith.constant 0 : index
      %13 = vector.load %arg5[%c0_12, %c0_13] : memref<1x128xf32, #tpu.memory_space<vmem>>, vector<1x128xf32>
      %14 = vector.broadcast %13 : vector<1x128xf32> to vector<128x128xf32>
      %15 = arith.addf %12, %14 : vector<128x128xf32>
      %cst_14 = arith.constant 0.000000e+00 : f32
      %16 = vector.broadcast %cst_14 : f32 to vector<128x128xf32>
      %17 = arith.maximumf %15, %16 : vector<128x128xf32>
      %c0_15 = arith.constant 0 : index
      %c0_16 = arith.constant 0 : index
      %18 = vector.load %arg6[%c0_15, %c0_16] : memref<128x128xf32, #tpu.memory_space<vmem>>, vector<128x128xf32>
      tpu.vector_store %arg6[%c0_15, %c0_16], %17 {strides = array<i32>} : memref<128x128xf32, #tpu.memory_space<vmem>>, vector<128x128xf32>,
    } else {
    }
    return
  }
  func.func @transform_0(%arg0: i32, %arg1: i32, %arg2: i32) -> (i32, i32) {
    %c0_i32 = arith.constant 0 : i32
    return %arg0, %arg2 : i32, i32
  }
  func.func @transform_1(%arg0: i32, %arg1: i32, %arg2: i32) -> (i32, i32) {
    %c0_i32 = arith.constant 0 : i32
    return %arg2, %arg1 : i32, i32
  }
  func.func @transform_2(%arg0: i32, %arg1: i32, %arg2: i32) -> (i32, i32) {
    %c0_i32 = arith.constant 0 : i32
    %c0_i32_0 = arith.constant 0 : i32
    return %c0_i32, %arg1 : i32, i32
  }
  func.func @transform_3(%arg0: i32, %arg1: i32, %arg2: i32) -> (i32, i32) {
    %c0_i32 = arith.constant 0 : i32
    return %arg0, %arg1 : i32, i32
  }
}

module attributes {stable_mosaic.version = 11 : i64} {
  func.func @_matmul_bias_kernel(%arg0: i32, %arg1: i32, %arg2: i32, %arg3: memref<104x640xbf16, #tpu.memory_space<vmem>>, %arg4: memref<640x128xbf16, #tpu.memory_space<vmem>>, %arg5: memref<1x128xf32, #tpu.memory_space<vmem>>, %arg6: memref<104x128xf32, #tpu.memory_space<vmem>>, %arg7: memref<104x128xf32, #tpu.memory_space<vmem>>) attributes {dimension_semantics = [#tpu.dimension_semantics<parallel>, #tpu.dimension_semantics<parallel>, #tpu.dimension_semantics<arbitrary>], iteration_bounds = array<i64: 1, 1, 1>, scalar_prefetch = 0 : i64, scratch_operands = 1 : i64, tpu.core_type = #tpu.core_type<tc>, window_params = [{transform_indices = @transform_0, window_bounds = array<i64: 104, 640>}, {transform_indices = @transform_1, window_bounds = array<i64: 640, 128>}, {transform_indices = @transform_2, window_bounds = array<i64: 1, 128>}, {transform_indices = @transform_3, window_bounds = array<i64: 104, 128>}]} {
    %c0_i32 = arith.constant 0 : i32
    %0 = arith.cmpi eq, %arg2, %c0_i32 : i32
    %1 = arith.extui %0 : i1 to i32
    %c0_i32_0 = arith.constant 0 : i32
    %2 = arith.cmpi ne, %1, %c0_i32_0 : i32
    scf.if %2 {
      %cst_10 = arith.constant 0.000000e+00 : f32
      %12 = vector.broadcast %cst_10 : f32 to vector<104x128xf32>
      %c0_11 = arith.constant 0 : index
      %c0_12 = arith.constant 0 : index
      %13 = vector.load %arg7[%c0_11, %c0_12] : memref<104x128xf32, #tpu.memory_space<vmem>>, vector<104x128xf32>
      tpu.vector_store %arg7[%c0_11, %c0_12], %12 {strides = array<i32>} : memref<104x128xf32, #tpu.memory_space<vmem>>, vector<104x128xf32>,
    } else {
    }
    %c0 = arith.constant 0 : index
    %c0_1 = arith.constant 0 : index
    %3 = vector.load %arg7[%c0, %c0_1] : memref<104x128xf32, #tpu.memory_space<vmem>>, vector<104x128xf32>
    %c0_2 = arith.constant 0 : index
    %c0_3 = arith.constant 0 : index
    %4 = vector.load %arg3[%c0_2, %c0_3] : memref<104x640xbf16, #tpu.memory_space<vmem>>, vector<104x640xbf16>
    %c0_4 = arith.constant 0 : index
    %c0_5 = arith.constant 0 : index
    %5 = vector.load %arg4[%c0_4, %c0_5] : memref<640x128xbf16, #tpu.memory_space<vmem>>, vector<640x128xbf16>
    %cst = arith.constant dense<0.000000e+00> : vector<104x128xf32>
    %6 = tpu.matmul %4, %5, %cst {dimension_numbers = #tpu.dot_dimension_numbers<[1], [0], [0], [1], [0, 0, 1, 1], [], []>} : vector<104x640xbf16>, vector<640x128xbf16>, vector<104x128xf32> -> vector<104x128xf32>
    %7 = arith.addf %3, %6 : vector<104x128xf32>
    %c0_6 = arith.constant 0 : index
    %c0_7 = arith.constant 0 : index
    %8 = vector.load %arg7[%c0_6, %c0_7] : memref<104x128xf32, #tpu.memory_space<vmem>>, vector<104x128xf32>
    tpu.vector_store %arg7[%c0_6, %c0_7], %7 {strides = array<i32>} : memref<104x128xf32, #tpu.memory_space<vmem>>, vector<104x128xf32>,
    %c0_i32_8 = arith.constant 0 : i32
    %9 = arith.cmpi eq, %arg2, %c0_i32_8 : i32
    %10 = arith.extui %9 : i1 to i32
    %c0_i32_9 = arith.constant 0 : i32
    %11 = arith.cmpi ne, %10, %c0_i32_9 : i32
    scf.if %11 {
      %c0_10 = arith.constant 0 : index
      %c0_11 = arith.constant 0 : index
      %12 = vector.load %arg7[%c0_10, %c0_11] : memref<104x128xf32, #tpu.memory_space<vmem>>, vector<104x128xf32>
      %c0_12 = arith.constant 0 : index
      %c0_13 = arith.constant 0 : index
      %13 = vector.load %arg5[%c0_12, %c0_13] : memref<1x128xf32, #tpu.memory_space<vmem>>, vector<1x128xf32>
      %14 = vector.broadcast %13 : vector<1x128xf32> to vector<104x128xf32>
      %15 = arith.addf %12, %14 : vector<104x128xf32>
      %cst_14 = arith.constant 0.000000e+00 : f32
      %16 = vector.broadcast %cst_14 : f32 to vector<104x128xf32>
      %17 = arith.maximumf %15, %16 : vector<104x128xf32>
      %c0_15 = arith.constant 0 : index
      %c0_16 = arith.constant 0 : index
      %18 = vector.load %arg6[%c0_15, %c0_16] : memref<104x128xf32, #tpu.memory_space<vmem>>, vector<104x128xf32>
      tpu.vector_store %arg6[%c0_15, %c0_16], %17 {strides = array<i32>} : memref<104x128xf32, #tpu.memory_space<vmem>>, vector<104x128xf32>,
    } else {
    }
    return
  }
  func.func @transform_0(%arg0: i32, %arg1: i32, %arg2: i32) -> (i32, i32) {
    %c0_i32 = arith.constant 0 : i32
    return %arg0, %arg2 : i32, i32
  }
  func.func @transform_1(%arg0: i32, %arg1: i32, %arg2: i32) -> (i32, i32) {
    %c0_i32 = arith.constant 0 : i32
    return %arg2, %arg1 : i32, i32
  }
  func.func @transform_2(%arg0: i32, %arg1: i32, %arg2: i32) -> (i32, i32) {
    %c0_i32 = arith.constant 0 : i32
    %c0_i32_0 = arith.constant 0 : i32
    return %c0_i32, %arg1 : i32, i32
  }
  func.func @transform_3(%arg0: i32, %arg1: i32, %arg2: i32) -> (i32, i32) {
    %c0_i32 = arith.constant 0 : i32
    return %arg0, %arg1 : i32, i32
  }
}

module attributes {stable_mosaic.version = 11 : i64} {
  func.func @_matmul_bias_kernel(%arg0: i32, %arg1: i32, %arg2: i32, %arg3: memref<8x512xbf16, #tpu.memory_space<vmem>>, %arg4: memref<512x512xbf16, #tpu.memory_space<vmem>>, %arg5: memref<1x512xf32, #tpu.memory_space<vmem>>, %arg6: memref<8x512xf32, #tpu.memory_space<vmem>>, %arg7: memref<8x512xf32, #tpu.memory_space<vmem>>) attributes {dimension_semantics = [#tpu.dimension_semantics<parallel>, #tpu.dimension_semantics<parallel>, #tpu.dimension_semantics<arbitrary>], iteration_bounds = array<i64: 1, 1, 7>, scalar_prefetch = 0 : i64, scratch_operands = 1 : i64, tpu.core_type = #tpu.core_type<tc>, window_params = [{transform_indices = @transform_0, window_bounds = array<i64: 8, 512>}, {transform_indices = @transform_1, window_bounds = array<i64: 512, 512>}, {transform_indices = @transform_2, window_bounds = array<i64: 1, 512>}, {transform_indices = @transform_3, window_bounds = array<i64: 8, 512>}]} {
    %c0_i32 = arith.constant 0 : i32
    %0 = arith.cmpi eq, %arg2, %c0_i32 : i32
    %1 = arith.extui %0 : i1 to i32
    %c0_i32_0 = arith.constant 0 : i32
    %2 = arith.cmpi ne, %1, %c0_i32_0 : i32
    scf.if %2 {
      %cst_9 = arith.constant 0.000000e+00 : f32
      %12 = vector.broadcast %cst_9 : f32 to vector<8x512xf32>
      %c0_10 = arith.constant 0 : index
      %c0_11 = arith.constant 0 : index
      %13 = vector.load %arg7[%c0_10, %c0_11] : memref<8x512xf32, #tpu.memory_space<vmem>>, vector<8x512xf32>
      tpu.vector_store %arg7[%c0_10, %c0_11], %12 {strides = array<i32>} : memref<8x512xf32, #tpu.memory_space<vmem>>, vector<8x512xf32>,
    } else {
    }
    %c0 = arith.constant 0 : index
    %c0_1 = arith.constant 0 : index
    %3 = vector.load %arg7[%c0, %c0_1] : memref<8x512xf32, #tpu.memory_space<vmem>>, vector<8x512xf32>
    %c0_2 = arith.constant 0 : index
    %c0_3 = arith.constant 0 : index
    %4 = vector.load %arg3[%c0_2, %c0_3] : memref<8x512xbf16, #tpu.memory_space<vmem>>, vector<8x512xbf16>
    %c0_4 = arith.constant 0 : index
    %c0_5 = arith.constant 0 : index
    %5 = vector.load %arg4[%c0_4, %c0_5] : memref<512x512xbf16, #tpu.memory_space<vmem>>, vector<512x512xbf16>
    %cst = arith.constant dense<0.000000e+00> : vector<8x512xf32>
    %6 = tpu.matmul %4, %5, %cst {dimension_numbers = #tpu.dot_dimension_numbers<[1], [0], [0], [1], [0, 0, 1, 1], [], []>} : vector<8x512xbf16>, vector<512x512xbf16>, vector<8x512xf32> -> vector<8x512xf32>
    %7 = arith.addf %3, %6 : vector<8x512xf32>
    %c0_6 = arith.constant 0 : index
    %c0_7 = arith.constant 0 : index
    %8 = vector.load %arg7[%c0_6, %c0_7] : memref<8x512xf32, #tpu.memory_space<vmem>>, vector<8x512xf32>
    tpu.vector_store %arg7[%c0_6, %c0_7], %7 {strides = array<i32>} : memref<8x512xf32, #tpu.memory_space<vmem>>, vector<8x512xf32>,
    %c6_i32 = arith.constant 6 : i32
    %9 = arith.cmpi eq, %arg2, %c6_i32 : i32
    %10 = arith.extui %9 : i1 to i32
    %c0_i32_8 = arith.constant 0 : i32
    %11 = arith.cmpi ne, %10, %c0_i32_8 : i32
    scf.if %11 {
      %c0_9 = arith.constant 0 : index
      %c0_10 = arith.constant 0 : index
      %12 = vector.load %arg7[%c0_9, %c0_10] : memref<8x512xf32, #tpu.memory_space<vmem>>, vector<8x512xf32>
      %c0_11 = arith.constant 0 : index
      %c0_12 = arith.constant 0 : index
      %13 = vector.load %arg5[%c0_11, %c0_12] : memref<1x512xf32, #tpu.memory_space<vmem>>, vector<1x512xf32>
      %14 = vector.broadcast %13 : vector<1x512xf32> to vector<8x512xf32>
      %15 = arith.addf %12, %14 : vector<8x512xf32>
      %cst_13 = arith.constant 0.000000e+00 : f32
      %16 = vector.broadcast %cst_13 : f32 to vector<8x512xf32>
      %17 = arith.maximumf %15, %16 : vector<8x512xf32>
      %c0_14 = arith.constant 0 : index
      %c0_15 = arith.constant 0 : index
      %18 = vector.load %arg6[%c0_14, %c0_15] : memref<8x512xf32, #tpu.memory_space<vmem>>, vector<8x512xf32>
      tpu.vector_store %arg6[%c0_14, %c0_15], %17 {strides = array<i32>} : memref<8x512xf32, #tpu.memory_space<vmem>>, vector<8x512xf32>,
    } else {
    }
    return
  }
  func.func @transform_0(%arg0: i32, %arg1: i32, %arg2: i32) -> (i32, i32) {
    %c0_i32 = arith.constant 0 : i32
    return %arg0, %arg2 : i32, i32
  }
  func.func @transform_1(%arg0: i32, %arg1: i32, %arg2: i32) -> (i32, i32) {
    %c0_i32 = arith.constant 0 : i32
    return %arg2, %arg1 : i32, i32
  }
  func.func @transform_2(%arg0: i32, %arg1: i32, %arg2: i32) -> (i32, i32) {
    %c0_i32 = arith.constant 0 : i32
    %c0_i32_0 = arith.constant 0 : i32
    return %c0_i32, %arg1 : i32, i32
  }
  func.func @transform_3(%arg0: i32, %arg1: i32, %arg2: i32) -> (i32, i32) {
    %c0_i32 = arith.constant 0 : i32
    return %arg0, %arg1 : i32, i32
  }
}

module attributes {stable_mosaic.version = 11 : i64} {
  func.func @_matmul_bias_kernel(%arg0: i32, %arg1: i32, %arg2: i32, %arg3: memref<8x512xbf16, #tpu.memory_space<vmem>>, %arg4: memref<512x128xbf16, #tpu.memory_space<vmem>>, %arg5: memref<1x128xf32, #tpu.memory_space<vmem>>, %arg6: memref<8x128xf32, #tpu.memory_space<vmem>>, %arg7: memref<8x128xf32, #tpu.memory_space<vmem>>) attributes {dimension_semantics = [#tpu.dimension_semantics<parallel>, #tpu.dimension_semantics<parallel>, #tpu.dimension_semantics<arbitrary>], iteration_bounds = array<i64: 1, 1, 1>, scalar_prefetch = 0 : i64, scratch_operands = 1 : i64, tpu.core_type = #tpu.core_type<tc>, window_params = [{transform_indices = @transform_0, window_bounds = array<i64: 8, 512>}, {transform_indices = @transform_1, window_bounds = array<i64: 512, 128>}, {transform_indices = @transform_2, window_bounds = array<i64: 1, 128>}, {transform_indices = @transform_3, window_bounds = array<i64: 8, 128>}]} {
    %c0_i32 = arith.constant 0 : i32
    %0 = arith.cmpi eq, %arg2, %c0_i32 : i32
    %1 = arith.extui %0 : i1 to i32
    %c0_i32_0 = arith.constant 0 : i32
    %2 = arith.cmpi ne, %1, %c0_i32_0 : i32
    scf.if %2 {
      %cst_10 = arith.constant 0.000000e+00 : f32
      %12 = vector.broadcast %cst_10 : f32 to vector<8x128xf32>
      %c0_11 = arith.constant 0 : index
      %c0_12 = arith.constant 0 : index
      %13 = vector.load %arg7[%c0_11, %c0_12] : memref<8x128xf32, #tpu.memory_space<vmem>>, vector<8x128xf32>
      tpu.vector_store %arg7[%c0_11, %c0_12], %12 {strides = array<i32>} : memref<8x128xf32, #tpu.memory_space<vmem>>, vector<8x128xf32>,
    } else {
    }
    %c0 = arith.constant 0 : index
    %c0_1 = arith.constant 0 : index
    %3 = vector.load %arg7[%c0, %c0_1] : memref<8x128xf32, #tpu.memory_space<vmem>>, vector<8x128xf32>
    %c0_2 = arith.constant 0 : index
    %c0_3 = arith.constant 0 : index
    %4 = vector.load %arg3[%c0_2, %c0_3] : memref<8x512xbf16, #tpu.memory_space<vmem>>, vector<8x512xbf16>
    %c0_4 = arith.constant 0 : index
    %c0_5 = arith.constant 0 : index
    %5 = vector.load %arg4[%c0_4, %c0_5] : memref<512x128xbf16, #tpu.memory_space<vmem>>, vector<512x128xbf16>
    %cst = arith.constant dense<0.000000e+00> : vector<8x128xf32>
    %6 = tpu.matmul %4, %5, %cst {dimension_numbers = #tpu.dot_dimension_numbers<[1], [0], [0], [1], [0, 0, 1, 1], [], []>} : vector<8x512xbf16>, vector<512x128xbf16>, vector<8x128xf32> -> vector<8x128xf32>
    %7 = arith.addf %3, %6 : vector<8x128xf32>
    %c0_6 = arith.constant 0 : index
    %c0_7 = arith.constant 0 : index
    %8 = vector.load %arg7[%c0_6, %c0_7] : memref<8x128xf32, #tpu.memory_space<vmem>>, vector<8x128xf32>
    tpu.vector_store %arg7[%c0_6, %c0_7], %7 {strides = array<i32>} : memref<8x128xf32, #tpu.memory_space<vmem>>, vector<8x128xf32>,
    %c0_i32_8 = arith.constant 0 : i32
    %9 = arith.cmpi eq, %arg2, %c0_i32_8 : i32
    %10 = arith.extui %9 : i1 to i32
    %c0_i32_9 = arith.constant 0 : i32
    %11 = arith.cmpi ne, %10, %c0_i32_9 : i32
    scf.if %11 {
      %c0_10 = arith.constant 0 : index
      %c0_11 = arith.constant 0 : index
      %12 = vector.load %arg7[%c0_10, %c0_11] : memref<8x128xf32, #tpu.memory_space<vmem>>, vector<8x128xf32>
      %c0_12 = arith.constant 0 : index
      %c0_13 = arith.constant 0 : index
      %13 = vector.load %arg5[%c0_12, %c0_13] : memref<1x128xf32, #tpu.memory_space<vmem>>, vector<1x128xf32>
      %14 = vector.broadcast %13 : vector<1x128xf32> to vector<8x128xf32>
      %15 = arith.addf %12, %14 : vector<8x128xf32>
      %c0_14 = arith.constant 0 : index
      %c0_15 = arith.constant 0 : index
      %16 = vector.load %arg6[%c0_14, %c0_15] : memref<8x128xf32, #tpu.memory_space<vmem>>, vector<8x128xf32>
      tpu.vector_store %arg6[%c0_14, %c0_15], %15 {strides = array<i32>} : memref<8x128xf32, #tpu.memory_space<vmem>>, vector<8x128xf32>,
    } else {
    }
    return
  }
  func.func @transform_0(%arg0: i32, %arg1: i32, %arg2: i32) -> (i32, i32) {
    %c0_i32 = arith.constant 0 : i32
    return %arg0, %arg2 : i32, i32
  }
  func.func @transform_1(%arg0: i32, %arg1: i32, %arg2: i32) -> (i32, i32) {
    %c0_i32 = arith.constant 0 : i32
    return %arg2, %arg1 : i32, i32
  }
  func.func @transform_2(%arg0: i32, %arg1: i32, %arg2: i32) -> (i32, i32) {
    %c0_i32 = arith.constant 0 : i32
    %c0_i32_0 = arith.constant 0 : i32
    return %c0_i32, %arg1 : i32, i32
  }
  func.func @transform_3(%arg0: i32, %arg1: i32, %arg2: i32) -> (i32, i32) {
    %c0_i32 = arith.constant 0 : i32
    return %arg0, %arg1 : i32, i32
  }
}

</mosaic_0001>

<llo_original>
// kernel: dqn_forward.5
$region0: #{dqn_forward.5}
  #allocation0 [shape = 'u32[]', space=smem, size = 0x4, offset = 0x4, fixed_abs, tag = 'smem constant byte address 0x4 - core index']
  #allocation1 [shape = 'u32[144,128]{1,0:T(1,128)}', space=vmem, size = 0x12000, scoped, tag = 'internal scratch']
  #allocation2 [shape = 'f32[128,128]{1,0:T(8,128)}', space=vmem, size = 0x10000, scoped, tag = 'scratch operand']
  %s0 = inlined_call_operand.vmem [shape: bf16[896,256], index: 0, kind: input, shape index: {}]
  %s1 = inlined_call_operand.vmem [shape: bf16[256,128], index: 1, kind: input, shape index: {}]
  %s2 = inlined_call_operand.vmem [shape: f32[1,128], index: 2, kind: input, shape index: {}]
  %s3 = inlined_call_operand.vmem [shape: f32[896,128], index: 3, kind: output, shape index: {}]
  %s4 = sld [smem:[#allocation0]]
  $region53: #{dqn_forward.5} parent=0
    _
  %s6 = ssub.s32 1, %s4
  %s7 = scalar_select 0, %s6, %s4
  loop: start=0, step=1, limit=9
  $region2: #{dqn_forward.5} parent=0 // loop_pre_header
    _
  $region3: #{dqn_forward.5} parent=0 // loop_header
    %s9 = sphi 0, %s13
    %p10 = scmp.ge.s32.totalorder %s9, 9
    %s16 = sphi 0, %s35
    %s17 = sphi 0, %s31
    %s18 = sphi 0, %s27
    %s19 = sphi 0, %s16
    %s20 = sphi 0, %s17
    %s21 = sphi 0, %s18
    %s22 = sphi 0, %s19
    %s23 = sphi 0, %s20
    %s24 = sphi 0, %s21
    %s40 = sphi 0, %s42
    %s43 = sphi 0, %s40
    %s44 = sphi 0, %s43
    %s60 = sphi 0, %s44
    %s68 = sphi 0, %s70
    %s71 = sphi 0, %s68
    %s72 = sphi 0, %s71
    %s88 = sphi 0, %s72
    %s94 = sphi 0, %s96
    %s97 = sphi 0, %s94
    %s98 = sphi 0, %s97
    %s114 = sphi 0, %s98
    %s122 = sphi 0, %s124
    %s125 = sphi 0, %s122
    %s126 = sphi 0, %s125
    %s142 = sphi 0, %s126
  $region4: #{dqn_forward.5} parent=0 // loop_header_branch
    %12 = sbr.rel (%p10) target = $region8
  $region5: #{dqn_forward.5} parent=0 // loop_body
    %s14 = ssub.s32 %s9, 1
    %s15 = ssub.s32 %s9, 2
    %s25 = sadd.s32 1, %s18
    %p26 = scmp.ge.s32.totalorder %s25, 1
    %s27 = scalar_select %p26, 0, %s25
    %s28 = sadd.s32 1, %s17
    %s29 = scalar_select %p26, %s28, %s17
    %p30 = scmp.ge.s32.totalorder %s29, 1
    %s31 = scalar_select %p30, 0, %s29
    %s32 = sadd.s32 1, %s16
    %s33 = scalar_select %p30, %s32, %s16
    %p34 = scmp.ge.s32.totalorder %s33, 7
    %s35 = scalar_select %p34, 0, %s33
    %s36 = ssub.s32 %s16, %s35
    %s37 = ssub.s32 %s18, %s27
    %s38 = sor.u32 %s36, %s37
    %p39 = scmp.eq.s32.totalorder %s38, 0
    %s41 = sadd.s32 %s40, 1
    %s42 = scalar_select %p39, %s40, %s41
    %p45 = pneg %p39
    %p46 = scmp.eq.s32.totalorder %s9, 6
    %p47 = por %p45, %p46
    %p48 = scmp.ne.s32.totalorder %s40, %s43
    %p49 = scmp.eq.s32.totalorder %s9, 0
    %p50 = por %p48, %p49
    %p51 = scmp.ne.s32.totalorder %s40, %s43
    %p52 = scmp.eq.s32.totalorder %s14, 6
    %p53 = por %p51, %p52
    %p54 = scmp.ne.s32.totalorder %s43, %s44
    %p55 = scmp.eq.s32.totalorder %s14, 0
    %p56 = por %p54, %p55
    %p57 = scmp.ne.s32.totalorder %s43, %s44
    %p58 = scmp.eq.s32.totalorder %s15, 6
    %p59 = por %p57, %p58
    %p61 = scmp.ne.s32.totalorder %s44, %s60
    %p62 = scmp.eq.s32.totalorder %s15, 0
    %p63 = por %p61, %p62
    %s64 = ssub.s32 %s18, %s27
    %s65 = ssub.s32 %s17, %s31
    %s66 = sor.u32 %s64, %s65
    %p67 = scmp.eq.s32.totalorder %s66, 0
    %s69 = sadd.s32 %s68, 1
    %s70 = scalar_select %p67, %s68, %s69
    %p73 = pneg %p67
    %p74 = scmp.eq.s32.totalorder %s9, 6
    %p75 = por %p73, %p74
    %p76 = scmp.ne.s32.totalorder %s68, %s71
    %p77 = scmp.eq.s32.totalorder %s9, 0
    %p78 = por %p76, %p77
    %p79 = scmp.ne.s32.totalorder %s68, %s71
    %p80 = scmp.eq.s32.totalorder %s14, 6
    %p81 = por %p79, %p80
    %p82 = scmp.ne.s32.totalorder %s71, %s72
    %p83 = scmp.eq.s32.totalorder %s14, 0
    %p84 = por %p82, %p83
    %p85 = scmp.ne.s32.totalorder %s71, %s72
    %p86 = scmp.eq.s32.totalorder %s15, 6
    %p87 = por %p85, %p86
    %p89 = scmp.ne.s32.totalorder %s72, %s88
    %p90 = scmp.eq.s32.totalorder %s15, 0
    %p91 = por %p89, %p90
    %s92 = ssub.s32 %s17, %s31
    %p93 = scmp.eq.s32.totalorder %s92, 0
    %s95 = sadd.s32 %s94, 1
    %s96 = scalar_select %p93, %s94, %s95
    %p99 = pneg %p93
    %p100 = scmp.eq.s32.totalorder %s9, 6
    %p101 = por %p99, %p100
    %p102 = scmp.ne.s32.totalorder %s94, %s97
    %p103 = scmp.eq.s32.totalorder %s9, 0
    %p104 = por %p102, %p103
    %p105 = scmp.ne.s32.totalorder %s94, %s97
    %p106 = scmp.eq.s32.totalorder %s14, 6
    %p107 = por %p105, %p106
    %p108 = scmp.ne.s32.totalorder %s97, %s98
    %p109 = scmp.eq.s32.totalorder %s14, 0
    %p110 = por %p108, %p109
    %p111 = scmp.ne.s32.totalorder %s97, %s98
    %p112 = scmp.eq.s32.totalorder %s15, 6
    %p113 = por %p111, %p112
    %p115 = scmp.ne.s32.totalorder %s98, %s114
    %p116 = scmp.eq.s32.totalorder %s15, 0
    %p117 = por %p115, %p116
    %s118 = ssub.s32 %s16, %s35
    %s119 = ssub.s32 %s17, %s31
    %s120 = sor.u32 %s118, %s119
    %p121 = scmp.eq.s32.totalorder %s120, 0
    %s123 = sadd.s32 %s122, 1
    %s124 = scalar_select %p121, %s122, %s123
    %p127 = pneg %p121
    %p128 = scmp.eq.s32.totalorder %s9, 6
    %p129 = por %p127, %p128
    %p130 = scmp.ne.s32.totalorder %s122, %s125
    %p131 = scmp.eq.s32.totalorder %s9, 0
    %p132 = por %p130, %p131
    %p133 = scmp.ne.s32.totalorder %s122, %s125
    %p134 = scmp.eq.s32.totalorder %s14, 6
    %p135 = por %p133, %p134
    %p136 = scmp.ne.s32.totalorder %s125, %s126
    %p137 = scmp.eq.s32.totalorder %s14, 0
    %p138 = por %p136, %p137
    %p139 = scmp.ne.s32.totalorder %s125, %s126
    %p140 = scmp.eq.s32.totalorder %s15, 6
    %p141 = por %p139, %p140
    %p143 = scmp.ne.s32.totalorder %s126, %s142
    %p144 = scmp.eq.s32.totalorder %s15, 0
    %p145 = por %p143, %p144
    %p146 = scmp.le.s32.totalorder 1, %s9
    %p147 = scmp.lt.s32.totalorder %s9, 8
    %p148 = pnand %p146, %p147
    %p149 = pneg %p148
    // Predicated region
    $region9: #{dqn_forward.5} parent=5 // pred_check
      _
    $region10: #{dqn_forward.5} parent=5 // pred_check_branch
      %151 = sbr.rel (%p148) target = $region12
    $region11: #{dqn_forward.5} parent=5 // pred_region
      %s152 = ssub.s32 %s9, 1
      // Predicated region
      $region13: #{dqn_forward.5} parent=11 // pred_check
        %p153 = pneg %p84
      $region14: #{dqn_forward.5} parent=11 // pred_check_branch
        %155 = sbr.rel (%p153) target = $region16
      $region15: #{dqn_forward.5} parent=11 // pred_region
        %s156 = smul.u32 32, %s21
        %p157 = scmp.lt.s32.totalorder %s156, 31
        %s158 = scalar_select %p157, %s156, 31
        %p159 = scmp.lt.s32.totalorder %s20, 0
        %s160 = scalar_select %p159, %s20, 0
        %s161 = sadd.s32 %s160, %s158
        %s162 = smul.addr %s161, 4
        %s163 = scalar_lea.vmem %s1, %s162
        %s164 = smul.u32 32, %s21
      $region16: #{dqn_forward.5} parent=11 // pred_fallthru
        _
      // Predicated region
      $region17: #{dqn_forward.5} parent=11 // pred_check
        %p165 = pneg %p110
      $region18: #{dqn_forward.5} parent=11 // pred_check_branch
        %167 = sbr.rel (%p165) target = $region20
      $region19: #{dqn_forward.5} parent=11 // pred_region
        %p168 = scmp.lt.s32.totalorder %s20, 0
        %s169 = scalar_select %p168, %s20, 0
        %s170 = scalar_lea.vmem %s2, %s169
      $region20: #{dqn_forward.5} parent=11 // pred_fallthru
        _
    $region12: #{dqn_forward.5} parent=5 // pred_fallthru
      _
    %p171 = scmp.lt.s32.totalorder %s9, 7
    // Predicated region
    $region21: #{dqn_forward.5} parent=5 // pred_check
      %p172 = pneg %p171
    $region22: #{dqn_forward.5} parent=5 // pred_check_branch
      %174 = sbr.rel (%p172) target = $region24
    $region23: #{dqn_forward.5} parent=5 // pred_region
      // Predicated region
      $region25: #{dqn_forward.5} parent=23 // pred_check
        %p175 = pneg %p50
      $region26: #{dqn_forward.5} parent=23 // pred_check_branch
        %177 = sbr.rel (%p175) target = $region28
      $region27: #{dqn_forward.5} parent=23 // pred_region
        %s178 = smul.u32 16, %s16
        %s179 = smul.u32 2, %s18
        %p180 = scmp.lt.s32.totalorder %s178, 111
        %s181 = scalar_select %p180, %s178, 111
        %p182 = scmp.lt.s32.totalorder %s179, 1
        %s183 = scalar_select %p182, %s179, 1
        %s184 = smul.addr %s181, 2
        %s185 = sadd.s32 %s183, %s184
        %s186 = smul.addr %s185, 4
        %s187 = scalar_lea.vmem %s0, %s186
        %s188 = smul.u32 16, %s16
        %s189 = smul.u32 2, %s18
      $region28: #{dqn_forward.5} parent=23 // pred_fallthru
        _
    $region24: #{dqn_forward.5} parent=5 // pred_fallthru
      _
    %p190 = scmp.le.s32.totalorder 1, %s9
    %p191 = scmp.lt.s32.totalorder %s9, 8
    %p192 = pnand %p190, %p191
    %p193 = pneg %p192
    // Predicated region
    $region29: #{dqn_forward.5} parent=5 // pred_check
      _
    $region30: #{dqn_forward.5} parent=5 // pred_check_branch
      %195 = sbr.rel (%p192) target = $region32
    $region31: #{dqn_forward.5} parent=5 // pred_region
      %s196 = ssub.s32 %s9, 1
      %s197 = smul.u32 16, %s19
      %s198 = smul.u32 2, %s21
      %p199 = scmp.lt.s32.totalorder %s197, 111
      %s200 = scalar_select %p199, %s197, 111
      %p201 = scmp.lt.s32.totalorder %s198, 1
      %s202 = scalar_select %p201, %s198, 1
      %s203 = smul.addr %s200, 2
      %s204 = sadd.s32 %s202, %s203
      %s205 = smul.addr %s204, 4
      %s206 = scalar_lea.vmem %s0, %s205
      %p207 = pneg %p56
      %p208 = pneg %p53
      %s209 = smul.u32 32, %s21
      %p210 = scmp.lt.s32.totalorder %s209, 31
      %s211 = scalar_select %p210, %s209, 31
      %p212 = scmp.lt.s32.totalorder %s20, 0
      %s213 = scalar_select %p212, %s20, 0
      %s214 = sadd.s32 %s213, %s211
      %s215 = smul.addr %s214, 4
      %s216 = scalar_lea.vmem %s1, %s215
      %p217 = pneg %p84
      %p218 = pneg %p81
      %p219 = scmp.lt.s32.totalorder %s20, 0
      %s220 = scalar_select %p219, %s20, 0
      %s221 = scalar_lea.vmem %s2, %s220
      %p222 = pneg %p110
      %p223 = pneg %p107
      %p224 = pneg %p138
      %p225 = pneg %p135
      %s226 = smul.u32 16, %s19
      %p227 = scmp.lt.s32.totalorder %s226, 111
      %s228 = scalar_select %p227, %s226, 111
      %p229 = scmp.lt.s32.totalorder %s20, 0
      %s230 = scalar_select %p229, %s20, 0
      %s231 = sadd.s32 %s230, %s228
      %s232 = smul.addr %s231, 8
      %s233 = scalar_lea.vmem %s3, %s232
      %s234 = smul.u32 16, %s19
      %s235 = smul.u32 2, %s21
      %p236 = scmp.lt.s32.totalorder %s234, 111
      %s237 = scalar_select %p236, %s234, 111
      %p238 = scmp.lt.s32.totalorder %s235, 1
      %s239 = scalar_select %p238, %s235, 1
      %s240 = smul.addr %s237, 2
      %s241 = sadd.s32 %s239, %s240
      %s242 = smul.addr %s241, 4
      %s243 = scalar_lea.vmem %s0, %s242
      %s244 = smul.u32 16, %s19
      %s245 = smul.u32 2, %s21
      %s246 = smul.u32 32, %s21
      %p247 = scmp.lt.s32.totalorder %s246, 31
      %s248 = scalar_select %p247, %s246, 31
      %p249 = scmp.lt.s32.totalorder %s20, 0
      %s250 = scalar_select %p249, %s20, 0
      %s251 = sadd.s32 %s250, %s248
      %s252 = smul.addr %s251, 4
      %s253 = scalar_lea.vmem %s1, %s252
      %s254 = smul.u32 32, %s21
      %p255 = scmp.lt.s32.totalorder %s20, 0
      %s256 = scalar_select %p255, %s20, 0
      %s257 = scalar_lea.vmem %s2, %s256
      %s258 = smul.u32 16, %s19
      %p259 = scmp.lt.s32.totalorder %s258, 111
      %s260 = scalar_select %p259, %s258, 111
      %p261 = scmp.lt.s32.totalorder %s20, 0
      %s262 = scalar_select %p261, %s20, 0
      %s263 = sadd.s32 %s262, %s260
      %s264 = smul.addr %s263, 8
      %s265 = scalar_lea.vmem %s3, %s264
      %s266 = smul.u32 16, %s19
      %p268 = scmp.eq.s32.totalorder %s21, 0
      // Predicated region
      $region33: #{dqn_forward.5} parent=31 // pred_check
        %p269 = pneg %p268
      $region34: #{dqn_forward.5} parent=31 // pred_check_branch
        %271 = sbr.rel (%p269) target = $region36
      $region35: #{dqn_forward.5} parent=31 // pred_region
        %272 = vst [vmem:[#allocation2] sm:$0xff] 0.0
        %273 = vst [vmem:[#allocation2 + $0x8] sm:$0xff] 0.0
        %274 = vst [vmem:[#allocation2 + $0x10] sm:$0xff] 0.0
        %275 = vst [vmem:[#allocation2 + $0x18] sm:$0xff] 0.0
        %276 = vst [vmem:[#allocation2 + $0x20] sm:$0xff] 0.0
        %277 = vst [vmem:[#allocation2 + $0x28] sm:$0xff] 0.0
        %278 = vst [vmem:[#allocation2 + $0x30] sm:$0xff] 0.0
        %279 = vst [vmem:[#allocation2 + $0x38] sm:$0xff] 0.0
        %280 = vst [vmem:[#allocation2 + $0x40] sm:$0xff] 0.0
        %281 = vst [vmem:[#allocation2 + $0x48] sm:$0xff] 0.0
        %282 = vst [vmem:[#allocation2 + $0x50] sm:$0xff] 0.0
        %283 = vst [vmem:[#allocation2 + $0x58] sm:$0xff] 0.0
        %284 = vst [vmem:[#allocation2 + $0x60] sm:$0xff] 0.0
        %285 = vst [vmem:[#allocation2 + $0x68] sm:$0xff] 0.0
        %286 = vst [vmem:[#allocation2 + $0x70] sm:$0xff] 0.0
        %287 = vst [vmem:[#allocation2 + $0x78] sm:$0xff] 0.0
      $region36: #{dqn_forward.5} parent=31 // pred_fallthru
        _
      %v288 = vld [vmem:[#allocation2] sm:$0xff]
      %v289 = vld [vmem:[#allocation2 + $0x8] sm:$0xff]
      %v290 = vld [vmem:[#allocation2 + $0x10] sm:$0xff]
      %v291 = vld [vmem:[#allocation2 + $0x18] sm:$0xff]
      %v292 = vld [vmem:[#allocation2 + $0x20] sm:$0xff]
      %v293 = vld [vmem:[#allocation2 + $0x28] sm:$0xff]
      %v294 = vld [vmem:[#allocation2 + $0x30] sm:$0xff]
      %v295 = vld [vmem:[#allocation2 + $0x38] sm:$0xff]
      %v296 = vld [vmem:[#allocation2 + $0x40] sm:$0xff]
      %v297 = vld [vmem:[#allocation2 + $0x48] sm:$0xff]
      %v298 = vld [vmem:[#allocation2 + $0x50] sm:$0xff]
      %v299 = vld [vmem:[#allocation2 + $0x58] sm:$0xff]
      %v300 = vld [vmem:[#allocation2 + $0x60] sm:$0xff]
      %v301 = vld [vmem:[#allocation2 + $0x68] sm:$0xff]
      %v302 = vld [vmem:[#allocation2 + $0x70] sm:$0xff]
      %v303 = vld [vmem:[#allocation2 + $0x78] sm:$0xff]
      %v304 = vld [vmem:[%s243] sm:$0xff]
      %v305 = vld [vmem:[%s243 + $0x8] sm:$0xff]
      %v306 = vld [vmem:[%s243 + $0x10] sm:$0xff]
      %v307 = vld [vmem:[%s243 + $0x18] sm:$0xff]
      %v308 = vld [vmem:[%s243 + $0x20] sm:$0xff]
      %v309 = vld [vmem:[%s243 + $0x28] sm:$0xff]
      %v310 = vld [vmem:[%s243 + $0x30] sm:$0xff]
      %v311 = vld [vmem:[%s243 + $0x38] sm:$0xff]
      %v312 = vld [vmem:[%s243 + $0x40] sm:$0xff]
      %v313 = vld [vmem:[%s243 + $0x48] sm:$0xff]
      %v314 = vld [vmem:[%s243 + $0x50] sm:$0xff]
      %v315 = vld [vmem:[%s243 + $0x58] sm:$0xff]
      %v316 = vld [vmem:[%s243 + $0x60] sm:$0xff]
      %v317 = vld [vmem:[%s243 + $0x68] sm:$0xff]
      %v318 = vld [vmem:[%s243 + $0x70] sm:$0xff]
      %v319 = vld [vmem:[%s243 + $0x78] sm:$0xff]
      %v320 = vld [vmem:[%s253] sm:$0xf]
      %v321 = vld [vmem:[%s253 + $0x4] sm:$0xf]
      %v322 = vld [vmem:[%s253 + $0x8] sm:$0xf]
      %v323 = vld [vmem:[%s253 + $0xc] sm:$0xf]
      %v324 = vld [vmem:[%s253 + $0x10] sm:$0xf]
      %v325 = vld [vmem:[%s253 + $0x14] sm:$0xf]
      %v326 = vld [vmem:[%s253 + $0x18] sm:$0xf]
      %v327 = vld [vmem:[%s253 + $0x1c] sm:$0xf]
      %v328 = vld [vmem:[%s253 + $0x20] sm:$0xf]
      %v329 = vld [vmem:[%s253 + $0x24] sm:$0xf]
      %v330 = vld [vmem:[%s253 + $0x28] sm:$0xf]
      %v331 = vld [vmem:[%s253 + $0x2c] sm:$0xf]
      %v332 = vld [vmem:[%s253 + $0x30] sm:$0xf]
      %v333 = vld [vmem:[%s253 + $0x34] sm:$0xf]
      %v334 = vld [vmem:[%s253 + $0x38] sm:$0xf]
      %v335 = vld [vmem:[%s253 + $0x3c] sm:$0xf]
      %v336 = vld [vmem:[%s253 + $0x40] sm:$0xf]
      %v337 = vld [vmem:[%s253 + $0x44] sm:$0xf]
      %v338 = vld [vmem:[%s253 + $0x48] sm:$0xf]
      %v339 = vld [vmem:[%s253 + $0x4c] sm:$0xf]
      %v340 = vld [vmem:[%s253 + $0x50] sm:$0xf]
      %v341 = vld [vmem:[%s253 + $0x54] sm:$0xf]
      %v342 = vld [vmem:[%s253 + $0x58] sm:$0xf]
      %v343 = vld [vmem:[%s253 + $0x5c] sm:$0xf]
      %v344 = vld [vmem:[%s253 + $0x60] sm:$0xf]
      %v345 = vld [vmem:[%s253 + $0x64] sm:$0xf]
      %v346 = vld [vmem:[%s253 + $0x68] sm:$0xf]
      %v347 = vld [vmem:[%s253 + $0x6c] sm:$0xf]
      %v348 = vld [vmem:[%s253 + $0x70] sm:$0xf]
      %v349 = vld [vmem:[%s253 + $0x74] sm:$0xf]
      %v350 = vld [vmem:[%s253 + $0x78] sm:$0xf]
      %v351 = vld [vmem:[%s253 + $0x7c] sm:$0xf]
      %v368 = vunpack.c.l.b16 %v304
      %v369 = vunpack.c.h.b16 %v304
      %v370 = vunpack.c.l.b16 %v305
      %v371 = vunpack.c.h.b16 %v305
      %v372 = vunpack.c.l.b16 %v306
      %v373 = vunpack.c.h.b16 %v306
      %v374 = vunpack.c.l.b16 %v307
      %v375 = vunpack.c.h.b16 %v307
      %v376 = vunpack.c.l.b16 %v308
      %v377 = vunpack.c.h.b16 %v308
      %v378 = vunpack.c.l.b16 %v309
      %v379 = vunpack.c.h.b16 %v309
      %v380 = vunpack.c.l.b16 %v310
      %v381 = vunpack.c.h.b16 %v310
      %v382 = vunpack.c.l.b16 %v311
      %v383 = vunpack.c.h.b16 %v311
      %v384 = vunpack.c.l.b16 %v312
      %v385 = vunpack.c.h.b16 %v312
      %v386 = vunpack.c.l.b16 %v313
      %v387 = vunpack.c.h.b16 %v313
      %v388 = vunpack.c.l.b16 %v314
      %v389 = vunpack.c.h.b16 %v314
      %v390 = vunpack.c.l.b16 %v315
      %v391 = vunpack.c.h.b16 %v315
      %v392 = vunpack.c.l.b16 %v316
      %v393 = vunpack.c.h.b16 %v316
      %v394 = vunpack.c.l.b16 %v317
      %v395 = vunpack.c.h.b16 %v317
      %v396 = vunpack.c.l.b16 %v318
      %v397 = vunpack.c.h.b16 %v318
      %v398 = vunpack.c.l.b16 %v319
      %v399 = vunpack.c.h.b16 %v319
      %v400 = vpack.c.b16 %v370, %v368
      %v401 = vpack.c.b16 %v371, %v369
      %v402 = vpack.c.b16 %v374, %v372
      %v403 = vpack.c.b16 %v375, %v373
      %v404 = vpack.c.b16 %v378, %v376
      %v405 = vpack.c.b16 %v379, %v377
      %v406 = vpack.c.b16 %v382, %v380
      %v407 = vpack.c.b16 %v383, %v381
      %v408 = vpack.c.b16 %v386, %v384
      %v409 = vpack.c.b16 %v387, %v385
      %v410 = vpack.c.b16 %v390, %v388
      %v411 = vpack.c.b16 %v391, %v389
      %v412 = vpack.c.b16 %v394, %v392
      %v413 = vpack.c.b16 %v395, %v393
      %v414 = vpack.c.b16 %v398, %v396
      %v415 = vpack.c.b16 %v399, %v397
      %v464 = vunpack.c.l.b16 %v320
      %v465 = vunpack.c.l.b16 %v321
      %v466 = vunpack.c.l.b16 %v322
      %v467 = vunpack.c.l.b16 %v323
      %v468 = vunpack.c.l.b16 %v324
      %v469 = vunpack.c.l.b16 %v325
      %v470 = vunpack.c.l.b16 %v326
      %v471 = vunpack.c.l.b16 %v327
      %v472 = vunpack.c.l.b16 %v328
      %v473 = vunpack.c.l.b16 %v329
      %v474 = vunpack.c.l.b16 %v330
      %v475 = vunpack.c.l.b16 %v331
      %v476 = vunpack.c.l.b16 %v332
      %v477 = vunpack.c.l.b16 %v333
      %v478 = vunpack.c.l.b16 %v334
      %v479 = vunpack.c.l.b16 %v335
      %v480 = vunpack.c.l.b16 %v336
      %v481 = vunpack.c.l.b16 %v337
      %v482 = vunpack.c.l.b16 %v338
      %v483 = vunpack.c.l.b16 %v339
      %v484 = vunpack.c.l.b16 %v340
      %v485 = vunpack.c.l.b16 %v341
      %v486 = vunpack.c.l.b16 %v342
      %v487 = vunpack.c.l.b16 %v343
      %v488 = vunpack.c.l.b16 %v344
      %v489 = vunpack.c.l.b16 %v345
      %v490 = vunpack.c.l.b16 %v346
      %v491 = vunpack.c.l.b16 %v347
      %v492 = vunpack.c.l.b16 %v348
      %v493 = vunpack.c.l.b16 %v349
      %v494 = vunpack.c.l.b16 %v350
      %v495 = vunpack.c.l.b16 %v351
      %v496 = vpack.c.b16 %v465, %v464
      %v497 = vpack.c.b16 %v467, %v466
      %v498 = vpack.c.b16 %v469, %v468
      %v499 = vpack.c.b16 %v471, %v470
      %v500 = vpack.c.b16 %v473, %v472
      %v501 = vpack.c.b16 %v475, %v474
      %v502 = vpack.c.b16 %v477, %v476
      %v503 = vpack.c.b16 %v479, %v478
      %v504 = vpack.c.b16 %v481, %v480
      %v505 = vpack.c.b16 %v483, %v482
      %v506 = vpack.c.b16 %v485, %v484
      %v507 = vpack.c.b16 %v487, %v486
      %v508 = vpack.c.b16 %v489, %v488
      %v509 = vpack.c.b16 %v491, %v490
      %v510 = vpack.c.b16 %v493, %v492
      %v511 = vpack.c.b16 %v495, %v494
      %528 = vmatprep.subr.bf16.mxu0 0
      %529 = vmatpush1.bf16.msra.mxu0 %v496
      %530 = vmatprep.subr.bf16.mxu0 0
      %531 = vmatpush1.bf16.msra.mxu0 %v497
      %532 = vmatprep.subr.bf16.mxu0 0
      %533 = vmatpush1.bf16.msra.mxu0 %v498
      %534 = vmatprep.subr.bf16.mxu0 0
      %535 = vmatpush1.bf16.msra.mxu0 %v499
      %536 = vmatprep.subr.bf16.mxu0 0
      %537 = vmatpush1.bf16.msra.mxu0 %v500
      %538 = vmatprep.subr.bf16.mxu0 0
      %539 = vmatpush1.bf16.msra.mxu0 %v501
      %540 = vmatprep.subr.bf16.mxu0 0
      %541 = vmatpush1.bf16.msra.mxu0 %v502
      %542 = vmatprep.subr.bf16.mxu0 0
      %543 = vmatpush1.bf16.msra.mxu0 %v503
      %544 = vmatprep.subr.bf16.mxu0 0
      %545 = vmatpush1.bf16.msra.mxu0 %v504
      %546 = vmatprep.subr.bf16.mxu0 0
      %547 = vmatpush1.bf16.msra.mxu0 %v505
      %548 = vmatprep.subr.bf16.mxu0 0
      %549 = vmatpush1.bf16.msra.mxu0 %v506
      %550 = vmatprep.subr.bf16.mxu0 0
      %551 = vmatpush1.bf16.msra.mxu0 %v507
      %552 = vmatprep.subr.bf16.mxu0 0
      %553 = vmatpush1.bf16.msra.mxu0 %v508
      %554 = vmatprep.subr.bf16.mxu0 0
      %555 = vmatpush1.bf16.msra.mxu0 %v509
      %556 = vmatprep.subr.bf16.mxu0 0
      %557 = vmatpush1.bf16.msra.mxu0 %v510
      %558 = vmatprep.subr.bf16.mxu0 0
      %559 = vmatpush1.bf16.msra.mxu0 %v511
      %560 = vmatprep.mubr.bf16.mxu0 %v401
      %561 = vmatmul.mubr.bf16.gmra.mrb[0].mxu0 %v400
      %v562 = vpop.f32.mrb[0].mxu0
      %v563 = vadd.f32 0.0, %v562
      %v564 = vpop.f32.mrb[0].mxu0
      %v565 = vpop.f32.mrb[0].mxu0
      %v566 = vadd.f32 0.0, %v565
      %v567 = vpop.f32.mrb[0].mxu0
      %568 = vmatprep.mubr.bf16.mxu0 %v403
      %569 = vmatmul.mubr.bf16.gmra.mrb[0].mxu0 %v402
      %v570 = vpop.f32.mrb[0].mxu0
      %v571 = vadd.f32 0.0, %v570
      %v572 = vpop.f32.mrb[0].mxu0
      %v573 = vpop.f32.mrb[0].mxu0
      %v574 = vadd.f32 0.0, %v573
      %v575 = vpop.f32.mrb[0].mxu0
      %576 = vmatprep.mubr.bf16.mxu0 %v405
      %577 = vmatmul.mubr.bf16.gmra.mrb[0].mxu0 %v404
      %v578 = vpop.f32.mrb[0].mxu0
      %v579 = vadd.f32 0.0, %v578
      %v580 = vpop.f32.mrb[0].mxu0
      %v581 = vpop.f32.mrb[0].mxu0
      %v582 = vadd.f32 0.0, %v581
      %v583 = vpop.f32.mrb[0].mxu0
      %584 = vmatprep.mubr.bf16.mxu0 %v407
      %585 = vmatmul.mubr.bf16.gmra.mrb[0].mxu0 %v406
      %v586 = vpop.f32.mrb[0].mxu0
      %v587 = vadd.f32 0.0, %v586
      %v588 = vpop.f32.mrb[0].mxu0
      %v589 = vpop.f32.mrb[0].mxu0
      %v590 = vadd.f32 0.0, %v589
      %v591 = vpop.f32.mrb[0].mxu0
      %592 = vmatprep.mubr.bf16.mxu0 %v409
      %593 = vmatmul.mubr.bf16.gmra.mrb[0].mxu0 %v408
      %v594 = vpop.f32.mrb[0].mxu0
      %v595 = vadd.f32 0.0, %v594
      %v596 = vpop.f32.mrb[0].mxu0
      %v597 = vpop.f32.mrb[0].mxu0
      %v598 = vadd.f32 0.0, %v597
      %v599 = vpop.f32.mrb[0].mxu0
      %600 = vmatprep.mubr.bf16.mxu0 %v411
      %601 = vmatmul.mubr.bf16.gmra.mrb[0].mxu0 %v410
      %v602 = vpop.f32.mrb[0].mxu0
      %v603 = vadd.f32 0.0, %v602
      %v604 = vpop.f32.mrb[0].mxu0
      %v605 = vpop.f32.mrb[0].mxu0
      %v606 = vadd.f32 0.0, %v605
      %v607 = vpop.f32.mrb[0].mxu0
      %608 = vmatprep.mubr.bf16.mxu0 %v413
      %609 = vmatmul.mubr.bf16.gmra.mrb[0].mxu0 %v412
      %v610 = vpop.f32.mrb[0].mxu0
      %v611 = vadd.f32 0.0, %v610
      %v612 = vpop.f32.mrb[0].mxu0
      %v613 = vpop.f32.mrb[0].mxu0
      %v614 = vadd.f32 0.0, %v613
      %v615 = vpop.f32.mrb[0].mxu0
      %616 = vmatprep.mubr.bf16.mxu0 %v415
      %617 = vmatmul.mubr.bf16.gmra.mrb[0].mxu0 %v414
      %v618 = vpop.f32.mrb[0].mxu0
      %v619 = vadd.f32 0.0, %v618
      %v620 = vpop.f32.mrb[0].mxu0
      %v621 = vpop.f32.mrb[0].mxu0
      %v622 = vadd.f32 0.0, %v621
      %v623 = vpop.f32.mrb[0].mxu0
      %624 = vdwg.mxu0
      %v625 = vadd.f32 %v288, %v563
      %v626 = vadd.f32 %v289, %v566
      %v627 = vadd.f32 %v290, %v571
      %v628 = vadd.f32 %v291, %v574
      %v629 = vadd.f32 %v292, %v579
      %v630 = vadd.f32 %v293, %v582
      %v631 = vadd.f32 %v294, %v587
      %v632 = vadd.f32 %v295, %v590
      %v633 = vadd.f32 %v296, %v595
      %v634 = vadd.f32 %v297, %v598
      %v635 = vadd.f32 %v298, %v603
      %v636 = vadd.f32 %v299, %v606
      %v637 = vadd.f32 %v300, %v611
      %v638 = vadd.f32 %v301, %v614
      %v639 = vadd.f32 %v302, %v619
      %v640 = vadd.f32 %v303, %v622
      %641 = vst [vmem:[#allocation2] sm:$0xff] %v625
      %642 = vst [vmem:[#allocation2 + $0x8] sm:$0xff] %v626
      %643 = vst [vmem:[#allocation2 + $0x10] sm:$0xff] %v627
      %644 = vst [vmem:[#allocation2 + $0x18] sm:$0xff] %v628
      %645 = vst [vmem:[#allocation2 + $0x20] sm:$0xff] %v629
      %646 = vst [vmem:[#allocation2 + $0x28] sm:$0xff] %v630
      %647 = vst [vmem:[#allocation2 + $0x30] sm:$0xff] %v631
      %648 = vst [vmem:[#allocation2 + $0x38] sm:$0xff] %v632
      %649 = vst [vmem:[#allocation2 + $0x40] sm:$0xff] %v633
      %650 = vst [vmem:[#allocation2 + $0x48] sm:$0xff] %v634
      %651 = vst [vmem:[#allocation2 + $0x50] sm:$0xff] %v635
      %652 = vst [vmem:[#allocation2 + $0x58] sm:$0xff] %v636
      %653 = vst [vmem:[#allocation2 + $0x60] sm:$0xff] %v637
      %654 = vst [vmem:[#allocation2 + $0x68] sm:$0xff] %v638
      %655 = vst [vmem:[#allocation2 + $0x70] sm:$0xff] %v639
      %656 = vst [vmem:[#allocation2 + $0x78] sm:$0xff] %v640
      // Predicated region
      $region37: #{dqn_forward.5} parent=31 // pred_check
        %p657 = pneg %p268
      $region38: #{dqn_forward.5} parent=31 // pred_check_branch
        %659 = sbr.rel (%p657) target = $region40
      $region39: #{dqn_forward.5} parent=31 // pred_region
        %v660 = vld [vmem:[#allocation2] sm:$0xff]
        %v661 = vld [vmem:[#allocation2 + $0x8] sm:$0xff]
        %v662 = vld [vmem:[#allocation2 + $0x10] sm:$0xff]
        %v663 = vld [vmem:[#allocation2 + $0x18] sm:$0xff]
        %v664 = vld [vmem:[#allocation2 + $0x20] sm:$0xff]
        %v665 = vld [vmem:[#allocation2 + $0x28] sm:$0xff]
        %v666 = vld [vmem:[#allocation2 + $0x30] sm:$0xff]
        %v667 = vld [vmem:[#allocation2 + $0x38] sm:$0xff]
        %v668 = vld [vmem:[#allocation2 + $0x40] sm:$0xff]
        %v669 = vld [vmem:[#allocation2 + $0x48] sm:$0xff]
        %v670 = vld [vmem:[#allocation2 + $0x50] sm:$0xff]
        %v671 = vld [vmem:[#allocation2 + $0x58] sm:$0xff]
        %v672 = vld [vmem:[#allocation2 + $0x60] sm:$0xff]
        %v673 = vld [vmem:[#allocation2 + $0x68] sm:$0xff]
        %v674 = vld [vmem:[#allocation2 + $0x70] sm:$0xff]
        %v675 = vld [vmem:[#allocation2 + $0x78] sm:$0xff]
        %v676 = vld [vmem:[%s257] sm:$0x1]
        %v678 = vlaneseq
        %v679 = vshrl.u32 %v678, 7
        %v680 = vsub.s32 0, %v679
        %v681 = vrot.slane %v676, %v680
        %v683 = vadd.f32 %v660, %v681
        %v684 = vadd.f32 %v661, %v681
        %v685 = vadd.f32 %v662, %v681
        %v686 = vadd.f32 %v663, %v681
        %v687 = vadd.f32 %v664, %v681
        %v688 = vadd.f32 %v665, %v681
        %v689 = vadd.f32 %v666, %v681
        %v690 = vadd.f32 %v667, %v681
        %v691 = vadd.f32 %v668, %v681
        %v692 = vadd.f32 %v669, %v681
        %v693 = vadd.f32 %v670, %v681
        %v694 = vadd.f32 %v671, %v681
        %v695 = vadd.f32 %v672, %v681
        %v696 = vadd.f32 %v673, %v681
        %v697 = vadd.f32 %v674, %v681
        %v698 = vadd.f32 %v675, %v681
        %v699 = vmax.f32 %v683, 0.0
        %v700 = vmax.f32 %v684, 0.0
        %v701 = vmax.f32 %v685, 0.0
        %v702 = vmax.f32 %v686, 0.0
        %v703 = vmax.f32 %v687, 0.0
        %v704 = vmax.f32 %v688, 0.0
        %v705 = vmax.f32 %v689, 0.0
        %v706 = vmax.f32 %v690, 0.0
        %v707 = vmax.f32 %v691, 0.0
        %v708 = vmax.f32 %v692, 0.0
        %v709 = vmax.f32 %v693, 0.0
        %v710 = vmax.f32 %v694, 0.0
        %v711 = vmax.f32 %v695, 0.0
        %v712 = vmax.f32 %v696, 0.0
        %v713 = vmax.f32 %v697, 0.0
        %v714 = vmax.f32 %v698, 0.0
        %715 = vst [vmem:[%s265] sm:$0xff] %v699
        %716 = vst [vmem:[%s265 + $0x8] sm:$0xff] %v700
        %717 = vst [vmem:[%s265 + $0x10] sm:$0xff] %v701
        %718 = vst [vmem:[%s265 + $0x18] sm:$0xff] %v702
        %719 = vst [vmem:[%s265 + $0x20] sm:$0xff] %v703
        %720 = vst [vmem:[%s265 + $0x28] sm:$0xff] %v704
        %721 = vst [vmem:[%s265 + $0x30] sm:$0xff] %v705
        %722 = vst [vmem:[%s265 + $0x38] sm:$0xff] %v706
        %723 = vst [vmem:[%s265 + $0x40] sm:$0xff] %v707
        %724 = vst [vmem:[%s265 + $0x48] sm:$0xff] %v708
        %725 = vst [vmem:[%s265 + $0x50] sm:$0xff] %v709
        %726 = vst [vmem:[%s265 + $0x58] sm:$0xff] %v710
        %727 = vst [vmem:[%s265 + $0x60] sm:$0xff] %v711
        %728 = vst [vmem:[%s265 + $0x68] sm:$0xff] %v712
        %729 = vst [vmem:[%s265 + $0x70] sm:$0xff] %v713
        %730 = vst [vmem:[%s265 + $0x78] sm:$0xff] %v714
      $region40: #{dqn_forward.5} parent=31 // pred_fallthru
        _
      %s731 = smul.u32 16, %s19
      %p732 = scmp.lt.s32.totalorder %s731, 111
      %s733 = scalar_select %p732, %s731, 111
      %p734 = scmp.lt.s32.totalorder %s20, 0
      %s735 = scalar_select %p734, %s20, 0
      %s736 = sadd.s32 %s735, %s733
      %s737 = smul.addr %s736, 8
      %s738 = scalar_lea.vmem %s3, %s737
      // Predicated region
      $region41: #{dqn_forward.5} parent=31 // pred_check
        %p739 = pneg %p135
      $region42: #{dqn_forward.5} parent=31 // pred_check_branch
        %741 = sbr.rel (%p739) target = $region44
      $region43: #{dqn_forward.5} parent=31 // pred_region
        %s742 = smul.u32 16, %s19
      $region44: #{dqn_forward.5} parent=31 // pred_fallthru
        _
    $region32: #{dqn_forward.5} parent=5 // pred_fallthru
      _
    %p743 = scmp.le.s32.totalorder 2, %s9
    // Predicated region
    $region45: #{dqn_forward.5} parent=5 // pred_check
      %p744 = pneg %p743
    $region46: #{dqn_forward.5} parent=5 // pred_check_branch
      %746 = sbr.rel (%p744) target = $region48
    $region47: #{dqn_forward.5} parent=5 // pred_region
      %s747 = ssub.s32 %s9, 2
      // Predicated region
      $region49: #{dqn_forward.5} parent=47 // pred_check
        %p748 = pneg %p141
      $region50: #{dqn_forward.5} parent=47 // pred_check_branch
        %750 = sbr.rel (%p748) target = $region52
      $region51: #{dqn_forward.5} parent=47 // pred_region
        %s751 = smul.u32 16, %s22
        %p752 = scmp.lt.s32.totalorder %s751, 111
        %s753 = scalar_select %p752, %s751, 111
        %p754 = scmp.lt.s32.totalorder %s23, 0
        %s755 = scalar_select %p754, %s23, 0
        %s756 = sadd.s32 %s755, %s753
        %s757 = smul.addr %s756, 8
        %s758 = scalar_lea.vmem %s3, %s757
      $region52: #{dqn_forward.5} parent=47 // pred_fallthru
        _
    $region48: #{dqn_forward.5} parent=5 // pred_fallthru
      _
  $region6: #{dqn_forward.5} parent=0 // loop_footer
    %s13 = sadd.s32 1, %s9
  $region7: #{dqn_forward.5} parent=0 // loop_footer_branch
    %8 = sbr.rel target = $region3
  $region8: #{dqn_forward.5} parent=0 // loop_exit
    _

// kernel: dqn_forward.6
$region0: #{dqn_forward.6}
  #allocation0 [shape = 'u32[]', space=smem, size = 0x4, offset = 0x4, fixed_abs, tag = 'smem constant byte address 0x4 - core index']
  #allocation1 [shape = 'u32[144,128]{1,0:T(1,128)}', space=vmem, size = 0x12000, scoped, tag = 'internal scratch']
  #allocation2 [shape = 'f32[128,128]{1,0:T(8,128)}', space=vmem, size = 0x10000, scoped, tag = 'scratch operand']
  %s0 = inlined_call_operand.vmem [shape: bf16[256,512], index: 0, kind: input, shape index: {}]
  %s1 = inlined_call_operand.vmem [shape: bf16[512,128], index: 1, kind: input, shape index: {}]
  %s2 = inlined_call_operand.vmem [shape: f32[1,128], index: 2, kind: input, shape index: {}]
  %s3 = inlined_call_operand.vmem [shape: f32[256,128], index: 3, kind: output, shape index: {}]
  %s4 = sld [smem:[#allocation0]]
  $region53: #{dqn_forward.6} parent=0
    _
  %s6 = ssub.s32 1, %s4
  %s7 = scalar_select 0, %s6, %s4
  loop: start=0, step=1, limit=4
  $region2: #{dqn_forward.6} parent=0 // loop_pre_header
    _
  $region3: #{dqn_forward.6} parent=0 // loop_header
    %s9 = sphi 0, %s13
    %p10 = scmp.ge.s32.totalorder %s9, 4
    %s16 = sphi 0, %s35
    %s17 = sphi 0, %s31
    %s18 = sphi 0, %s27
    %s19 = sphi 0, %s16
    %s20 = sphi 0, %s17
    %s21 = sphi 0, %s18
    %s22 = sphi 0, %s19
    %s23 = sphi 0, %s20
    %s24 = sphi 0, %s21
    %s40 = sphi 0, %s42
    %s43 = sphi 0, %s40
    %s44 = sphi 0, %s43
    %s60 = sphi 0, %s44
    %s68 = sphi 0, %s70
    %s71 = sphi 0, %s68
    %s72 = sphi 0, %s71
    %s88 = sphi 0, %s72
    %s94 = sphi 0, %s96
    %s97 = sphi 0, %s94
    %s98 = sphi 0, %s97
    %s114 = sphi 0, %s98
    %s122 = sphi 0, %s124
    %s125 = sphi 0, %s122
    %s126 = sphi 0, %s125
    %s142 = sphi 0, %s126
  $region4: #{dqn_forward.6} parent=0 // loop_header_branch
    %12 = sbr.rel (%p10) target = $region8
  $region5: #{dqn_forward.6} parent=0 // loop_body
    %s14 = ssub.s32 %s9, 1
    %s15 = ssub.s32 %s9, 2
    %s25 = sadd.s32 1, %s18
    %p26 = scmp.ge.s32.totalorder %s25, 1
    %s27 = scalar_select %p26, 0, %s25
    %s28 = sadd.s32 1, %s17
    %s29 = scalar_select %p26, %s28, %s17
    %p30 = scmp.ge.s32.totalorder %s29, 1
    %s31 = scalar_select %p30, 0, %s29
    %s32 = sadd.s32 1, %s16
    %s33 = scalar_select %p30, %s32, %s16
    %p34 = scmp.ge.s32.totalorder %s33, 2
    %s35 = scalar_select %p34, 0, %s33
    %s36 = ssub.s32 %s16, %s35
    %s37 = ssub.s32 %s18, %s27
    %s38 = sor.u32 %s36, %s37
    %p39 = scmp.eq.s32.totalorder %s38, 0
    %s41 = sadd.s32 %s40, 1
    %s42 = scalar_select %p39, %s40, %s41
    %p45 = pneg %p39
    %p46 = scmp.eq.s32.totalorder %s9, 1
    %p47 = por %p45, %p46
    %p48 = scmp.ne.s32.totalorder %s40, %s43
    %p49 = scmp.eq.s32.totalorder %s9, 0
    %p50 = por %p48, %p49
    %p51 = scmp.ne.s32.totalorder %s40, %s43
    %p52 = scmp.eq.s32.totalorder %s14, 1
    %p53 = por %p51, %p52
    %p54 = scmp.ne.s32.totalorder %s43, %s44
    %p55 = scmp.eq.s32.totalorder %s14, 0
    %p56 = por %p54, %p55
    %p57 = scmp.ne.s32.totalorder %s43, %s44
    %p58 = scmp.eq.s32.totalorder %s15, 1
    %p59 = por %p57, %p58
    %p61 = scmp.ne.s32.totalorder %s44, %s60
    %p62 = scmp.eq.s32.totalorder %s15, 0
    %p63 = por %p61, %p62
    %s64 = ssub.s32 %s18, %s27
    %s65 = ssub.s32 %s17, %s31
    %s66 = sor.u32 %s64, %s65
    %p67 = scmp.eq.s32.totalorder %s66, 0
    %s69 = sadd.s32 %s68, 1
    %s70 = scalar_select %p67, %s68, %s69
    %p73 = pneg %p67
    %p74 = scmp.eq.s32.totalorder %s9, 1
    %p75 = por %p73, %p74
    %p76 = scmp.ne.s32.totalorder %s68, %s71
    %p77 = scmp.eq.s32.totalorder %s9, 0
    %p78 = por %p76, %p77
    %p79 = scmp.ne.s32.totalorder %s68, %s71
    %p80 = scmp.eq.s32.totalorder %s14, 1
    %p81 = por %p79, %p80
    %p82 = scmp.ne.s32.totalorder %s71, %s72
    %p83 = scmp.eq.s32.totalorder %s14, 0
    %p84 = por %p82, %p83
    %p85 = scmp.ne.s32.totalorder %s71, %s72
    %p86 = scmp.eq.s32.totalorder %s15, 1
    %p87 = por %p85, %p86
    %p89 = scmp.ne.s32.totalorder %s72, %s88
    %p90 = scmp.eq.s32.totalorder %s15, 0
    %p91 = por %p89, %p90
    %s92 = ssub.s32 %s17, %s31
    %p93 = scmp.eq.s32.totalorder %s92, 0
    %s95 = sadd.s32 %s94, 1
    %s96 = scalar_select %p93, %s94, %s95
    %p99 = pneg %p93
    %p100 = scmp.eq.s32.totalorder %s9, 1
    %p101 = por %p99, %p100
    %p102 = scmp.ne.s32.totalorder %s94, %s97
    %p103 = scmp.eq.s32.totalorder %s9, 0
    %p104 = por %p102, %p103
    %p105 = scmp.ne.s32.totalorder %s94, %s97
    %p106 = scmp.eq.s32.totalorder %s14, 1
    %p107 = por %p105, %p106
    %p108 = scmp.ne.s32.totalorder %s97, %s98
    %p109 = scmp.eq.s32.totalorder %s14, 0
    %p110 = por %p108, %p109
    %p111 = scmp.ne.s32.totalorder %s97, %s98
    %p112 = scmp.eq.s32.totalorder %s15, 1
    %p113 = por %p111, %p112
    %p115 = scmp.ne.s32.totalorder %s98, %s114
    %p116 = scmp.eq.s32.totalorder %s15, 0
    %p117 = por %p115, %p116
    %s118 = ssub.s32 %s16, %s35
    %s119 = ssub.s32 %s17, %s31
    %s120 = sor.u32 %s118, %s119
    %p121 = scmp.eq.s32.totalorder %s120, 0
    %s123 = sadd.s32 %s122, 1
    %s124 = scalar_select %p121, %s122, %s123
    %p127 = pneg %p121
    %p128 = scmp.eq.s32.totalorder %s9, 1
    %p129 = por %p127, %p128
    %p130 = scmp.ne.s32.totalorder %s122, %s125
    %p131 = scmp.eq.s32.totalorder %s9, 0
    %p132 = por %p130, %p131
    %p133 = scmp.ne.s32.totalorder %s122, %s125
    %p134 = scmp.eq.s32.totalorder %s14, 1
    %p135 = por %p133, %p134
    %p136 = scmp.ne.s32.totalorder %s125, %s126
    %p137 = scmp.eq.s32.totalorder %s14, 0
    %p138 = por %p136, %p137
    %p139 = scmp.ne.s32.totalorder %s125, %s126
    %p140 = scmp.eq.s32.totalorder %s15, 1
    %p141 = por %p139, %p140
    %p143 = scmp.ne.s32.totalorder %s126, %s142
    %p144 = scmp.eq.s32.totalorder %s15, 0
    %p145 = por %p143, %p144
    %p146 = scmp.le.s32.totalorder 1, %s9
    %p147 = scmp.lt.s32.totalorder %s9, 3
    %p148 = pnand %p146, %p147
    %p149 = pneg %p148
    // Predicated region
    $region9: #{dqn_forward.6} parent=5 // pred_check
      _
    $region10: #{dqn_forward.6} parent=5 // pred_check_branch
      %151 = sbr.rel (%p148) target = $region12
    $region11: #{dqn_forward.6} parent=5 // pred_region
      %s152 = ssub.s32 %s9, 1
      // Predicated region
      $region13: #{dqn_forward.6} parent=11 // pred_check
        %p153 = pneg %p84
      $region14: #{dqn_forward.6} parent=11 // pred_check_branch
        %155 = sbr.rel (%p153) target = $region16
      $region15: #{dqn_forward.6} parent=11 // pred_region
        %s156 = smul.u32 64, %s21
        %p157 = scmp.lt.s32.totalorder %s156, 63
        %s158 = scalar_select %p157, %s156, 63
        %p159 = scmp.lt.s32.totalorder %s20, 0
        %s160 = scalar_select %p159, %s20, 0
        %s161 = sadd.s32 %s160, %s158
        %s162 = smul.addr %s161, 4
        %s163 = scalar_lea.vmem %s1, %s162
        %s164 = smul.u32 64, %s21
      $region16: #{dqn_forward.6} parent=11 // pred_fallthru
        _
      // Predicated region
      $region17: #{dqn_forward.6} parent=11 // pred_check
        %p165 = pneg %p110
      $region18: #{dqn_forward.6} parent=11 // pred_check_branch
        %167 = sbr.rel (%p165) target = $region20
      $region19: #{dqn_forward.6} parent=11 // pred_region
        %p168 = scmp.lt.s32.totalorder %s20, 0
        %s169 = scalar_select %p168, %s20, 0
        %s170 = scalar_lea.vmem %s2, %s169
      $region20: #{dqn_forward.6} parent=11 // pred_fallthru
        _
    $region12: #{dqn_forward.6} parent=5 // pred_fallthru
      _
    %p171 = scmp.lt.s32.totalorder %s9, 2
    // Predicated region
    $region21: #{dqn_forward.6} parent=5 // pred_check
      %p172 = pneg %p171
    $region22: #{dqn_forward.6} parent=5 // pred_check_branch
      %174 = sbr.rel (%p172) target = $region24
    $region23: #{dqn_forward.6} parent=5 // pred_region
      // Predicated region
      $region25: #{dqn_forward.6} parent=23 // pred_check
        %p175 = pneg %p50
      $region26: #{dqn_forward.6} parent=23 // pred_check_branch
        %177 = sbr.rel (%p175) target = $region28
      $region27: #{dqn_forward.6} parent=23 // pred_region
        %s178 = smul.u32 16, %s16
        %s179 = smul.u32 4, %s18
        %p180 = scmp.lt.s32.totalorder %s178, 31
        %s181 = scalar_select %p180, %s178, 31
        %p182 = scmp.lt.s32.totalorder %s179, 3
        %s183 = scalar_select %p182, %s179, 3
        %s184 = smul.addr %s181, 4
        %s185 = sadd.s32 %s183, %s184
        %s186 = smul.addr %s185, 4
        %s187 = scalar_lea.vmem %s0, %s186
        %s188 = smul.u32 16, %s16
        %s189 = smul.u32 4, %s18
      $region28: #{dqn_forward.6} parent=23 // pred_fallthru
        _
    $region24: #{dqn_forward.6} parent=5 // pred_fallthru
      _
    %p190 = scmp.le.s32.totalorder 1, %s9
    %p191 = scmp.lt.s32.totalorder %s9, 3
    %p192 = pnand %p190, %p191
    %p193 = pneg %p192
    // Predicated region
    $region29: #{dqn_forward.6} parent=5 // pred_check
      _
    $region30: #{dqn_forward.6} parent=5 // pred_check_branch
      %195 = sbr.rel (%p192) target = $region32
    $region31: #{dqn_forward.6} parent=5 // pred_region
      %s196 = ssub.s32 %s9, 1
      %s197 = smul.u32 16, %s19
      %s198 = smul.u32 4, %s21
      %p199 = scmp.lt.s32.totalorder %s197, 31
      %s200 = scalar_select %p199, %s197, 31
      %p201 = scmp.lt.s32.totalorder %s198, 3
      %s202 = scalar_select %p201, %s198, 3
      %s203 = smul.addr %s200, 4
      %s204 = sadd.s32 %s202, %s203
      %s205 = smul.addr %s204, 4
      %s206 = scalar_lea.vmem %s0, %s205
      %p207 = pneg %p56
      %p208 = pneg %p53
      %s209 = smul.u32 64, %s21
      %p210 = scmp.lt.s32.totalorder %s209, 63
      %s211 = scalar_select %p210, %s209, 63
      %p212 = scmp.lt.s32.totalorder %s20, 0
      %s213 = scalar_select %p212, %s20, 0
      %s214 = sadd.s32 %s213, %s211
      %s215 = smul.addr %s214, 4
      %s216 = scalar_lea.vmem %s1, %s215
      %p217 = pneg %p84
      %p218 = pneg %p81
      %p219 = scmp.lt.s32.totalorder %s20, 0
      %s220 = scalar_select %p219, %s20, 0
      %s221 = scalar_lea.vmem %s2, %s220
      %p222 = pneg %p110
      %p223 = pneg %p107
      %p224 = pneg %p138
      %p225 = pneg %p135
      %s226 = smul.u32 16, %s19
      %p227 = scmp.lt.s32.totalorder %s226, 31
      %s228 = scalar_select %p227, %s226, 31
      %p229 = scmp.lt.s32.totalorder %s20, 0
      %s230 = scalar_select %p229, %s20, 0
      %s231 = sadd.s32 %s230, %s228
      %s232 = smul.addr %s231, 8
      %s233 = scalar_lea.vmem %s3, %s232
      %s234 = smul.u32 16, %s19
      %s235 = smul.u32 4, %s21
      %p236 = scmp.lt.s32.totalorder %s234, 31
      %s237 = scalar_select %p236, %s234, 31
      %p238 = scmp.lt.s32.totalorder %s235, 3
      %s239 = scalar_select %p238, %s235, 3
      %s240 = smul.addr %s237, 4
      %s241 = sadd.s32 %s239, %s240
      %s242 = smul.addr %s241, 4
      %s243 = scalar_lea.vmem %s0, %s242
      %s244 = smul.u32 16, %s19
      %s245 = smul.u32 4, %s21
      %s246 = smul.u32 64, %s21
      %p247 = scmp.lt.s32.totalorder %s246, 63
      %s248 = scalar_select %p247, %s246, 63
      %p249 = scmp.lt.s32.totalorder %s20, 0
      %s250 = scalar_select %p249, %s20, 0
      %s251 = sadd.s32 %s250, %s248
      %s252 = smul.addr %s251, 4
      %s253 = scalar_lea.vmem %s1, %s252
      %s254 = smul.u32 64, %s21
      %p255 = scmp.lt.s32.totalorder %s20, 0
      %s256 = scalar_select %p255, %s20, 0
      %s257 = scalar_lea.vmem %s2, %s256
      %s258 = smul.u32 16, %s19
      %p259 = scmp.lt.s32.totalorder %s258, 31
      %s260 = scalar_select %p259, %s258, 31
      %p261 = scmp.lt.s32.totalorder %s20, 0
      %s262 = scalar_select %p261, %s20, 0
      %s263 = sadd.s32 %s262, %s260
      %s264 = smul.addr %s263, 8
      %s265 = scalar_lea.vmem %s3, %s264
      %s266 = smul.u32 16, %s19
      %p268 = scmp.eq.s32.totalorder %s21, 0
      // Predicated region
      $region33: #{dqn_forward.6} parent=31 // pred_check
        %p269 = pneg %p268
      $region34: #{dqn_forward.6} parent=31 // pred_check_branch
        %271 = sbr.rel (%p269) target = $region36
      $region35: #{dqn_forward.6} parent=31 // pred_region
        %272 = vst [vmem:[#allocation2] sm:$0xff] 0.0
        %273 = vst [vmem:[#allocation2 + $0x8] sm:$0xff] 0.0
        %274 = vst [vmem:[#allocation2 + $0x10] sm:$0xff] 0.0
        %275 = vst [vmem:[#allocation2 + $0x18] sm:$0xff] 0.0
        %276 = vst [vmem:[#allocation2 + $0x20] sm:$0xff] 0.0
        %277 = vst [vmem:[#allocation2 + $0x28] sm:$0xff] 0.0
        %278 = vst [vmem:[#allocation2 + $0x30] sm:$0xff] 0.0
        %279 = vst [vmem:[#allocation2 + $0x38] sm:$0xff] 0.0
        %280 = vst [vmem:[#allocation2 + $0x40] sm:$0xff] 0.0
        %281 = vst [vmem:[#allocation2 + $0x48] sm:$0xff] 0.0
        %282 = vst [vmem:[#allocation2 + $0x50] sm:$0xff] 0.0
        %283 = vst [vmem:[#allocation2 + $0x58] sm:$0xff] 0.0
        %284 = vst [vmem:[#allocation2 + $0x60] sm:$0xff] 0.0
        %285 = vst [vmem:[#allocation2 + $0x68] sm:$0xff] 0.0
        %286 = vst [vmem:[#allocation2 + $0x70] sm:$0xff] 0.0
        %287 = vst [vmem:[#allocation2 + $0x78] sm:$0xff] 0.0
      $region36: #{dqn_forward.6} parent=31 // pred_fallthru
        _
      %v288 = vld [vmem:[#allocation2] sm:$0xff]
      %v289 = vld [vmem:[#allocation2 + $0x8] sm:$0xff]
      %v290 = vld [vmem:[#allocation2 + $0x10] sm:$0xff]
      %v291 = vld [vmem:[#allocation2 + $0x18] sm:$0xff]
      %v292 = vld [vmem:[#allocation2 + $0x20] sm:$0xff]
      %v293 = vld [vmem:[#allocation2 + $0x28] sm:$0xff]
      %v294 = vld [vmem:[#allocation2 + $0x30] sm:$0xff]
      %v295 = vld [vmem:[#allocation2 + $0x38] sm:$0xff]
      %v296 = vld [vmem:[#allocation2 + $0x40] sm:$0xff]
      %v297 = vld [vmem:[#allocation2 + $0x48] sm:$0xff]
      %v298 = vld [vmem:[#allocation2 + $0x50] sm:$0xff]
      %v299 = vld [vmem:[#allocation2 + $0x58] sm:$0xff]
      %v300 = vld [vmem:[#allocation2 + $0x60] sm:$0xff]
      %v301 = vld [vmem:[#allocation2 + $0x68] sm:$0xff]
      %v302 = vld [vmem:[#allocation2 + $0x70] sm:$0xff]
      %v303 = vld [vmem:[#allocation2 + $0x78] sm:$0xff]
      %v304 = vld [vmem:[%s243] sm:$0xff]
      %v305 = vld [vmem:[%s243 + $0x8] sm:$0xff]
      %v306 = vld [vmem:[%s243 + $0x10] sm:$0xff]
      %v307 = vld [vmem:[%s243 + $0x18] sm:$0xff]
      %v308 = vld [vmem:[%s243 + $0x20] sm:$0xff]
      %v309 = vld [vmem:[%s243 + $0x28] sm:$0xff]
      %v310 = vld [vmem:[%s243 + $0x30] sm:$0xff]
      %v311 = vld [vmem:[%s243 + $0x38] sm:$0xff]
      %v312 = vld [vmem:[%s243 + $0x40] sm:$0xff]
      %v313 = vld [vmem:[%s243 + $0x48] sm:$0xff]
      %v314 = vld [vmem:[%s243 + $0x50] sm:$0xff]
      %v315 = vld [vmem:[%s243 + $0x58] sm:$0xff]
      %v316 = vld [vmem:[%s243 + $0x60] sm:$0xff]
      %v317 = vld [vmem:[%s243 + $0x68] sm:$0xff]
      %v318 = vld [vmem:[%s243 + $0x70] sm:$0xff]
      %v319 = vld [vmem:[%s243 + $0x78] sm:$0xff]
      %v320 = vld [vmem:[%s243 + $0x80] sm:$0xff]
      %v321 = vld [vmem:[%s243 + $0x88] sm:$0xff]
      %v322 = vld [vmem:[%s243 + $0x90] sm:$0xff]
      %v323 = vld [vmem:[%s243 + $0x98] sm:$0xff]
      %v324 = vld [vmem:[%s243 + $0xa0] sm:$0xff]
      %v325 = vld [vmem:[%s243 + $0xa8] sm:$0xff]
      %v326 = vld [vmem:[%s243 + $0xb0] sm:$0xff]
      %v327 = vld [vmem:[%s243 + $0xb8] sm:$0xff]
      %v328 = vld [vmem:[%s243 + $0xc0] sm:$0xff]
      %v329 = vld [vmem:[%s243 + $0xc8] sm:$0xff]
      %v330 = vld [vmem:[%s243 + $0xd0] sm:$0xff]
      %v331 = vld [vmem:[%s243 + $0xd8] sm:$0xff]
      %v332 = vld [vmem:[%s243 + $0xe0] sm:$0xff]
      %v333 = vld [vmem:[%s243 + $0xe8] sm:$0xff]
      %v334 = vld [vmem:[%s243 + $0xf0] sm:$0xff]
      %v335 = vld [vmem:[%s243 + $0xf8] sm:$0xff]
      %v336 = vld [vmem:[%s253] sm:$0xf]
      %v337 = vld [vmem:[%s253 + $0x4] sm:$0xf]
      %v338 = vld [vmem:[%s253 + $0x8] sm:$0xf]
      %v339 = vld [vmem:[%s253 + $0xc] sm:$0xf]
      %v340 = vld [vmem:[%s253 + $0x10] sm:$0xf]
      %v341 = vld [vmem:[%s253 + $0x14] sm:$0xf]
      %v342 = vld [vmem:[%s253 + $0x18] sm:$0xf]
      %v343 = vld [vmem:[%s253 + $0x1c] sm:$0xf]
      %v344 = vld [vmem:[%s253 + $0x20] sm:$0xf]
      %v345 = vld [vmem:[%s253 + $0x24] sm:$0xf]
      %v346 = vld [vmem:[%s253 + $0x28] sm:$0xf]
      %v347 = vld [vmem:[%s253 + $0x2c] sm:$0xf]
      %v348 = vld [vmem:[%s253 + $0x30] sm:$0xf]
      %v349 = vld [vmem:[%s253 + $0x34] sm:$0xf]
      %v350 = vld [vmem:[%s253 + $0x38] sm:$0xf]
      %v351 = vld [vmem:[%s253 + $0x3c] sm:$0xf]
      %v352 = vld [vmem:[%s253 + $0x40] sm:$0xf]
      %v353 = vld [vmem:[%s253 + $0x44] sm:$0xf]
      %v354 = vld [vmem:[%s253 + $0x48] sm:$0xf]
      %v355 = vld [vmem:[%s253 + $0x4c] sm:$0xf]
      %v356 = vld [vmem:[%s253 + $0x50] sm:$0xf]
      %v357 = vld [vmem:[%s253 + $0x54] sm:$0xf]
      %v358 = vld [vmem:[%s253 + $0x58] sm:$0xf]
      %v359 = vld [vmem:[%s253 + $0x5c] sm:$0xf]
      %v360 = vld [vmem:[%s253 + $0x60] sm:$0xf]
      %v361 = vld [vmem:[%s253 + $0x64] sm:$0xf]
      %v362 = vld [vmem:[%s253 + $0x68] sm:$0xf]
      %v363 = vld [vmem:[%s253 + $0x6c] sm:$0xf]
      %v364 = vld [vmem:[%s253 + $0x70] sm:$0xf]
      %v365 = vld [vmem:[%s253 + $0x74] sm:$0xf]
      %v366 = vld [vmem:[%s253 + $0x78] sm:$0xf]
      %v367 = vld [vmem:[%s253 + $0x7c] sm:$0xf]
      %v368 = vld [vmem:[%s253 + $0x80] sm:$0xf]
      %v369 = vld [vmem:[%s253 + $0x84] sm:$0xf]
      %v370 = vld [vmem:[%s253 + $0x88] sm:$0xf]
      %v371 = vld [vmem:[%s253 + $0x8c] sm:$0xf]
      %v372 = vld [vmem:[%s253 + $0x90] sm:$0xf]
      %v373 = vld [vmem:[%s253 + $0x94] sm:$0xf]
      %v374 = vld [vmem:[%s253 + $0x98] sm:$0xf]
      %v375 = vld [vmem:[%s253 + $0x9c] sm:$0xf]
      %v376 = vld [vmem:[%s253 + $0xa0] sm:$0xf]
      %v377 = vld [vmem:[%s253 + $0xa4] sm:$0xf]
      %v378 = vld [vmem:[%s253 + $0xa8] sm:$0xf]
      %v379 = vld [vmem:[%s253 + $0xac] sm:$0xf]
      %v380 = vld [vmem:[%s253 + $0xb0] sm:$0xf]
      %v381 = vld [vmem:[%s253 + $0xb4] sm:$0xf]
      %v382 = vld [vmem:[%s253 + $0xb8] sm:$0xf]
      %v383 = vld [vmem:[%s253 + $0xbc] sm:$0xf]
      %v384 = vld [vmem:[%s253 + $0xc0] sm:$0xf]
      %v385 = vld [vmem:[%s253 + $0xc4] sm:$0xf]
      %v386 = vld [vmem:[%s253 + $0xc8] sm:$0xf]
      %v387 = vld [vmem:[%s253 + $0xcc] sm:$0xf]
      %v388 = vld [vmem:[%s253 + $0xd0] sm:$0xf]
      %v389 = vld [vmem:[%s253 + $0xd4] sm:$0xf]
      %v390 = vld [vmem:[%s253 + $0xd8] sm:$0xf]
      %v391 = vld [vmem:[%s253 + $0xdc] sm:$0xf]
      %v392 = vld [vmem:[%s253 + $0xe0] sm:$0xf]
      %v393 = vld [vmem:[%s253 + $0xe4] sm:$0xf]
      %v394 = vld [vmem:[%s253 + $0xe8] sm:$0xf]
      %v395 = vld [vmem:[%s253 + $0xec] sm:$0xf]
      %v396 = vld [vmem:[%s253 + $0xf0] sm:$0xf]
      %v397 = vld [vmem:[%s253 + $0xf4] sm:$0xf]
      %v398 = vld [vmem:[%s253 + $0xf8] sm:$0xf]
      %v399 = vld [vmem:[%s253 + $0xfc] sm:$0xf]
      %v432 = vunpack.c.l.b16 %v304
      %v433 = vunpack.c.h.b16 %v304
      %v434 = vunpack.c.l.b16 %v305
      %v435 = vunpack.c.h.b16 %v305
      %v436 = vunpack.c.l.b16 %v306
      %v437 = vunpack.c.h.b16 %v306
      %v438 = vunpack.c.l.b16 %v307
      %v439 = vunpack.c.h.b16 %v307
      %v440 = vunpack.c.l.b16 %v308
      %v441 = vunpack.c.h.b16 %v308
      %v442 = vunpack.c.l.b16 %v309
      %v443 = vunpack.c.h.b16 %v309
      %v444 = vunpack.c.l.b16 %v310
      %v445 = vunpack.c.h.b16 %v310
      %v446 = vunpack.c.l.b16 %v311
      %v447 = vunpack.c.h.b16 %v311
      %v448 = vunpack.c.l.b16 %v312
      %v449 = vunpack.c.h.b16 %v312
      %v450 = vunpack.c.l.b16 %v313
      %v451 = vunpack.c.h.b16 %v313
      %v452 = vunpack.c.l.b16 %v314
      %v453 = vunpack.c.h.b16 %v314
      %v454 = vunpack.c.l.b16 %v315
      %v455 = vunpack.c.h.b16 %v315
      %v456 = vunpack.c.l.b16 %v316
      %v457 = vunpack.c.h.b16 %v316
      %v458 = vunpack.c.l.b16 %v317
      %v459 = vunpack.c.h.b16 %v317
      %v460 = vunpack.c.l.b16 %v318
      %v461 = vunpack.c.h.b16 %v318
      %v462 = vunpack.c.l.b16 %v319
      %v463 = vunpack.c.h.b16 %v319
      %v464 = vunpack.c.l.b16 %v320
      %v465 = vunpack.c.h.b16 %v320
      %v466 = vunpack.c.l.b16 %v321
      %v467 = vunpack.c.h.b16 %v321
      %v468 = vunpack.c.l.b16 %v322
      %v469 = vunpack.c.h.b16 %v322
      %v470 = vunpack.c.l.b16 %v323
      %v471 = vunpack.c.h.b16 %v323
      %v472 = vunpack.c.l.b16 %v324
      %v473 = vunpack.c.h.b16 %v324
      %v474 = vunpack.c.l.b16 %v325
      %v475 = vunpack.c.h.b16 %v325
      %v476 = vunpack.c.l.b16 %v326
      %v477 = vunpack.c.h.b16 %v326
      %v478 = vunpack.c.l.b16 %v327
      %v479 = vunpack.c.h.b16 %v327
      %v480 = vunpack.c.l.b16 %v328
      %v481 = vunpack.c.h.b16 %v328
      %v482 = vunpack.c.l.b16 %v329
      %v483 = vunpack.c.h.b16 %v329
      %v484 = vunpack.c.l.b16 %v330
      %v485 = vunpack.c.h.b16 %v330
      %v486 = vunpack.c.l.b16 %v331
      %v487 = vunpack.c.h.b16 %v331
      %v488 = vunpack.c.l.b16 %v332
      %v489 = vunpack.c.h.b16 %v332
      %v490 = vunpack.c.l.b16 %v333
      %v491 = vunpack.c.h.b16 %v333
      %v492 = vunpack.c.l.b16 %v334
      %v493 = vunpack.c.h.b16 %v334
      %v494 = vunpack.c.l.b16 %v335
      %v495 = vunpack.c.h.b16 %v335
      %v496 = vpack.c.b16 %v436, %v432
      %v497 = vpack.c.b16 %v437, %v433
      %v498 = vpack.c.b16 %v438, %v434
      %v499 = vpack.c.b16 %v439, %v435
      %v500 = vpack.c.b16 %v444, %v440
      %v501 = vpack.c.b16 %v445, %v441
      %v502 = vpack.c.b16 %v446, %v442
      %v503 = vpack.c.b16 %v447, %v443
      %v504 = vpack.c.b16 %v452, %v448
      %v505 = vpack.c.b16 %v453, %v449
      %v506 = vpack.c.b16 %v454, %v450
      %v507 = vpack.c.b16 %v455, %v451
      %v508 = vpack.c.b16 %v460, %v456
      %v509 = vpack.c.b16 %v461, %v457
      %v510 = vpack.c.b16 %v462, %v458
      %v511 = vpack.c.b16 %v463, %v459
      %v512 = vpack.c.b16 %v468, %v464
      %v513 = vpack.c.b16 %v469, %v465
      %v514 = vpack.c.b16 %v470, %v466
      %v515 = vpack.c.b16 %v471, %v467
      %v516 = vpack.c.b16 %v476, %v472
      %v517 = vpack.c.b16 %v477, %v473
      %v518 = vpack.c.b16 %v478, %v474
      %v519 = vpack.c.b16 %v479, %v475
      %v520 = vpack.c.b16 %v484, %v480
      %v521 = vpack.c.b16 %v485, %v481
      %v522 = vpack.c.b16 %v486, %v482
      %v523 = vpack.c.b16 %v487, %v483
      %v524 = vpack.c.b16 %v492, %v488
      %v525 = vpack.c.b16 %v493, %v489
      %v526 = vpack.c.b16 %v494, %v490
      %v527 = vpack.c.b16 %v495, %v491
      %v624 = vunpack.c.l.b16 %v336
      %v625 = vunpack.c.l.b16 %v337
      %v626 = vunpack.c.l.b16 %v338
      %v627 = vunpack.c.l.b16 %v339
      %v628 = vunpack.c.l.b16 %v340
      %v629 = vunpack.c.l.b16 %v341
      %v630 = vunpack.c.l.b16 %v342
      %v631 = vunpack.c.l.b16 %v343
      %v632 = vunpack.c.l.b16 %v344
      %v633 = vunpack.c.l.b16 %v345
      %v634 = vunpack.c.l.b16 %v346
      %v635 = vunpack.c.l.b16 %v347
      %v636 = vunpack.c.l.b16 %v348
      %v637 = vunpack.c.l.b16 %v349
      %v638 = vunpack.c.l.b16 %v350
      %v639 = vunpack.c.l.b16 %v351
      %v640 = vunpack.c.l.b16 %v352
      %v641 = vunpack.c.l.b16 %v353
      %v642 = vunpack.c.l.b16 %v354
      %v643 = vunpack.c.l.b16 %v355
      %v644 = vunpack.c.l.b16 %v356
      %v645 = vunpack.c.l.b16 %v357
      %v646 = vunpack.c.l.b16 %v358
      %v647 = vunpack.c.l.b16 %v359
      %v648 = vunpack.c.l.b16 %v360
      %v649 = vunpack.c.l.b16 %v361
      %v650 = vunpack.c.l.b16 %v362
      %v651 = vunpack.c.l.b16 %v363
      %v652 = vunpack.c.l.b16 %v364
      %v653 = vunpack.c.l.b16 %v365
      %v654 = vunpack.c.l.b16 %v366
      %v655 = vunpack.c.l.b16 %v367
      %v656 = vunpack.c.l.b16 %v368
      %v657 = vunpack.c.l.b16 %v369
      %v658 = vunpack.c.l.b16 %v370
      %v659 = vunpack.c.l.b16 %v371
      %v660 = vunpack.c.l.b16 %v372
      %v661 = vunpack.c.l.b16 %v373
      %v662 = vunpack.c.l.b16 %v374
      %v663 = vunpack.c.l.b16 %v375
      %v664 = vunpack.c.l.b16 %v376
      %v665 = vunpack.c.l.b16 %v377
      %v666 = vunpack.c.l.b16 %v378
      %v667 = vunpack.c.l.b16 %v379
      %v668 = vunpack.c.l.b16 %v380
      %v669 = vunpack.c.l.b16 %v381
      %v670 = vunpack.c.l.b16 %v382
      %v671 = vunpack.c.l.b16 %v383
      %v672 = vunpack.c.l.b16 %v384
      %v673 = vunpack.c.l.b16 %v385
      %v674 = vunpack.c.l.b16 %v386
      %v675 = vunpack.c.l.b16 %v387
      %v676 = vunpack.c.l.b16 %v388
      %v677 = vunpack.c.l.b16 %v389
      %v678 = vunpack.c.l.b16 %v390
      %v679 = vunpack.c.l.b16 %v391
      %v680 = vunpack.c.l.b16 %v392
      %v681 = vunpack.c.l.b16 %v393
      %v682 = vunpack.c.l.b16 %v394
      %v683 = vunpack.c.l.b16 %v395
      %v684 = vunpack.c.l.b16 %v396
      %v685 = vunpack.c.l.b16 %v397
      %v686 = vunpack.c.l.b16 %v398
      %v687 = vunpack.c.l.b16 %v399
      %v688 = vpack.c.b16 %v625, %v624
      %v689 = vpack.c.b16 %v627, %v626
      %v690 = vpack.c.b16 %v629, %v628
      %v691 = vpack.c.b16 %v631, %v630
      %v692 = vpack.c.b16 %v633, %v632
      %v693 = vpack.c.b16 %v635, %v634
      %v694 = vpack.c.b16 %v637, %v636
      %v695 = vpack.c.b16 %v639, %v638
      %v696 = vpack.c.b16 %v641, %v640
      %v697 = vpack.c.b16 %v643, %v642
      %v698 = vpack.c.b16 %v645, %v644
      %v699 = vpack.c.b16 %v647, %v646
      %v700 = vpack.c.b16 %v649, %v648
      %v701 = vpack.c.b16 %v651, %v650
      %v702 = vpack.c.b16 %v653, %v652
      %v703 = vpack.c.b16 %v655, %v654
      %v704 = vpack.c.b16 %v657, %v656
      %v705 = vpack.c.b16 %v659, %v658
      %v706 = vpack.c.b16 %v661, %v660
      %v707 = vpack.c.b16 %v663, %v662
      %v708 = vpack.c.b16 %v665, %v664
      %v709 = vpack.c.b16 %v667, %v666
      %v710 = vpack.c.b16 %v669, %v668
      %v711 = vpack.c.b16 %v671, %v670
      %v712 = vpack.c.b16 %v673, %v672
      %v713 = vpack.c.b16 %v675, %v674
      %v714 = vpack.c.b16 %v677, %v676
      %v715 = vpack.c.b16 %v679, %v678
      %v716 = vpack.c.b16 %v681, %v680
      %v717 = vpack.c.b16 %v683, %v682
      %v718 = vpack.c.b16 %v685, %v684
      %v719 = vpack.c.b16 %v687, %v686
      %752 = vmatprep.subr.bf16.mxu0 0
      %753 = vmatpush1.bf16.msra.mxu0 %v688
      %754 = vmatprep.subr.bf16.mxu0 0
      %755 = vmatpush1.bf16.msra.mxu0 %v689
      %756 = vmatprep.subr.bf16.mxu0 0
      %757 = vmatpush1.bf16.msra.mxu0 %v690
      %758 = vmatprep.subr.bf16.mxu0 0
      %759 = vmatpush1.bf16.msra.mxu0 %v691
      %760 = vmatprep.subr.bf16.mxu0 0
      %761 = vmatpush1.bf16.msra.mxu0 %v692
      %762 = vmatprep.subr.bf16.mxu0 0
      %763 = vmatpush1.bf16.msra.mxu0 %v693
      %764 = vmatprep.subr.bf16.mxu0 0
      %765 = vmatpush1.bf16.msra.mxu0 %v694
      %766 = vmatprep.subr.bf16.mxu0 0
      %767 = vmatpush1.bf16.msra.mxu0 %v695
      %768 = vmatprep.subr.bf16.mxu0 0
      %769 = vmatpush1.bf16.msra.mxu0 %v696
      %770 = vmatprep.subr.bf16.mxu0 0
      %771 = vmatpush1.bf16.msra.mxu0 %v697
      %772 = vmatprep.subr.bf16.mxu0 0
      %773 = vmatpush1.bf16.msra.mxu0 %v698
      %774 = vmatprep.subr.bf16.mxu0 0
      %775 = vmatpush1.bf16.msra.mxu0 %v699
      %776 = vmatprep.subr.bf16.mxu0 0
      %777 = vmatpush1.bf16.msra.mxu0 %v700
      %778 = vmatprep.subr.bf16.mxu0 0
      %779 = vmatpush1.bf16.msra.mxu0 %v701
      %780 = vmatprep.subr.bf16.mxu0 0
      %781 = vmatpush1.bf16.msra.mxu0 %v702
      %782 = vmatprep.subr.bf16.mxu0 0
      %783 = vmatpush1.bf16.msra.mxu0 %v703
      %784 = vmatprep.mubr.bf16.mxu0 %v497
      %785 = vmatmul.mubr.bf16.gmra.mrb[0].mxu0 %v496
      %v786 = vpop.f32.mrb[0].mxu0
      %v787 = vadd.f32 0.0, %v786
      %v788 = vpop.f32.mrb[0].mxu0
      %v789 = vpop.f32.mrb[0].mxu0
      %v790 = vadd.f32 0.0, %v789
      %v791 = vpop.f32.mrb[0].mxu0
      %792 = vmatprep.mubr.bf16.mxu0 %v501
      %793 = vmatmul.mubr.bf16.gmra.mrb[0].mxu0 %v500
      %v794 = vpop.f32.mrb[0].mxu0
      %v795 = vadd.f32 0.0, %v794
      %v796 = vpop.f32.mrb[0].mxu0
      %v797 = vpop.f32.mrb[0].mxu0
      %v798 = vadd.f32 0.0, %v797
      %v799 = vpop.f32.mrb[0].mxu0
      %800 = vmatprep.mubr.bf16.mxu0 %v505
      %801 = vmatmul.mubr.bf16.gmra.mrb[0].mxu0 %v504
      %v802 = vpop.f32.mrb[0].mxu0
      %v803 = vadd.f32 0.0, %v802
      %v804 = vpop.f32.mrb[0].mxu0
      %v805 = vpop.f32.mrb[0].mxu0
      %v806 = vadd.f32 0.0, %v805
      %v807 = vpop.f32.mrb[0].mxu0
      %808 = vmatprep.mubr.bf16.mxu0 %v509
      %809 = vmatmul.mubr.bf16.gmra.mrb[0].mxu0 %v508
      %v810 = vpop.f32.mrb[0].mxu0
      %v811 = vadd.f32 0.0, %v810
      %v812 = vpop.f32.mrb[0].mxu0
      %v813 = vpop.f32.mrb[0].mxu0
      %v814 = vadd.f32 0.0, %v813
      %v815 = vpop.f32.mrb[0].mxu0
      %816 = vmatprep.mubr.bf16.mxu0 %v513
      %817 = vmatmul.mubr.bf16.gmra.mrb[0].mxu0 %v512
      %v818 = vpop.f32.mrb[0].mxu0
      %v819 = vadd.f32 0.0, %v818
      %v820 = vpop.f32.mrb[0].mxu0
      %v821 = vpop.f32.mrb[0].mxu0
      %v822 = vadd.f32 0.0, %v821
      %v823 = vpop.f32.mrb[0].mxu0
      %824 = vmatprep.mubr.bf16.mxu0 %v517
      %825 = vmatmul.mubr.bf16.gmra.mrb[0].mxu0 %v516
      %v826 = vpop.f32.mrb[0].mxu0
      %v827 = vadd.f32 0.0, %v826
      %v828 = vpop.f32.mrb[0].mxu0
      %v829 = vpop.f32.mrb[0].mxu0
      %v830 = vadd.f32 0.0, %v829
      %v831 = vpop.f32.mrb[0].mxu0
      %832 = vmatprep.mubr.bf16.mxu0 %v521
      %833 = vmatmul.mubr.bf16.gmra.mrb[0].mxu0 %v520
      %v834 = vpop.f32.mrb[0].mxu0
      %v835 = vadd.f32 0.0, %v834
      %v836 = vpop.f32.mrb[0].mxu0
      %v837 = vpop.f32.mrb[0].mxu0
      %v838 = vadd.f32 0.0, %v837
      %v839 = vpop.f32.mrb[0].mxu0
      %840 = vmatprep.mubr.bf16.mxu0 %v525
      %841 = vmatmul.mubr.bf16.gmra.mrb[0].mxu0 %v524
      %v842 = vpop.f32.mrb[0].mxu0
      %v843 = vadd.f32 0.0, %v842
      %v844 = vpop.f32.mrb[0].mxu0
      %v845 = vpop.f32.mrb[0].mxu0
      %v846 = vadd.f32 0.0, %v845
      %v847 = vpop.f32.mrb[0].mxu0
      %848 = vdwg.mxu0
      %849 = vmatprep.subr.bf16.mxu0 0
      %850 = vmatpush1.bf16.msra.mxu0 %v704
      %851 = vmatprep.subr.bf16.mxu0 0
      %852 = vmatpush1.bf16.msra.mxu0 %v705
      %853 = vmatprep.subr.bf16.mxu0 0
      %854 = vmatpush1.bf16.msra.mxu0 %v706
      %855 = vmatprep.subr.bf16.mxu0 0
      %856 = vmatpush1.bf16.msra.mxu0 %v707
      %857 = vmatprep.subr.bf16.mxu0 0
      %858 = vmatpush1.bf16.msra.mxu0 %v708
      %859 = vmatprep.subr.bf16.mxu0 0
      %860 = vmatpush1.bf16.msra.mxu0 %v709
      %861 = vmatprep.subr.bf16.mxu0 0
      %862 = vmatpush1.bf16.msra.mxu0 %v710
      %863 = vmatprep.subr.bf16.mxu0 0
      %864 = vmatpush1.bf16.msra.mxu0 %v711
      %865 = vmatprep.subr.bf16.mxu0 0
      %866 = vmatpush1.bf16.msra.mxu0 %v712
      %867 = vmatprep.subr.bf16.mxu0 0
      %868 = vmatpush1.bf16.msra.mxu0 %v713
      %869 = vmatprep.subr.bf16.mxu0 0
      %870 = vmatpush1.bf16.msra.mxu0 %v714
      %871 = vmatprep.subr.bf16.mxu0 0
      %872 = vmatpush1.bf16.msra.mxu0 %v715
      %873 = vmatprep.subr.bf16.mxu0 0
      %874 = vmatpush1.bf16.msra.mxu0 %v716
      %875 = vmatprep.subr.bf16.mxu0 0
      %876 = vmatpush1.bf16.msra.mxu0 %v717
      %877 = vmatprep.subr.bf16.mxu0 0
      %878 = vmatpush1.bf16.msra.mxu0 %v718
      %879 = vmatprep.subr.bf16.mxu0 0
      %880 = vmatpush1.bf16.msra.mxu0 %v719
      %881 = vmatprep.mubr.bf16.mxu0 %v499
      %882 = vmatmul.mubr.bf16.gmra.mrb[0].mxu0 %v498
      %v883 = vpop.f32.mrb[0].mxu0
      %v884 = vadd.f32 %v787, %v883
      %v885 = vpop.f32.mrb[0].mxu0
      %v886 = vpop.f32.mrb[0].mxu0
      %v887 = vadd.f32 %v790, %v886
      %v888 = vpop.f32.mrb[0].mxu0
      %889 = vmatprep.mubr.bf16.mxu0 %v503
      %890 = vmatmul.mubr.bf16.gmra.mrb[0].mxu0 %v502
      %v891 = vpop.f32.mrb[0].mxu0
      %v892 = vadd.f32 %v795, %v891
      %v893 = vpop.f32.mrb[0].mxu0
      %v894 = vpop.f32.mrb[0].mxu0
      %v895 = vadd.f32 %v798, %v894
      %v896 = vpop.f32.mrb[0].mxu0
      %897 = vmatprep.mubr.bf16.mxu0 %v507
      %898 = vmatmul.mubr.bf16.gmra.mrb[0].mxu0 %v506
      %v899 = vpop.f32.mrb[0].mxu0
      %v900 = vadd.f32 %v803, %v899
      %v901 = vpop.f32.mrb[0].mxu0
      %v902 = vpop.f32.mrb[0].mxu0
      %v903 = vadd.f32 %v806, %v902
      %v904 = vpop.f32.mrb[0].mxu0
      %905 = vmatprep.mubr.bf16.mxu0 %v511
      %906 = vmatmul.mubr.bf16.gmra.mrb[0].mxu0 %v510
      %v907 = vpop.f32.mrb[0].mxu0
      %v908 = vadd.f32 %v811, %v907
      %v909 = vpop.f32.mrb[0].mxu0
      %v910 = vpop.f32.mrb[0].mxu0
      %v911 = vadd.f32 %v814, %v910
      %v912 = vpop.f32.mrb[0].mxu0
      %913 = vmatprep.mubr.bf16.mxu0 %v515
      %914 = vmatmul.mubr.bf16.gmra.mrb[0].mxu0 %v514
      %v915 = vpop.f32.mrb[0].mxu0
      %v916 = vadd.f32 %v819, %v915
      %v917 = vpop.f32.mrb[0].mxu0
      %v918 = vpop.f32.mrb[0].mxu0
      %v919 = vadd.f32 %v822, %v918
      %v920 = vpop.f32.mrb[0].mxu0
      %921 = vmatprep.mubr.bf16.mxu0 %v519
      %922 = vmatmul.mubr.bf16.gmra.mrb[0].mxu0 %v518
      %v923 = vpop.f32.mrb[0].mxu0
      %v924 = vadd.f32 %v827, %v923
      %v925 = vpop.f32.mrb[0].mxu0
      %v926 = vpop.f32.mrb[0].mxu0
      %v927 = vadd.f32 %v830, %v926
      %v928 = vpop.f32.mrb[0].mxu0
      %929 = vmatprep.mubr.bf16.mxu0 %v523
      %930 = vmatmul.mubr.bf16.gmra.mrb[0].mxu0 %v522
      %v931 = vpop.f32.mrb[0].mxu0
      %v932 = vadd.f32 %v835, %v931
      %v933 = vpop.f32.mrb[0].mxu0
      %v934 = vpop.f32.mrb[0].mxu0
      %v935 = vadd.f32 %v838, %v934
      %v936 = vpop.f32.mrb[0].mxu0
      %937 = vmatprep.mubr.bf16.mxu0 %v527
      %938 = vmatmul.mubr.bf16.gmra.mrb[0].mxu0 %v526
      %v939 = vpop.f32.mrb[0].mxu0
      %v940 = vadd.f32 %v843, %v939
      %v941 = vpop.f32.mrb[0].mxu0
      %v942 = vpop.f32.mrb[0].mxu0
      %v943 = vadd.f32 %v846, %v942
      %v944 = vpop.f32.mrb[0].mxu0
      %945 = vdwg.mxu0
      %v946 = vadd.f32 %v288, %v884
      %v947 = vadd.f32 %v289, %v887
      %v948 = vadd.f32 %v290, %v892
      %v949 = vadd.f32 %v291, %v895
      %v950 = vadd.f32 %v292, %v900
      %v951 = vadd.f32 %v293, %v903
      %v952 = vadd.f32 %v294, %v908
      %v953 = vadd.f32 %v295, %v911
      %v954 = vadd.f32 %v296, %v916
      %v955 = vadd.f32 %v297, %v919
      %v956 = vadd.f32 %v298, %v924
      %v957 = vadd.f32 %v299, %v927
      %v958 = vadd.f32 %v300, %v932
      %v959 = vadd.f32 %v301, %v935
      %v960 = vadd.f32 %v302, %v940
      %v961 = vadd.f32 %v303, %v943
      %962 = vst [vmem:[#allocation2] sm:$0xff] %v946
      %963 = vst [vmem:[#allocation2 + $0x8] sm:$0xff] %v947
      %964 = vst [vmem:[#allocation2 + $0x10] sm:$0xff] %v948
      %965 = vst [vmem:[#allocation2 + $0x18] sm:$0xff] %v949
      %966 = vst [vmem:[#allocation2 + $0x20] sm:$0xff] %v950
      %967 = vst [vmem:[#allocation2 + $0x28] sm:$0xff] %v951
      %968 = vst [vmem:[#allocation2 + $0x30] sm:$0xff] %v952
      %969 = vst [vmem:[#allocation2 + $0x38] sm:$0xff] %v953
      %970 = vst [vmem:[#allocation2 + $0x40] sm:$0xff] %v954
      %971 = vst [vmem:[#allocation2 + $0x48] sm:$0xff] %v955
      %972 = vst [vmem:[#allocation2 + $0x50] sm:$0xff] %v956
      %973 = vst [vmem:[#allocation2 + $0x58] sm:$0xff] %v957
      %974 = vst [vmem:[#allocation2 + $0x60] sm:$0xff] %v958
      %975 = vst [vmem:[#allocation2 + $0x68] sm:$0xff] %v959
      %976 = vst [vmem:[#allocation2 + $0x70] sm:$0xff] %v960
      %977 = vst [vmem:[#allocation2 + $0x78] sm:$0xff] %v961
      // Predicated region
      $region37: #{dqn_forward.6} parent=31 // pred_check
        %p978 = pneg %p268
      $region38: #{dqn_forward.6} parent=31 // pred_check_branch
        %980 = sbr.rel (%p978) target = $region40
      $region39: #{dqn_forward.6} parent=31 // pred_region
        %v981 = vld [vmem:[#allocation2] sm:$0xff]
        %v982 = vld [vmem:[#allocation2 + $0x8] sm:$0xff]
        %v983 = vld [vmem:[#allocation2 + $0x10] sm:$0xff]
        %v984 = vld [vmem:[#allocation2 + $0x18] sm:$0xff]
        %v985 = vld [vmem:[#allocation2 + $0x20] sm:$0xff]
        %v986 = vld [vmem:[#allocation2 + $0x28] sm:$0xff]
        %v987 = vld [vmem:[#allocation2 + $0x30] sm:$0xff]
        %v988 = vld [vmem:[#allocation2 + $0x38] sm:$0xff]
        %v989 = vld [vmem:[#allocation2 + $0x40] sm:$0xff]
        %v990 = vld [vmem:[#allocation2 + $0x48] sm:$0xff]
        %v991 = vld [vmem:[#allocation2 + $0x50] sm:$0xff]
        %v992 = vld [vmem:[#allocation2 + $0x58] sm:$0xff]
        %v993 = vld [vmem:[#allocation2 + $0x60] sm:$0xff]
        %v994 = vld [vmem:[#allocation2 + $0x68] sm:$0xff]
        %v995 = vld [vmem:[#allocation2 + $0x70] sm:$0xff]
        %v996 = vld [vmem:[#allocation2 + $0x78] sm:$0xff]
        %v997 = vld [vmem:[%s257] sm:$0x1]
        %v999 = vlaneseq
        %v1000 = vshrl.u32 %v999, 7
        %v1001 = vsub.s32 0, %v1000
        %v1002 = vrot.slane %v997, %v1001
        %v1004 = vadd.f32 %v981, %v1002
        %v1005 = vadd.f32 %v982, %v1002
        %v1006 = vadd.f32 %v983, %v1002
        %v1007 = vadd.f32 %v984, %v1002
        %v1008 = vadd.f32 %v985, %v1002
        %v1009 = vadd.f32 %v986, %v1002
        %v1010 = vadd.f32 %v987, %v1002
        %v1011 = vadd.f32 %v988, %v1002
        %v1012 = vadd.f32 %v989, %v1002
        %v1013 = vadd.f32 %v990, %v1002
        %v1014 = vadd.f32 %v991, %v1002
        %v1015 = vadd.f32 %v992, %v1002
        %v1016 = vadd.f32 %v993, %v1002
        %v1017 = vadd.f32 %v994, %v1002
        %v1018 = vadd.f32 %v995, %v1002
        %v1019 = vadd.f32 %v996, %v1002
        %v1020 = vmax.f32 %v1004, 0.0
        %v1021 = vmax.f32 %v1005, 0.0
        %v1022 = vmax.f32 %v1006, 0.0
        %v1023 = vmax.f32 %v1007, 0.0
        %v1024 = vmax.f32 %v1008, 0.0
        %v1025 = vmax.f32 %v1009, 0.0
        %v1026 = vmax.f32 %v1010, 0.0
        %v1027 = vmax.f32 %v1011, 0.0
        %v1028 = vmax.f32 %v1012, 0.0
        %v1029 = vmax.f32 %v1013, 0.0
        %v1030 = vmax.f32 %v1014, 0.0
        %v1031 = vmax.f32 %v1015, 0.0
        %v1032 = vmax.f32 %v1016, 0.0
        %v1033 = vmax.f32 %v1017, 0.0
        %v1034 = vmax.f32 %v1018, 0.0
        %v1035 = vmax.f32 %v1019, 0.0
        %1036 = vst [vmem:[%s265] sm:$0xff] %v1020
        %1037 = vst [vmem:[%s265 + $0x8] sm:$0xff] %v1021
        %1038 = vst [vmem:[%s265 + $0x10] sm:$0xff] %v1022
        %1039 = vst [vmem:[%s265 + $0x18] sm:$0xff] %v1023
        %1040 = vst [vmem:[%s265 + $0x20] sm:$0xff] %v1024
        %1041 = vst [vmem:[%s265 + $0x28] sm:$0xff] %v1025
        %1042 = vst [vmem:[%s265 + $0x30] sm:$0xff] %v1026
        %1043 = vst [vmem:[%s265 + $0x38] sm:$0xff] %v1027
        %1044 = vst [vmem:[%s265 + $0x40] sm:$0xff] %v1028
        %1045 = vst [vmem:[%s265 + $0x48] sm:$0xff] %v1029
        %1046 = vst [vmem:[%s265 + $0x50] sm:$0xff] %v1030
        %1047 = vst [vmem:[%s265 + $0x58] sm:$0xff] %v1031
        %1048 = vst [vmem:[%s265 + $0x60] sm:$0xff] %v1032
        %1049 = vst [vmem:[%s265 + $0x68] sm:$0xff] %v1033
        %1050 = vst [vmem:[%s265 + $0x70] sm:$0xff] %v1034
        %1051 = vst [vmem:[%s265 + $0x78] sm:$0xff] %v1035
      $region40: #{dqn_forward.6} parent=31 // pred_fallthru
        _
      %s1052 = smul.u32 16, %s19
      %p1053 = scmp.lt.s32.totalorder %s1052, 31
      %s1054 = scalar_select %p1053, %s1052, 31
      %p1055 = scmp.lt.s32.totalorder %s20, 0
      %s1056 = scalar_select %p1055, %s20, 0
      %s1057 = sadd.s32 %s1056, %s1054
      %s1058 = smul.addr %s1057, 8
      %s1059 = scalar_lea.vmem %s3, %s1058
      // Predicated region
      $region41: #{dqn_forward.6} parent=31 // pred_check
        %p1060 = pneg %p135
      $region42: #{dqn_forward.6} parent=31 // pred_check_branch
        %1062 = sbr.rel (%p1060) target = $region44
      $region43: #{dqn_forward.6} parent=31 // pred_region
        %s1063 = smul.u32 16, %s19
      $region44: #{dqn_forward.6} parent=31 // pred_fallthru
        _
    $region32: #{dqn_forward.6} parent=5 // pred_fallthru
      _
    %p1064 = scmp.le.s32.totalorder 2, %s9
    // Predicated region
    $region45: #{dqn_forward.6} parent=5 // pred_check
      %p1065 = pneg %p1064
    $region46: #{dqn_forward.6} parent=5 // pred_check_branch
      %1067 = sbr.rel (%p1065) target = $region48
    $region47: #{dqn_forward.6} parent=5 // pred_region
      %s1068 = ssub.s32 %s9, 2
      // Predicated region
      $region49: #{dqn_forward.6} parent=47 // pred_check
        %p1069 = pneg %p141
      $region50: #{dqn_forward.6} parent=47 // pred_check_branch
        %1071 = sbr.rel (%p1069) target = $region52
      $region51: #{dqn_forward.6} parent=47 // pred_region
        %s1072 = smul.u32 16, %s22
        %p1073 = scmp.lt.s32.totalorder %s1072, 31
        %s1074 = scalar_select %p1073, %s1072, 31
        %p1075 = scmp.lt.s32.totalorder %s23, 0
        %s1076 = scalar_select %p1075, %s23, 0
        %s1077 = sadd.s32 %s1076, %s1074
        %s1078 = smul.addr %s1077, 8
        %s1079 = scalar_lea.vmem %s3, %s1078
      $region52: #{dqn_forward.6} parent=47 // pred_fallthru
        _
    $region48: #{dqn_forward.6} parent=5 // pred_fallthru
      _
  $region6: #{dqn_forward.6} parent=0 // loop_footer
    %s13 = sadd.s32 1, %s9
  $region7: #{dqn_forward.6} parent=0 // loop_footer_branch
    %8 = sbr.rel target = $region3
  $region8: #{dqn_forward.6} parent=0 // loop_exit
    _

// kernel: dqn_forward.7
$region0: #{dqn_forward.7}
  #allocation0 [shape = 'u32[]', space=smem, size = 0x4, offset = 0x4, fixed_abs, tag = 'smem constant byte address 0x4 - core index']
  #allocation1 [shape = 'u32[144,128]{1,0:T(1,128)}', space=vmem, size = 0x12000, scoped, tag = 'internal scratch']
  #allocation2 [shape = 'f32[104,128]{1,0:T(8,128)}', space=vmem, size = 0xd000, scoped, tag = 'scratch operand']
  %s0 = inlined_call_operand.vmem [shape: bf16[104,640], index: 0, kind: input, shape index: {}]
  %s1 = inlined_call_operand.vmem [shape: bf16[640,128], index: 1, kind: input, shape index: {}]
  %s2 = inlined_call_operand.vmem [shape: f32[1,128], index: 2, kind: input, shape index: {}]
  %s3 = inlined_call_operand.vmem [shape: f32[104,128], index: 3, kind: output, shape index: {}]
  %s4 = sld [smem:[#allocation0]]
  $region30: #{dqn_forward.7} parent=0
    _
  %s6 = ssub.s32 1, %s4
  %s7 = scalar_select 0, %s6, %s4
  // Predicated region
  $region2: #{dqn_forward.7} parent=0 // pred_check
    _
  $region3: #{dqn_forward.7} parent=0 // pred_check_branch
    %9 = sbr.rel (0) target = $region5
  $region4: #{dqn_forward.7} parent=0 // pred_region
    _
  $region5: #{dqn_forward.7} parent=0 // pred_fallthru
    _
  // Predicated region
  $region6: #{dqn_forward.7} parent=0 // pred_check
    _
  $region7: #{dqn_forward.7} parent=0 // pred_check_branch
    %11 = sbr.rel (0) target = $region9
  $region8: #{dqn_forward.7} parent=0 // pred_region
    _
  $region9: #{dqn_forward.7} parent=0 // pred_fallthru
    _
  // Predicated region
  $region10: #{dqn_forward.7} parent=0 // pred_check
    _
  $region11: #{dqn_forward.7} parent=0 // pred_check_branch
    %13 = sbr.rel (0) target = $region13
  $region12: #{dqn_forward.7} parent=0 // pred_region
    _
  $region13: #{dqn_forward.7} parent=0 // pred_fallthru
    _
  %p15 = scmp.eq.s32.totalorder 0, 0
  // Predicated region
  $region14: #{dqn_forward.7} parent=0 // pred_check
    %p16 = pneg %p15
  $region15: #{dqn_forward.7} parent=0 // pred_check_branch
    %18 = sbr.rel (%p16) target = $region17
  $region16: #{dqn_forward.7} parent=0 // pred_region
    %19 = vst [vmem:[#allocation2] sm:$0xff] 0.0
    %20 = vst [vmem:[#allocation2 + $0x8] sm:$0xff] 0.0
    %21 = vst [vmem:[#allocation2 + $0x10] sm:$0xff] 0.0
    %22 = vst [vmem:[#allocation2 + $0x18] sm:$0xff] 0.0
    %23 = vst [vmem:[#allocation2 + $0x20] sm:$0xff] 0.0
    %24 = vst [vmem:[#allocation2 + $0x28] sm:$0xff] 0.0
    %25 = vst [vmem:[#allocation2 + $0x30] sm:$0xff] 0.0
    %26 = vst [vmem:[#allocation2 + $0x38] sm:$0xff] 0.0
    %27 = vst [vmem:[#allocation2 + $0x40] sm:$0xff] 0.0
    %28 = vst [vmem:[#allocation2 + $0x48] sm:$0xff] 0.0
    %29 = vst [vmem:[#allocation2 + $0x50] sm:$0xff] 0.0
    %30 = vst [vmem:[#allocation2 + $0x58] sm:$0xff] 0.0
    %31 = vst [vmem:[#allocation2 + $0x60] sm:$0xff] 0.0
  $region17: #{dqn_forward.7} parent=0 // pred_fallthru
    _
  %v32 = vld [vmem:[#allocation2] sm:$0xff]
  %v33 = vld [vmem:[#allocation2 + $0x8] sm:$0xff]
  %v34 = vld [vmem:[#allocation2 + $0x10] sm:$0xff]
  %v35 = vld [vmem:[#allocation2 + $0x18] sm:$0xff]
  %v36 = vld [vmem:[#allocation2 + $0x20] sm:$0xff]
  %v37 = vld [vmem:[#allocation2 + $0x28] sm:$0xff]
  %v38 = vld [vmem:[#allocation2 + $0x30] sm:$0xff]
  %v39 = vld [vmem:[#allocation2 + $0x38] sm:$0xff]
  %v40 = vld [vmem:[#allocation2 + $0x40] sm:$0xff]
  %v41 = vld [vmem:[#allocation2 + $0x48] sm:$0xff]
  %v42 = vld [vmem:[#allocation2 + $0x50] sm:$0xff]
  %v43 = vld [vmem:[#allocation2 + $0x58] sm:$0xff]
  %v44 = vld [vmem:[#allocation2 + $0x60] sm:$0xff]
  %v45 = vld [vmem:[%s0] sm:$0xff]
  %v46 = vld [vmem:[%s0 + $0x8] sm:$0xff]
  %v47 = vld [vmem:[%s0 + $0x10] sm:$0xf]
  %v48 = vld [vmem:[%s0 + $0x14] sm:$0xff]
  %v49 = vld [vmem:[%s0 + $0x1c] sm:$0xff]
  %v50 = vld [vmem:[%s0 + $0x24] sm:$0xf]
  %v51 = vld [vmem:[%s0 + $0x28] sm:$0xff]
  %v52 = vld [vmem:[%s0 + $0x30] sm:$0xff]
  %v53 = vld [vmem:[%s0 + $0x38] sm:$0xf]
  %v54 = vld [vmem:[%s0 + $0x3c] sm:$0xff]
  %v55 = vld [vmem:[%s0 + $0x44] sm:$0xff]
  %v56 = vld [vmem:[%s0 + $0x4c] sm:$0xf]
  %v57 = vld [vmem:[%s0 + $0x50] sm:$0xff]
  %v58 = vld [vmem:[%s0 + $0x58] sm:$0xff]
  %v59 = vld [vmem:[%s0 + $0x60] sm:$0xf]
  %v60 = vld [vmem:[%s0 + $0x64] sm:$0xff]
  %v61 = vld [vmem:[%s0 + $0x6c] sm:$0xff]
  %v62 = vld [vmem:[%s0 + $0x74] sm:$0xf]
  %v63 = vld [vmem:[%s0 + $0x78] sm:$0xff]
  %v64 = vld [vmem:[%s0 + $0x80] sm:$0xff]
  %v65 = vld [vmem:[%s0 + $0x88] sm:$0xf]
  %v66 = vld [vmem:[%s0 + $0x8c] sm:$0xff]
  %v67 = vld [vmem:[%s0 + $0x94] sm:$0xff]
  %v68 = vld [vmem:[%s0 + $0x9c] sm:$0xf]
  %v69 = vld [vmem:[%s0 + $0xa0] sm:$0xff]
  %v70 = vld [vmem:[%s0 + $0xa8] sm:$0xff]
  %v71 = vld [vmem:[%s0 + $0xb0] sm:$0xf]
  %v72 = vld [vmem:[%s0 + $0xb4] sm:$0xff]
  %v73 = vld [vmem:[%s0 + $0xbc] sm:$0xff]
  %v74 = vld [vmem:[%s0 + $0xc4] sm:$0xf]
  %v75 = vld [vmem:[%s0 + $0xc8] sm:$0xff]
  %v76 = vld [vmem:[%s0 + $0xd0] sm:$0xff]
  %v77 = vld [vmem:[%s0 + $0xd8] sm:$0xf]
  %v78 = vld [vmem:[%s0 + $0xdc] sm:$0xff]
  %v79 = vld [vmem:[%s0 + $0xe4] sm:$0xff]
  %v80 = vld [vmem:[%s0 + $0xec] sm:$0xf]
  %v81 = vld [vmem:[%s0 + $0xf0] sm:$0xff]
  %v82 = vld [vmem:[%s0 + $0xf8] sm:$0xff]
  %v83 = vld [vmem:[%s0 + $0x100] sm:$0xf]
  %v84 = vld [vmem:[%s1] sm:$0xf]
  %v85 = vld [vmem:[%s1 + $0x4] sm:$0xf]
  %v86 = vld [vmem:[%s1 + $0x8] sm:$0xf]
  %v87 = vld [vmem:[%s1 + $0xc] sm:$0xf]
  %v88 = vld [vmem:[%s1 + $0x10] sm:$0xf]
  %v89 = vld [vmem:[%s1 + $0x14] sm:$0xf]
  %v90 = vld [vmem:[%s1 + $0x18] sm:$0xf]
  %v91 = vld [vmem:[%s1 + $0x1c] sm:$0xf]
  %v92 = vld [vmem:[%s1 + $0x20] sm:$0xf]
  %v93 = vld [vmem:[%s1 + $0x24] sm:$0xf]
  %v94 = vld [vmem:[%s1 + $0x28] sm:$0xf]
  %v95 = vld [vmem:[%s1 + $0x2c] sm:$0xf]
  %v96 = vld [vmem:[%s1 + $0x30] sm:$0xf]
  %v97 = vld [vmem:[%s1 + $0x34] sm:$0xf]
  %v98 = vld [vmem:[%s1 + $0x38] sm:$0xf]
  %v99 = vld [vmem:[%s1 + $0x3c] sm:$0xf]
  %v100 = vld [vmem:[%s1 + $0x40] sm:$0xf]
  %v101 = vld [vmem:[%s1 + $0x44] sm:$0xf]
  %v102 = vld [vmem:[%s1 + $0x48] sm:$0xf]
  %v103 = vld [vmem:[%s1 + $0x4c] sm:$0xf]
  %v104 = vld [vmem:[%s1 + $0x50] sm:$0xf]
  %v105 = vld [vmem:[%s1 + $0x54] sm:$0xf]
  %v106 = vld [vmem:[%s1 + $0x58] sm:$0xf]
  %v107 = vld [vmem:[%s1 + $0x5c] sm:$0xf]
  %v108 = vld [vmem:[%s1 + $0x60] sm:$0xf]
  %v109 = vld [vmem:[%s1 + $0x64] sm:$0xf]
  %v110 = vld [vmem:[%s1 + $0x68] sm:$0xf]
  %v111 = vld [vmem:[%s1 + $0x6c] sm:$0xf]
  %v112 = vld [vmem:[%s1 + $0x70] sm:$0xf]
  %v113 = vld [vmem:[%s1 + $0x74] sm:$0xf]
  %v114 = vld [vmem:[%s1 + $0x78] sm:$0xf]
  %v115 = vld [vmem:[%s1 + $0x7c] sm:$0xf]
  %v116 = vld [vmem:[%s1 + $0x80] sm:$0xf]
  %v117 = vld [vmem:[%s1 + $0x84] sm:$0xf]
  %v118 = vld [vmem:[%s1 + $0x88] sm:$0xf]
  %v119 = vld [vmem:[%s1 + $0x8c] sm:$0xf]
  %v120 = vld [vmem:[%s1 + $0x90] sm:$0xf]
  %v121 = vld [vmem:[%s1 + $0x94] sm:$0xf]
  %v122 = vld [vmem:[%s1 + $0x98] sm:$0xf]
  %v123 = vld [vmem:[%s1 + $0x9c] sm:$0xf]
  %v124 = vld [vmem:[%s1 + $0xa0] sm:$0xf]
  %v125 = vld [vmem:[%s1 + $0xa4] sm:$0xf]
  %v126 = vld [vmem:[%s1 + $0xa8] sm:$0xf]
  %v127 = vld [vmem:[%s1 + $0xac] sm:$0xf]
  %v128 = vld [vmem:[%s1 + $0xb0] sm:$0xf]
  %v129 = vld [vmem:[%s1 + $0xb4] sm:$0xf]
  %v130 = vld [vmem:[%s1 + $0xb8] sm:$0xf]
  %v131 = vld [vmem:[%s1 + $0xbc] sm:$0xf]
  %v132 = vld [vmem:[%s1 + $0xc0] sm:$0xf]
  %v133 = vld [vmem:[%s1 + $0xc4] sm:$0xf]
  %v134 = vld [vmem:[%s1 + $0xc8] sm:$0xf]
  %v135 = vld [vmem:[%s1 + $0xcc] sm:$0xf]
  %v136 = vld [vmem:[%s1 + $0xd0] sm:$0xf]
  %v137 = vld [vmem:[%s1 + $0xd4] sm:$0xf]
  %v138 = vld [vmem:[%s1 + $0xd8] sm:$0xf]
  %v139 = vld [vmem:[%s1 + $0xdc] sm:$0xf]
  %v140 = vld [vmem:[%s1 + $0xe0] sm:$0xf]
  %v141 = vld [vmem:[%s1 + $0xe4] sm:$0xf]
  %v142 = vld [vmem:[%s1 + $0xe8] sm:$0xf]
  %v143 = vld [vmem:[%s1 + $0xec] sm:$0xf]
  %v144 = vld [vmem:[%s1 + $0xf0] sm:$0xf]
  %v145 = vld [vmem:[%s1 + $0xf4] sm:$0xf]
  %v146 = vld [vmem:[%s1 + $0xf8] sm:$0xf]
  %v147 = vld [vmem:[%s1 + $0xfc] sm:$0xf]
  %v148 = vld [vmem:[%s1 + $0x100] sm:$0xf]
  %v149 = vld [vmem:[%s1 + $0x104] sm:$0xf]
  %v150 = vld [vmem:[%s1 + $0x108] sm:$0xf]
  %v151 = vld [vmem:[%s1 + $0x10c] sm:$0xf]
  %v152 = vld [vmem:[%s1 + $0x110] sm:$0xf]
  %v153 = vld [vmem:[%s1 + $0x114] sm:$0xf]
  %v154 = vld [vmem:[%s1 + $0x118] sm:$0xf]
  %v155 = vld [vmem:[%s1 + $0x11c] sm:$0xf]
  %v156 = vld [vmem:[%s1 + $0x120] sm:$0xf]
  %v157 = vld [vmem:[%s1 + $0x124] sm:$0xf]
  %v158 = vld [vmem:[%s1 + $0x128] sm:$0xf]
  %v159 = vld [vmem:[%s1 + $0x12c] sm:$0xf]
  %v160 = vld [vmem:[%s1 + $0x130] sm:$0xf]
  %v161 = vld [vmem:[%s1 + $0x134] sm:$0xf]
  %v162 = vld [vmem:[%s1 + $0x138] sm:$0xf]
  %v163 = vld [vmem:[%s1 + $0x13c] sm:$0xf]
  %v203 = vunpack.c.l.b16 %v45
  %v204 = vunpack.c.h.b16 %v45
  %v205 = vunpack.c.l.b16 %v46
  %v206 = vunpack.c.h.b16 %v46
  %v207 = vunpack.c.l.b16 %v47
  %v208 = vunpack.c.l.b16 %v48
  %v209 = vunpack.c.h.b16 %v48
  %v210 = vunpack.c.l.b16 %v49
  %v211 = vunpack.c.h.b16 %v49
  %v212 = vunpack.c.l.b16 %v50
  %v213 = vunpack.c.l.b16 %v51
  %v214 = vunpack.c.h.b16 %v51
  %v215 = vunpack.c.l.b16 %v52
  %v216 = vunpack.c.h.b16 %v52
  %v217 = vunpack.c.l.b16 %v53
  %v218 = vunpack.c.l.b16 %v54
  %v219 = vunpack.c.h.b16 %v54
  %v220 = vunpack.c.l.b16 %v55
  %v221 = vunpack.c.h.b16 %v55
  %v222 = vunpack.c.l.b16 %v56
  %v223 = vunpack.c.l.b16 %v57
  %v224 = vunpack.c.h.b16 %v57
  %v225 = vunpack.c.l.b16 %v58
  %v226 = vunpack.c.h.b16 %v58
  %v227 = vunpack.c.l.b16 %v59
  %v228 = vunpack.c.l.b16 %v60
  %v229 = vunpack.c.h.b16 %v60
  %v230 = vunpack.c.l.b16 %v61
  %v231 = vunpack.c.h.b16 %v61
  %v232 = vunpack.c.l.b16 %v62
  %v233 = vunpack.c.l.b16 %v63
  %v234 = vunpack.c.h.b16 %v63
  %v235 = vunpack.c.l.b16 %v64
  %v236 = vunpack.c.h.b16 %v64
  %v237 = vunpack.c.l.b16 %v65
  %v238 = vunpack.c.l.b16 %v66
  %v239 = vunpack.c.h.b16 %v66
  %v240 = vunpack.c.l.b16 %v67
  %v241 = vunpack.c.h.b16 %v67
  %v242 = vunpack.c.l.b16 %v68
  %v243 = vunpack.c.l.b16 %v69
  %v244 = vunpack.c.h.b16 %v69
  %v245 = vunpack.c.l.b16 %v70
  %v246 = vunpack.c.h.b16 %v70
  %v247 = vunpack.c.l.b16 %v71
  %v248 = vunpack.c.l.b16 %v72
  %v249 = vunpack.c.h.b16 %v72
  %v250 = vunpack.c.l.b16 %v73
  %v251 = vunpack.c.h.b16 %v73
  %v252 = vunpack.c.l.b16 %v74
  %v253 = vunpack.c.l.b16 %v75
  %v254 = vunpack.c.h.b16 %v75
  %v255 = vunpack.c.l.b16 %v76
  %v256 = vunpack.c.h.b16 %v76
  %v257 = vunpack.c.l.b16 %v77
  %v258 = vunpack.c.l.b16 %v78
  %v259 = vunpack.c.h.b16 %v78
  %v260 = vunpack.c.l.b16 %v79
  %v261 = vunpack.c.h.b16 %v79
  %v262 = vunpack.c.l.b16 %v80
  %v263 = vunpack.c.l.b16 %v81
  %v264 = vunpack.c.h.b16 %v81
  %v265 = vunpack.c.l.b16 %v82
  %v266 = vunpack.c.h.b16 %v82
  %v267 = vunpack.c.l.b16 %v83
  %v268 = vpack.c.b16 %v208, %v203
  %v269 = vpack.c.b16 %v209, %v204
  %v270 = vpack.c.b16 %v210, %v205
  %v271 = vpack.c.b16 %v211, %v206
  %v272 = vpack.c.b16 %v212, %v207
  %v273 = vpack.c.b16 %v218, %v213
  %v274 = vpack.c.b16 %v219, %v214
  %v275 = vpack.c.b16 %v220, %v215
  %v276 = vpack.c.b16 %v221, %v216
  %v277 = vpack.c.b16 %v222, %v217
  %v278 = vpack.c.b16 %v228, %v223
  %v279 = vpack.c.b16 %v229, %v224
  %v280 = vpack.c.b16 %v230, %v225
  %v281 = vpack.c.b16 %v231, %v226
  %v282 = vpack.c.b16 %v232, %v227
  %v283 = vpack.c.b16 %v238, %v233
  %v284 = vpack.c.b16 %v239, %v234
  %v285 = vpack.c.b16 %v240, %v235
  %v286 = vpack.c.b16 %v241, %v236
  %v287 = vpack.c.b16 %v242, %v237
  %v288 = vpack.c.b16 %v248, %v243
  %v289 = vpack.c.b16 %v249, %v244
  %v290 = vpack.c.b16 %v250, %v245
  %v291 = vpack.c.b16 %v251, %v246
  %v292 = vpack.c.b16 %v252, %v247
  %v293 = vpack.c.b16 %v258, %v253
  %v294 = vpack.c.b16 %v259, %v254
  %v295 = vpack.c.b16 %v260, %v255
  %v296 = vpack.c.b16 %v261, %v256
  %v297 = vpack.c.b16 %v262, %v257
  %v298 = vpack.c.b16 %v263, %v263
  %v299 = vpack.c.b16 %v264, %v264
  %v300 = vpack.c.b16 %v265, %v265
  %v301 = vpack.c.b16 %v266, %v266
  %v302 = vpack.c.b16 %v267, %v267
  %v418 = vunpack.c.l.b16 %v84
  %v419 = vunpack.c.l.b16 %v85
  %v420 = vunpack.c.l.b16 %v86
  %v421 = vunpack.c.l.b16 %v87
  %v422 = vunpack.c.l.b16 %v88
  %v423 = vunpack.c.l.b16 %v89
  %v424 = vunpack.c.l.b16 %v90
  %v425 = vunpack.c.l.b16 %v91
  %v426 = vunpack.c.l.b16 %v92
  %v427 = vunpack.c.l.b16 %v93
  %v428 = vunpack.c.l.b16 %v94
  %v429 = vunpack.c.l.b16 %v95
  %v430 = vunpack.c.l.b16 %v96
  %v431 = vunpack.c.l.b16 %v97
  %v432 = vunpack.c.l.b16 %v98
  %v433 = vunpack.c.l.b16 %v99
  %v434 = vunpack.c.l.b16 %v100
  %v435 = vunpack.c.l.b16 %v101
  %v436 = vunpack.c.l.b16 %v102
  %v437 = vunpack.c.l.b16 %v103
  %v438 = vunpack.c.l.b16 %v104
  %v439 = vunpack.c.l.b16 %v105
  %v440 = vunpack.c.l.b16 %v106
  %v441 = vunpack.c.l.b16 %v107
  %v442 = vunpack.c.l.b16 %v108
  %v443 = vunpack.c.l.b16 %v109
  %v444 = vunpack.c.l.b16 %v110
  %v445 = vunpack.c.l.b16 %v111
  %v446 = vunpack.c.l.b16 %v112
  %v447 = vunpack.c.l.b16 %v113
  %v448 = vunpack.c.l.b16 %v114
  %v449 = vunpack.c.l.b16 %v115
  %v450 = vunpack.c.l.b16 %v116
  %v451 = vunpack.c.l.b16 %v117
  %v452 = vunpack.c.l.b16 %v118
  %v453 = vunpack.c.l.b16 %v119
  %v454 = vunpack.c.l.b16 %v120
  %v455 = vunpack.c.l.b16 %v121
  %v456 = vunpack.c.l.b16 %v122
  %v457 = vunpack.c.l.b16 %v123
  %v458 = vunpack.c.l.b16 %v124
  %v459 = vunpack.c.l.b16 %v125
  %v460 = vunpack.c.l.b16 %v126
  %v461 = vunpack.c.l.b16 %v127
  %v462 = vunpack.c.l.b16 %v128
  %v463 = vunpack.c.l.b16 %v129
  %v464 = vunpack.c.l.b16 %v130
  %v465 = vunpack.c.l.b16 %v131
  %v466 = vunpack.c.l.b16 %v132
  %v467 = vunpack.c.l.b16 %v133
  %v468 = vunpack.c.l.b16 %v134
  %v469 = vunpack.c.l.b16 %v135
  %v470 = vunpack.c.l.b16 %v136
  %v471 = vunpack.c.l.b16 %v137
  %v472 = vunpack.c.l.b16 %v138
  %v473 = vunpack.c.l.b16 %v139
  %v474 = vunpack.c.l.b16 %v140
  %v475 = vunpack.c.l.b16 %v141
  %v476 = vunpack.c.l.b16 %v142
  %v477 = vunpack.c.l.b16 %v143
  %v478 = vunpack.c.l.b16 %v144
  %v479 = vunpack.c.l.b16 %v145
  %v480 = vunpack.c.l.b16 %v146
  %v481 = vunpack.c.l.b16 %v147
  %v482 = vunpack.c.l.b16 %v148
  %v483 = vunpack.c.l.b16 %v149
  %v484 = vunpack.c.l.b16 %v150
  %v485 = vunpack.c.l.b16 %v151
  %v486 = vunpack.c.l.b16 %v152
  %v487 = vunpack.c.l.b16 %v153
  %v488 = vunpack.c.l.b16 %v154
  %v489 = vunpack.c.l.b16 %v155
  %v490 = vunpack.c.l.b16 %v156
  %v491 = vunpack.c.l.b16 %v157
  %v492 = vunpack.c.l.b16 %v158
  %v493 = vunpack.c.l.b16 %v159
  %v494 = vunpack.c.l.b16 %v160
  %v495 = vunpack.c.l.b16 %v161
  %v496 = vunpack.c.l.b16 %v162
  %v497 = vunpack.c.l.b16 %v163
  %v498 = vpack.c.b16 %v419, %v418
  %v499 = vpack.c.b16 %v421, %v420
  %v500 = vpack.c.b16 %v423, %v422
  %v501 = vpack.c.b16 %v425, %v424
  %v502 = vpack.c.b16 %v427, %v426
  %v503 = vpack.c.b16 %v429, %v428
  %v504 = vpack.c.b16 %v431, %v430
  %v505 = vpack.c.b16 %v433, %v432
  %v506 = vpack.c.b16 %v435, %v434
  %v507 = vpack.c.b16 %v437, %v436
  %v508 = vpack.c.b16 %v439, %v438
  %v509 = vpack.c.b16 %v441, %v440
  %v510 = vpack.c.b16 %v443, %v442
  %v511 = vpack.c.b16 %v445, %v444
  %v512 = vpack.c.b16 %v447, %v446
  %v513 = vpack.c.b16 %v449, %v448
  %v514 = vpack.c.b16 %v451, %v450
  %v515 = vpack.c.b16 %v453, %v452
  %v516 = vpack.c.b16 %v455, %v454
  %v517 = vpack.c.b16 %v457, %v456
  %v518 = vpack.c.b16 %v459, %v458
  %v519 = vpack.c.b16 %v461, %v460
  %v520 = vpack.c.b16 %v463, %v462
  %v521 = vpack.c.b16 %v465, %v464
  %v522 = vpack.c.b16 %v467, %v466
  %v523 = vpack.c.b16 %v469, %v468
  %v524 = vpack.c.b16 %v471, %v470
  %v525 = vpack.c.b16 %v473, %v472
  %v526 = vpack.c.b16 %v475, %v474
  %v527 = vpack.c.b16 %v477, %v476
  %v528 = vpack.c.b16 %v479, %v478
  %v529 = vpack.c.b16 %v481, %v480
  %v530 = vpack.c.b16 %v483, %v482
  %v531 = vpack.c.b16 %v485, %v484
  %v532 = vpack.c.b16 %v487, %v486
  %v533 = vpack.c.b16 %v489, %v488
  %v534 = vpack.c.b16 %v491, %v490
  %v535 = vpack.c.b16 %v493, %v492
  %v536 = vpack.c.b16 %v495, %v494
  %v537 = vpack.c.b16 %v497, %v496
  %578 = vmatprep.subr.bf16.mxu0 0
  %579 = vmatpush1.bf16.msra.mxu0 %v498
  %580 = vmatprep.subr.bf16.mxu0 0
  %581 = vmatpush1.bf16.msra.mxu0 %v499
  %582 = vmatprep.subr.bf16.mxu0 0
  %583 = vmatpush1.bf16.msra.mxu0 %v500
  %584 = vmatprep.subr.bf16.mxu0 0
  %585 = vmatpush1.bf16.msra.mxu0 %v501
  %586 = vmatprep.subr.bf16.mxu0 0
  %587 = vmatpush1.bf16.msra.mxu0 %v502
  %588 = vmatprep.subr.bf16.mxu0 0
  %589 = vmatpush1.bf16.msra.mxu0 %v503
  %590 = vmatprep.subr.bf16.mxu0 0
  %591 = vmatpush1.bf16.msra.mxu0 %v504
  %592 = vmatprep.subr.bf16.mxu0 0
  %593 = vmatpush1.bf16.msra.mxu0 %v505
  %594 = vmatprep.subr.bf16.mxu0 0
  %595 = vmatpush1.bf16.msra.mxu0 %v506
  %596 = vmatprep.subr.bf16.mxu0 0
  %597 = vmatpush1.bf16.msra.mxu0 %v507
  %598 = vmatprep.subr.bf16.mxu0 0
  %599 = vmatpush1.bf16.msra.mxu0 %v508
  %600 = vmatprep.subr.bf16.mxu0 0
  %601 = vmatpush1.bf16.msra.mxu0 %v509
  %602 = vmatprep.subr.bf16.mxu0 0
  %603 = vmatpush1.bf16.msra.mxu0 %v510
  %604 = vmatprep.subr.bf16.mxu0 0
  %605 = vmatpush1.bf16.msra.mxu0 %v511
  %606 = vmatprep.subr.bf16.mxu0 0
  %607 = vmatpush1.bf16.msra.mxu0 %v512
  %608 = vmatprep.subr.bf16.mxu0 0
  %609 = vmatpush1.bf16.msra.mxu0 %v513
  %610 = vmatprep.mubr.bf16.mxu0 %v269
  %611 = vmatmul.mubr.bf16.gmra.mrb[0].mxu0 %v268
  %v612 = vpop.f32.mrb[0].mxu0
  %v613 = vadd.f32 0.0, %v612
  %v614 = vpop.f32.mrb[0].mxu0
  %v615 = vpop.f32.mrb[0].mxu0
  %v616 = vadd.f32 0.0, %v615
  %v617 = vpop.f32.mrb[0].mxu0
  %618 = vmatprep.mubr.bf16.mxu0 %v274
  %619 = vmatmul.mubr.bf16.gmra.mrb[0].mxu0 %v273
  %v620 = vpop.f32.mrb[0].mxu0
  %v621 = vadd.f32 0.0, %v620
  %v622 = vpop.f32.mrb[0].mxu0
  %v623 = vpop.f32.mrb[0].mxu0
  %v624 = vadd.f32 0.0, %v623
  %v625 = vpop.f32.mrb[0].mxu0
  %626 = vmatprep.mubr.bf16.mxu0 %v279
  %627 = vmatmul.mubr.bf16.gmra.mrb[0].mxu0 %v278
  %v628 = vpop.f32.mrb[0].mxu0
  %v629 = vadd.f32 0.0, %v628
  %v630 = vpop.f32.mrb[0].mxu0
  %v631 = vpop.f32.mrb[0].mxu0
  %v632 = vadd.f32 0.0, %v631
  %v633 = vpop.f32.mrb[0].mxu0
  %634 = vmatprep.mubr.bf16.mxu0 %v284
  %635 = vmatmul.mubr.bf16.gmra.mrb[0].mxu0 %v283
  %v636 = vpop.f32.mrb[0].mxu0
  %v637 = vadd.f32 0.0, %v636
  %v638 = vpop.f32.mrb[0].mxu0
  %v639 = vpop.f32.mrb[0].mxu0
  %v640 = vadd.f32 0.0, %v639
  %v641 = vpop.f32.mrb[0].mxu0
  %642 = vmatprep.mubr.bf16.mxu0 %v289
  %643 = vmatmul.mubr.bf16.gmra.mrb[0].mxu0 %v288
  %v644 = vpop.f32.mrb[0].mxu0
  %v645 = vadd.f32 0.0, %v644
  %v646 = vpop.f32.mrb[0].mxu0
  %v647 = vpop.f32.mrb[0].mxu0
  %v648 = vadd.f32 0.0, %v647
  %v649 = vpop.f32.mrb[0].mxu0
  %650 = vmatprep.mubr.bf16.mxu0 %v294
  %651 = vmatmul.mubr.bf16.gmra.mrb[0].mxu0 %v293
  %v652 = vpop.f32.mrb[0].mxu0
  %v653 = vadd.f32 0.0, %v652
  %v654 = vpop.f32.mrb[0].mxu0
  %v655 = vpop.f32.mrb[0].mxu0
  %v656 = vadd.f32 0.0, %v655
  %v657 = vpop.f32.mrb[0].mxu0
  %658 = vmatprep.mubr.bf16.mxu0 %v299
  %659 = vmatmul.mubr.bf16.gmra.mrb[0].mxu0 %v298
  %v660 = vpop.f32.mrb[0].mxu0
  %v661 = vadd.f32 0.0, %v660
  %v662 = vpop.f32.mrb[0].mxu0
  %v663 = vpop.f32.mrb[0].mxu0
  %v664 = vpop.f32.mrb[0].mxu0
  %665 = vdwg.mxu0
  %666 = vmatprep.subr.bf16.mxu0 0
  %667 = vmatpush1.bf16.msra.mxu0 %v514
  %668 = vmatprep.subr.bf16.mxu0 0
  %669 = vmatpush1.bf16.msra.mxu0 %v515
  %670 = vmatprep.subr.bf16.mxu0 0
  %671 = vmatpush1.bf16.msra.mxu0 %v516
  %672 = vmatprep.subr.bf16.mxu0 0
  %673 = vmatpush1.bf16.msra.mxu0 %v517
  %674 = vmatprep.subr.bf16.mxu0 0
  %675 = vmatpush1.bf16.msra.mxu0 %v518
  %676 = vmatprep.subr.bf16.mxu0 0
  %677 = vmatpush1.bf16.msra.mxu0 %v519
  %678 = vmatprep.subr.bf16.mxu0 0
  %679 = vmatpush1.bf16.msra.mxu0 %v520
  %680 = vmatprep.subr.bf16.mxu0 0
  %681 = vmatpush1.bf16.msra.mxu0 %v521
  %682 = vmatprep.subr.bf16.mxu0 0
  %683 = vmatpush1.bf16.msra.mxu0 %v522
  %684 = vmatprep.subr.bf16.mxu0 0
  %685 = vmatpush1.bf16.msra.mxu0 %v523
  %686 = vmatprep.subr.bf16.mxu0 0
  %687 = vmatpush1.bf16.msra.mxu0 %v524
  %688 = vmatprep.subr.bf16.mxu0 0
  %689 = vmatpush1.bf16.msra.mxu0 %v525
  %690 = vmatprep.subr.bf16.mxu0 0
  %691 = vmatpush1.bf16.msra.mxu0 %v526
  %692 = vmatprep.subr.bf16.mxu0 0
  %693 = vmatpush1.bf16.msra.mxu0 %v527
  %694 = vmatprep.subr.bf16.mxu0 0
  %695 = vmatpush1.bf16.msra.mxu0 %v528
  %696 = vmatprep.subr.bf16.mxu0 0
  %697 = vmatpush1.bf16.msra.mxu0 %v529
  %698 = vmatprep.mubr.bf16.mxu0 %v271
  %699 = vmatmul.mubr.bf16.gmra.mrb[0].mxu0 %v270
  %v700 = vpop.f32.mrb[0].mxu0
  %v701 = vadd.f32 %v613, %v700
  %v702 = vpop.f32.mrb[0].mxu0
  %v703 = vpop.f32.mrb[0].mxu0
  %v704 = vadd.f32 %v616, %v703
  %v705 = vpop.f32.mrb[0].mxu0
  %706 = vmatprep.mubr.bf16.mxu0 %v276
  %707 = vmatmul.mubr.bf16.gmra.mrb[0].mxu0 %v275
  %v708 = vpop.f32.mrb[0].mxu0
  %v709 = vadd.f32 %v621, %v708
  %v710 = vpop.f32.mrb[0].mxu0
  %v711 = vpop.f32.mrb[0].mxu0
  %v712 = vadd.f32 %v624, %v711
  %v713 = vpop.f32.mrb[0].mxu0
  %714 = vmatprep.mubr.bf16.mxu0 %v281
  %715 = vmatmul.mubr.bf16.gmra.mrb[0].mxu0 %v280
  %v716 = vpop.f32.mrb[0].mxu0
  %v717 = vadd.f32 %v629, %v716
  %v718 = vpop.f32.mrb[0].mxu0
  %v719 = vpop.f32.mrb[0].mxu0
  %v720 = vadd.f32 %v632, %v719
  %v721 = vpop.f32.mrb[0].mxu0
  %722 = vmatprep.mubr.bf16.mxu0 %v286
  %723 = vmatmul.mubr.bf16.gmra.mrb[0].mxu0 %v285
  %v724 = vpop.f32.mrb[0].mxu0
  %v725 = vadd.f32 %v637, %v724
  %v726 = vpop.f32.mrb[0].mxu0
  %v727 = vpop.f32.mrb[0].mxu0
  %v728 = vadd.f32 %v640, %v727
  %v729 = vpop.f32.mrb[0].mxu0
  %730 = vmatprep.mubr.bf16.mxu0 %v291
  %731 = vmatmul.mubr.bf16.gmra.mrb[0].mxu0 %v290
  %v732 = vpop.f32.mrb[0].mxu0
  %v733 = vadd.f32 %v645, %v732
  %v734 = vpop.f32.mrb[0].mxu0
  %v735 = vpop.f32.mrb[0].mxu0
  %v736 = vadd.f32 %v648, %v735
  %v737 = vpop.f32.mrb[0].mxu0
  %738 = vmatprep.mubr.bf16.mxu0 %v296
  %739 = vmatmul.mubr.bf16.gmra.mrb[0].mxu0 %v295
  %v740 = vpop.f32.mrb[0].mxu0
  %v741 = vadd.f32 %v653, %v740
  %v742 = vpop.f32.mrb[0].mxu0
  %v743 = vpop.f32.mrb[0].mxu0
  %v744 = vadd.f32 %v656, %v743
  %v745 = vpop.f32.mrb[0].mxu0
  %746 = vmatprep.mubr.bf16.mxu0 %v301
  %747 = vmatmul.mubr.bf16.gmra.mrb[0].mxu0 %v300
  %v748 = vpop.f32.mrb[0].mxu0
  %v749 = vadd.f32 %v661, %v748
  %v750 = vpop.f32.mrb[0].mxu0
  %v751 = vpop.f32.mrb[0].mxu0
  %v752 = vpop.f32.mrb[0].mxu0
  %753 = vdwg.mxu0
  %754 = vmatprep.subr.bf16.mxu0 0
  %755 = vmatpush1.bf16.msra.mxu0 %v530
  %756 = vmatprep.subr.bf16.mxu0 0
  %757 = vmatpush1.bf16.msra.mxu0 %v531
  %758 = vmatprep.subr.bf16.mxu0 0
  %759 = vmatpush1.bf16.msra.mxu0 %v532
  %760 = vmatprep.subr.bf16.mxu0 0
  %761 = vmatpush1.bf16.msra.mxu0 %v533
  %762 = vmatprep.subr.bf16.mxu0 0
  %763 = vmatpush1.bf16.msra.mxu0 %v534
  %764 = vmatprep.subr.bf16.mxu0 0
  %765 = vmatpush1.bf16.msra.mxu0 %v535
  %766 = vmatprep.subr.bf16.mxu0 0
  %767 = vmatpush1.bf16.msra.mxu0 %v536
  %768 = vmatprep.subr.bf16.mxu0 0
  %769 = vmatpush1.bf16.msra.mxu0 %v537
  %770 = vmatprep.subr.bf16.mxu0 0
  %771 = vmatpush1.bf16.msra.mxu0 0
  %772 = vmatprep.subr.bf16.mxu0 0
  %773 = vmatpush1.bf16.msra.mxu0 0
  %774 = vmatprep.subr.bf16.mxu0 0
  %775 = vmatpush1.bf16.msra.mxu0 0
  %776 = vmatprep.subr.bf16.mxu0 0
  %777 = vmatpush1.bf16.msra.mxu0 0
  %778 = vmatprep.subr.bf16.mxu0 0
  %779 = vmatpush1.bf16.msra.mxu0 0
  %780 = vmatprep.subr.bf16.mxu0 0
  %781 = vmatpush1.bf16.msra.mxu0 0
  %782 = vmatprep.subr.bf16.mxu0 0
  %783 = vmatpush1.bf16.msra.mxu0 0
  %784 = vmatprep.subr.bf16.mxu0 0
  %785 = vmatpush1.bf16.msra.mxu0 0
  %786 = vmatprep.mubr.bf16.mxu0 0
  %787 = vmatmul.mubr.bf16.gmra.mrb[0].mxu0 %v272
  %v788 = vpop.f32.mrb[0].mxu0
  %v789 = vadd.f32 %v701, %v788
  %v790 = vpop.f32.mrb[0].mxu0
  %v791 = vpop.f32.mrb[0].mxu0
  %v792 = vadd.f32 %v704, %v791
  %v793 = vpop.f32.mrb[0].mxu0
  %794 = vmatprep.mubr.bf16.mxu0 0
  %795 = vmatmul.mubr.bf16.gmra.mrb[0].mxu0 %v277
  %v796 = vpop.f32.mrb[0].mxu0
  %v797 = vadd.f32 %v709, %v796
  %v798 = vpop.f32.mrb[0].mxu0
  %v799 = vpop.f32.mrb[0].mxu0
  %v800 = vadd.f32 %v712, %v799
  %v801 = vpop.f32.mrb[0].mxu0
  %802 = vmatprep.mubr.bf16.mxu0 0
  %803 = vmatmul.mubr.bf16.gmra.mrb[0].mxu0 %v282
  %v804 = vpop.f32.mrb[0].mxu0
  %v805 = vadd.f32 %v717, %v804
  %v806 = vpop.f32.mrb[0].mxu0
  %v807 = vpop.f32.mrb[0].mxu0
  %v808 = vadd.f32 %v720, %v807
  %v809 = vpop.f32.mrb[0].mxu0
  %810 = vmatprep.mubr.bf16.mxu0 0
  %811 = vmatmul.mubr.bf16.gmra.mrb[0].mxu0 %v287
  %v812 = vpop.f32.mrb[0].mxu0
  %v813 = vadd.f32 %v725, %v812
  %v814 = vpop.f32.mrb[0].mxu0
  %v815 = vpop.f32.mrb[0].mxu0
  %v816 = vadd.f32 %v728, %v815
  %v817 = vpop.f32.mrb[0].mxu0
  %818 = vmatprep.mubr.bf16.mxu0 0
  %819 = vmatmul.mubr.bf16.gmra.mrb[0].mxu0 %v292
  %v820 = vpop.f32.mrb[0].mxu0
  %v821 = vadd.f32 %v733, %v820
  %v822 = vpop.f32.mrb[0].mxu0
  %v823 = vpop.f32.mrb[0].mxu0
  %v824 = vadd.f32 %v736, %v823
  %v825 = vpop.f32.mrb[0].mxu0
  %826 = vmatprep.mubr.bf16.mxu0 0
  %827 = vmatmul.mubr.bf16.gmra.mrb[0].mxu0 %v297
  %v828 = vpop.f32.mrb[0].mxu0
  %v829 = vadd.f32 %v741, %v828
  %v830 = vpop.f32.mrb[0].mxu0
  %v831 = vpop.f32.mrb[0].mxu0
  %v832 = vadd.f32 %v744, %v831
  %v833 = vpop.f32.mrb[0].mxu0
  %834 = vmatprep.mubr.bf16.mxu0 0
  %835 = vmatmul.mubr.bf16.gmra.mrb[0].mxu0 %v302
  %v836 = vpop.f32.mrb[0].mxu0
  %v837 = vadd.f32 %v749, %v836
  %v838 = vpop.f32.mrb[0].mxu0
  %v839 = vpop.f32.mrb[0].mxu0
  %v840 = vpop.f32.mrb[0].mxu0
  %841 = vdwg.mxu0
  %v842 = vadd.f32 %v32, %v789
  %v843 = vadd.f32 %v33, %v792
  %v844 = vadd.f32 %v34, %v797
  %v845 = vadd.f32 %v35, %v800
  %v846 = vadd.f32 %v36, %v805
  %v847 = vadd.f32 %v37, %v808
  %v848 = vadd.f32 %v38, %v813
  %v849 = vadd.f32 %v39, %v816
  %v850 = vadd.f32 %v40, %v821
  %v851 = vadd.f32 %v41, %v824
  %v852 = vadd.f32 %v42, %v829
  %v853 = vadd.f32 %v43, %v832
  %v854 = vadd.f32 %v44, %v837
  %855 = vst [vmem:[#allocation2] sm:$0xff] %v842
  %856 = vst [vmem:[#allocation2 + $0x8] sm:$0xff] %v843
  %857 = vst [vmem:[#allocation2 + $0x10] sm:$0xff] %v844
  %858 = vst [vmem:[#allocation2 + $0x18] sm:$0xff] %v845
  %859 = vst [vmem:[#allocation2 + $0x20] sm:$0xff] %v846
  %860 = vst [vmem:[#allocation2 + $0x28] sm:$0xff] %v847
  %861 = vst [vmem:[#allocation2 + $0x30] sm:$0xff] %v848
  %862 = vst [vmem:[#allocation2 + $0x38] sm:$0xff] %v849
  %863 = vst [vmem:[#allocation2 + $0x40] sm:$0xff] %v850
  %864 = vst [vmem:[#allocation2 + $0x48] sm:$0xff] %v851
  %865 = vst [vmem:[#allocation2 + $0x50] sm:$0xff] %v852
  %866 = vst [vmem:[#allocation2 + $0x58] sm:$0xff] %v853
  %867 = vst [vmem:[#allocation2 + $0x60] sm:$0xff] %v854
  // Predicated region
  $region18: #{dqn_forward.7} parent=0 // pred_check
    %p868 = pneg %p15
  $region19: #{dqn_forward.7} parent=0 // pred_check_branch
    %870 = sbr.rel (%p868) target = $region21
  $region20: #{dqn_forward.7} parent=0 // pred_region
    %v871 = vld [vmem:[#allocation2] sm:$0xff]
    %v872 = vld [vmem:[#allocation2 + $0x8] sm:$0xff]
    %v873 = vld [vmem:[#allocation2 + $0x10] sm:$0xff]
    %v874 = vld [vmem:[#allocation2 + $0x18] sm:$0xff]
    %v875 = vld [vmem:[#allocation2 + $0x20] sm:$0xff]
    %v876 = vld [vmem:[#allocation2 + $0x28] sm:$0xff]
    %v877 = vld [vmem:[#allocation2 + $0x30] sm:$0xff]
    %v878 = vld [vmem:[#allocation2 + $0x38] sm:$0xff]
    %v879 = vld [vmem:[#allocation2 + $0x40] sm:$0xff]
    %v880 = vld [vmem:[#allocation2 + $0x48] sm:$0xff]
    %v881 = vld [vmem:[#allocation2 + $0x50] sm:$0xff]
    %v882 = vld [vmem:[#allocation2 + $0x58] sm:$0xff]
    %v883 = vld [vmem:[#allocation2 + $0x60] sm:$0xff]
    %v884 = vld [vmem:[%s2] sm:$0x1]
    %v886 = vlaneseq
    %v887 = vshrl.u32 %v886, 7
    %v888 = vsub.s32 0, %v887
    %v889 = vrot.slane %v884, %v888
    %v891 = vadd.f32 %v871, %v889
    %v892 = vadd.f32 %v872, %v889
    %v893 = vadd.f32 %v873, %v889
    %v894 = vadd.f32 %v874, %v889
    %v895 = vadd.f32 %v875, %v889
    %v896 = vadd.f32 %v876, %v889
    %v897 = vadd.f32 %v877, %v889
    %v898 = vadd.f32 %v878, %v889
    %v899 = vadd.f32 %v879, %v889
    %v900 = vadd.f32 %v880, %v889
    %v901 = vadd.f32 %v881, %v889
    %v902 = vadd.f32 %v882, %v889
    %v903 = vadd.f32 %v883, %v889
    %v904 = vmax.f32 %v891, 0.0
    %v905 = vmax.f32 %v892, 0.0
    %v906 = vmax.f32 %v893, 0.0
    %v907 = vmax.f32 %v894, 0.0
    %v908 = vmax.f32 %v895, 0.0
    %v909 = vmax.f32 %v896, 0.0
    %v910 = vmax.f32 %v897, 0.0
    %v911 = vmax.f32 %v898, 0.0
    %v912 = vmax.f32 %v899, 0.0
    %v913 = vmax.f32 %v900, 0.0
    %v914 = vmax.f32 %v901, 0.0
    %v915 = vmax.f32 %v902, 0.0
    %v916 = vmax.f32 %v903, 0.0
    %917 = vst [vmem:[%s3] sm:$0xff] %v904
    %918 = vst [vmem:[%s3 + $0x8] sm:$0xff] %v905
    %919 = vst [vmem:[%s3 + $0x10] sm:$0xff] %v906
    %920 = vst [vmem:[%s3 + $0x18] sm:$0xff] %v907
    %921 = vst [vmem:[%s3 + $0x20] sm:$0xff] %v908
    %922 = vst [vmem:[%s3 + $0x28] sm:$0xff] %v909
    %923 = vst [vmem:[%s3 + $0x30] sm:$0xff] %v910
    %924 = vst [vmem:[%s3 + $0x38] sm:$0xff] %v911
    %925 = vst [vmem:[%s3 + $0x40] sm:$0xff] %v912
    %926 = vst [vmem:[%s3 + $0x48] sm:$0xff] %v913
    %927 = vst [vmem:[%s3 + $0x50] sm:$0xff] %v914
    %928 = vst [vmem:[%s3 + $0x58] sm:$0xff] %v915
    %929 = vst [vmem:[%s3 + $0x60] sm:$0xff] %v916
  $region21: #{dqn_forward.7} parent=0 // pred_fallthru
    _
  // Predicated region
  $region22: #{dqn_forward.7} parent=0 // pred_check
    _
  $region23: #{dqn_forward.7} parent=0 // pred_check_branch
    %931 = sbr.rel (0) target = $region25
  $region24: #{dqn_forward.7} parent=0 // pred_region
    _
  $region25: #{dqn_forward.7} parent=0 // pred_fallthru
    _
  // Predicated region
  $region26: #{dqn_forward.7} parent=0 // pred_check
    _
  $region27: #{dqn_forward.7} parent=0 // pred_check_branch
    %933 = sbr.rel (0) target = $region29
  $region28: #{dqn_forward.7} parent=0 // pred_region
    _
  $region29: #{dqn_forward.7} parent=0 // pred_fallthru
    _

// kernel: dqn_forward.8
$region0: #{dqn_forward.8}
  #allocation0 [shape = 'u32[]', space=smem, size = 0x4, offset = 0x4, fixed_abs, tag = 'smem constant byte address 0x4 - core index']
  #allocation1 [shape = 'u32[144,128]{1,0:T(1,128)}', space=vmem, size = 0x12000, scoped, tag = 'internal scratch']
  #allocation2 [shape = 'f32[8,512]{1,0:T(8,128)}', space=vmem, size = 0x4000, scoped, tag = 'scratch operand']
  %s0 = inlined_call_operand.vmem [shape: bf16[8,3584], index: 0, kind: input, shape index: {}]
  %s1 = inlined_call_operand.vmem [shape: bf16[3584,512], index: 1, kind: input, shape index: {}]
  %s2 = inlined_call_operand.vmem [shape: f32[1,512], index: 2, kind: input, shape index: {}]
  %s3 = inlined_call_operand.vmem [shape: f32[8,512], index: 3, kind: output, shape index: {}]
  %s4 = sld [smem:[#allocation0]]
  $region53: #{dqn_forward.8} parent=0
    _
  %s6 = ssub.s32 1, %s4
  %s7 = scalar_select 0, %s6, %s4
  loop: start=0, step=1, limit=9
  $region2: #{dqn_forward.8} parent=0 // loop_pre_header
    _
  $region3: #{dqn_forward.8} parent=0 // loop_header
    %s9 = sphi 0, %s13
    %p10 = scmp.ge.s32.totalorder %s9, 9
    %s16 = sphi 0, %s35
    %s17 = sphi 0, %s31
    %s18 = sphi 0, %s27
    %s19 = sphi 0, %s16
    %s20 = sphi 0, %s17
    %s21 = sphi 0, %s18
    %s22 = sphi 0, %s19
    %s23 = sphi 0, %s20
    %s24 = sphi 0, %s21
    %s40 = sphi 0, %s42
    %s43 = sphi 0, %s40
    %s44 = sphi 0, %s43
    %s60 = sphi 0, %s44
    %s68 = sphi 0, %s70
    %s71 = sphi 0, %s68
    %s72 = sphi 0, %s71
    %s88 = sphi 0, %s72
    %s94 = sphi 0, %s96
    %s97 = sphi 0, %s94
    %s98 = sphi 0, %s97
    %s114 = sphi 0, %s98
    %s122 = sphi 0, %s124
    %s125 = sphi 0, %s122
    %s126 = sphi 0, %s125
    %s142 = sphi 0, %s126
  $region4: #{dqn_forward.8} parent=0 // loop_header_branch
    %12 = sbr.rel (%p10) target = $region8
  $region5: #{dqn_forward.8} parent=0 // loop_body
    %s14 = ssub.s32 %s9, 1
    %s15 = ssub.s32 %s9, 2
    %s25 = sadd.s32 1, %s18
    %p26 = scmp.ge.s32.totalorder %s25, 7
    %s27 = scalar_select %p26, 0, %s25
    %s28 = sadd.s32 1, %s17
    %s29 = scalar_select %p26, %s28, %s17
    %p30 = scmp.ge.s32.totalorder %s29, 1
    %s31 = scalar_select %p30, 0, %s29
    %s32 = sadd.s32 1, %s16
    %s33 = scalar_select %p30, %s32, %s16
    %p34 = scmp.ge.s32.totalorder %s33, 1
    %s35 = scalar_select %p34, 0, %s33
    %s36 = ssub.s32 %s16, %s35
    %s37 = ssub.s32 %s18, %s27
    %s38 = sor.u32 %s36, %s37
    %p39 = scmp.eq.s32.totalorder %s38, 0
    %s41 = sadd.s32 %s40, 1
    %s42 = scalar_select %p39, %s40, %s41
    %p45 = pneg %p39
    %p46 = scmp.eq.s32.totalorder %s9, 6
    %p47 = por %p45, %p46
    %p48 = scmp.ne.s32.totalorder %s40, %s43
    %p49 = scmp.eq.s32.totalorder %s9, 0
    %p50 = por %p48, %p49
    %p51 = scmp.ne.s32.totalorder %s40, %s43
    %p52 = scmp.eq.s32.totalorder %s14, 6
    %p53 = por %p51, %p52
    %p54 = scmp.ne.s32.totalorder %s43, %s44
    %p55 = scmp.eq.s32.totalorder %s14, 0
    %p56 = por %p54, %p55
    %p57 = scmp.ne.s32.totalorder %s43, %s44
    %p58 = scmp.eq.s32.totalorder %s15, 6
    %p59 = por %p57, %p58
    %p61 = scmp.ne.s32.totalorder %s44, %s60
    %p62 = scmp.eq.s32.totalorder %s15, 0
    %p63 = por %p61, %p62
    %s64 = ssub.s32 %s18, %s27
    %s65 = ssub.s32 %s17, %s31
    %s66 = sor.u32 %s64, %s65
    %p67 = scmp.eq.s32.totalorder %s66, 0
    %s69 = sadd.s32 %s68, 1
    %s70 = scalar_select %p67, %s68, %s69
    %p73 = pneg %p67
    %p74 = scmp.eq.s32.totalorder %s9, 6
    %p75 = por %p73, %p74
    %p76 = scmp.ne.s32.totalorder %s68, %s71
    %p77 = scmp.eq.s32.totalorder %s9, 0
    %p78 = por %p76, %p77
    %p79 = scmp.ne.s32.totalorder %s68, %s71
    %p80 = scmp.eq.s32.totalorder %s14, 6
    %p81 = por %p79, %p80
    %p82 = scmp.ne.s32.totalorder %s71, %s72
    %p83 = scmp.eq.s32.totalorder %s14, 0
    %p84 = por %p82, %p83
    %p85 = scmp.ne.s32.totalorder %s71, %s72
    %p86 = scmp.eq.s32.totalorder %s15, 6
    %p87 = por %p85, %p86
    %p89 = scmp.ne.s32.totalorder %s72, %s88
    %p90 = scmp.eq.s32.totalorder %s15, 0
    %p91 = por %p89, %p90
    %s92 = ssub.s32 %s17, %s31
    %p93 = scmp.eq.s32.totalorder %s92, 0
    %s95 = sadd.s32 %s94, 1
    %s96 = scalar_select %p93, %s94, %s95
    %p99 = pneg %p93
    %p100 = scmp.eq.s32.totalorder %s9, 6
    %p101 = por %p99, %p100
    %p102 = scmp.ne.s32.totalorder %s94, %s97
    %p103 = scmp.eq.s32.totalorder %s9, 0
    %p104 = por %p102, %p103
    %p105 = scmp.ne.s32.totalorder %s94, %s97
    %p106 = scmp.eq.s32.totalorder %s14, 6
    %p107 = por %p105, %p106
    %p108 = scmp.ne.s32.totalorder %s97, %s98
    %p109 = scmp.eq.s32.totalorder %s14, 0
    %p110 = por %p108, %p109
    %p111 = scmp.ne.s32.totalorder %s97, %s98
    %p112 = scmp.eq.s32.totalorder %s15, 6
    %p113 = por %p111, %p112
    %p115 = scmp.ne.s32.totalorder %s98, %s114
    %p116 = scmp.eq.s32.totalorder %s15, 0
    %p117 = por %p115, %p116
    %s118 = ssub.s32 %s16, %s35
    %s119 = ssub.s32 %s17, %s31
    %s120 = sor.u32 %s118, %s119
    %p121 = scmp.eq.s32.totalorder %s120, 0
    %s123 = sadd.s32 %s122, 1
    %s124 = scalar_select %p121, %s122, %s123
    %p127 = pneg %p121
    %p128 = scmp.eq.s32.totalorder %s9, 6
    %p129 = por %p127, %p128
    %p130 = scmp.ne.s32.totalorder %s122, %s125
    %p131 = scmp.eq.s32.totalorder %s9, 0
    %p132 = por %p130, %p131
    %p133 = scmp.ne.s32.totalorder %s122, %s125
    %p134 = scmp.eq.s32.totalorder %s14, 6
    %p135 = por %p133, %p134
    %p136 = scmp.ne.s32.totalorder %s125, %s126
    %p137 = scmp.eq.s32.totalorder %s14, 0
    %p138 = por %p136, %p137
    %p139 = scmp.ne.s32.totalorder %s125, %s126
    %p140 = scmp.eq.s32.totalorder %s15, 6
    %p141 = por %p139, %p140
    %p143 = scmp.ne.s32.totalorder %s126, %s142
    %p144 = scmp.eq.s32.totalorder %s15, 0
    %p145 = por %p143, %p144
    %p146 = scmp.le.s32.totalorder 1, %s9
    %p147 = scmp.lt.s32.totalorder %s9, 8
    %p148 = pnand %p146, %p147
    %p149 = pneg %p148
    // Predicated region
    $region9: #{dqn_forward.8} parent=5 // pred_check
      _
    $region10: #{dqn_forward.8} parent=5 // pred_check_branch
      %151 = sbr.rel (%p148) target = $region12
    $region11: #{dqn_forward.8} parent=5 // pred_region
      %s152 = ssub.s32 %s9, 1
      // Predicated region
      $region13: #{dqn_forward.8} parent=11 // pred_check
        %p153 = pneg %p110
      $region14: #{dqn_forward.8} parent=11 // pred_check_branch
        %155 = sbr.rel (%p153) target = $region16
      $region15: #{dqn_forward.8} parent=11 // pred_region
        %s156 = smul.u32 4, %s20
        %p157 = scmp.lt.s32.totalorder %s156, 3
        %s158 = scalar_select %p157, %s156, 3
        %s159 = scalar_lea.vmem %s2, %s158
        %s160 = smul.u32 4, %s20
      $region16: #{dqn_forward.8} parent=11 // pred_fallthru
        _
    $region12: #{dqn_forward.8} parent=5 // pred_fallthru
      _
    %p161 = scmp.lt.s32.totalorder %s9, 7
    // Predicated region
    $region17: #{dqn_forward.8} parent=5 // pred_check
      %p162 = pneg %p161
    $region18: #{dqn_forward.8} parent=5 // pred_check_branch
      %164 = sbr.rel (%p162) target = $region20
    $region19: #{dqn_forward.8} parent=5 // pred_region
      // Predicated region
      $region21: #{dqn_forward.8} parent=19 // pred_check
        %p165 = pneg %p50
      $region22: #{dqn_forward.8} parent=19 // pred_check_branch
        %167 = sbr.rel (%p165) target = $region24
      $region23: #{dqn_forward.8} parent=19 // pred_region
        %s168 = smul.u32 4, %s18
        %p169 = scmp.lt.s32.totalorder %s16, 0
        %s170 = scalar_select %p169, %s16, 0
        %p171 = scmp.lt.s32.totalorder %s168, 27
        %s172 = scalar_select %p171, %s168, 27
        %s173 = smul.addr %s170, 28
        %s174 = sadd.s32 %s172, %s173
        %s175 = smul.addr %s174, 4
        %s176 = scalar_lea.vmem %s0, %s175
        %s177 = smul.u32 4, %s18
      $region24: #{dqn_forward.8} parent=19 // pred_fallthru
        _
      // Predicated region
      $region25: #{dqn_forward.8} parent=19 // pred_check
        %p178 = pneg %p78
      $region26: #{dqn_forward.8} parent=19 // pred_check_branch
        %180 = sbr.rel (%p178) target = $region28
      $region27: #{dqn_forward.8} parent=19 // pred_region
        %s181 = smul.u32 64, %s18
        %s182 = smul.u32 4, %s17
        %p183 = scmp.lt.s32.totalorder %s181, 447
        %s184 = scalar_select %p183, %s181, 447
        %p185 = scmp.lt.s32.totalorder %s182, 3
        %s186 = scalar_select %p185, %s182, 3
        %s187 = smul.addr %s184, 4
        %s188 = sadd.s32 %s186, %s187
        %s189 = smul.addr %s188, 4
        %s190 = scalar_lea.vmem %s1, %s189
        %s191 = smul.u32 64, %s18
        %s192 = smul.u32 4, %s17
      $region28: #{dqn_forward.8} parent=19 // pred_fallthru
        _
    $region20: #{dqn_forward.8} parent=5 // pred_fallthru
      _
    %p193 = scmp.le.s32.totalorder 1, %s9
    %p194 = scmp.lt.s32.totalorder %s9, 8
    %p195 = pnand %p193, %p194
    %p196 = pneg %p195
    // Predicated region
    $region29: #{dqn_forward.8} parent=5 // pred_check
      _
    $region30: #{dqn_forward.8} parent=5 // pred_check_branch
      %198 = sbr.rel (%p195) target = $region32
    $region31: #{dqn_forward.8} parent=5 // pred_region
      %s199 = ssub.s32 %s9, 1
      %s200 = smul.u32 4, %s21
      %p201 = scmp.lt.s32.totalorder %s19, 0
      %s202 = scalar_select %p201, %s19, 0
      %p203 = scmp.lt.s32.totalorder %s200, 27
      %s204 = scalar_select %p203, %s200, 27
      %s205 = smul.addr %s202, 28
      %s206 = sadd.s32 %s204, %s205
      %s207 = smul.addr %s206, 4
      %s208 = scalar_lea.vmem %s0, %s207
      %p209 = pneg %p56
      %p210 = pneg %p53
      %s211 = smul.u32 64, %s21
      %s212 = smul.u32 4, %s20
      %p213 = scmp.lt.s32.totalorder %s211, 447
      %s214 = scalar_select %p213, %s211, 447
      %p215 = scmp.lt.s32.totalorder %s212, 3
      %s216 = scalar_select %p215, %s212, 3
      %s217 = smul.addr %s214, 4
      %s218 = sadd.s32 %s216, %s217
      %s219 = smul.addr %s218, 4
      %s220 = scalar_lea.vmem %s1, %s219
      %p221 = pneg %p84
      %p222 = pneg %p81
      %s223 = smul.u32 4, %s20
      %p224 = scmp.lt.s32.totalorder %s223, 3
      %s225 = scalar_select %p224, %s223, 3
      %s226 = scalar_lea.vmem %s2, %s225
      %p227 = pneg %p110
      %p228 = pneg %p107
      %p229 = pneg %p138
      %p230 = pneg %p135
      %s231 = smul.u32 4, %s20
      %p232 = scmp.lt.s32.totalorder %s19, 0
      %s233 = scalar_select %p232, %s19, 0
      %p234 = scmp.lt.s32.totalorder %s231, 3
      %s235 = scalar_select %p234, %s231, 3
      %s236 = smul.addr %s233, 4
      %s237 = sadd.s32 %s235, %s236
      %s238 = smul.addr %s237, 8
      %s239 = scalar_lea.vmem %s3, %s238
      %s240 = smul.u32 4, %s21
      %p241 = scmp.lt.s32.totalorder %s19, 0
      %s242 = scalar_select %p241, %s19, 0
      %p243 = scmp.lt.s32.totalorder %s240, 27
      %s244 = scalar_select %p243, %s240, 27
      %s245 = smul.addr %s242, 28
      %s246 = sadd.s32 %s244, %s245
      %s247 = smul.addr %s246, 4
      %s248 = scalar_lea.vmem %s0, %s247
      %s249 = smul.u32 4, %s21
      %s250 = smul.u32 64, %s21
      %s251 = smul.u32 4, %s20
      %p252 = scmp.lt.s32.totalorder %s250, 447
      %s253 = scalar_select %p252, %s250, 447
      %p254 = scmp.lt.s32.totalorder %s251, 3
      %s255 = scalar_select %p254, %s251, 3
      %s256 = smul.addr %s253, 4
      %s257 = sadd.s32 %s255, %s256
      %s258 = smul.addr %s257, 4
      %s259 = scalar_lea.vmem %s1, %s258
      %s260 = smul.u32 64, %s21
      %s261 = smul.u32 4, %s20
      %s262 = smul.u32 4, %s20
      %p263 = scmp.lt.s32.totalorder %s262, 3
      %s264 = scalar_select %p263, %s262, 3
      %s265 = scalar_lea.vmem %s2, %s264
      %s266 = smul.u32 4, %s20
      %s267 = smul.u32 4, %s20
      %p268 = scmp.lt.s32.totalorder %s19, 0
      %s269 = scalar_select %p268, %s19, 0
      %p270 = scmp.lt.s32.totalorder %s267, 3
      %s271 = scalar_select %p270, %s267, 3
      %s272 = smul.addr %s269, 4
      %s273 = sadd.s32 %s271, %s272
      %s274 = smul.addr %s273, 8
      %s275 = scalar_lea.vmem %s3, %s274
      %s276 = smul.u32 4, %s20
      %p277 = scmp.eq.s32.totalorder %s21, 0
      // Predicated region
      $region33: #{dqn_forward.8} parent=31 // pred_check
        %p278 = pneg %p277
      $region34: #{dqn_forward.8} parent=31 // pred_check_branch
        %280 = sbr.rel (%p278) target = $region36
      $region35: #{dqn_forward.8} parent=31 // pred_region
        %281 = vst [vmem:[#allocation2] sm:$0xff] 0.0
        %282 = vst [vmem:[#allocation2 + $0x8] sm:$0xff] 0.0
        %283 = vst [vmem:[#allocation2 + $0x10] sm:$0xff] 0.0
        %284 = vst [vmem:[#allocation2 + $0x18] sm:$0xff] 0.0
      $region36: #{dqn_forward.8} parent=31 // pred_fallthru
        _
      %v285 = vld [vmem:[#allocation2] sm:$0xff]
      %v286 = vld [vmem:[#allocation2 + $0x8] sm:$0xff]
      %v287 = vld [vmem:[#allocation2 + $0x10] sm:$0xff]
      %v288 = vld [vmem:[#allocation2 + $0x18] sm:$0xff]
      %v289 = vld [vmem:[%s248] sm:$0xff]
      %v290 = vld [vmem:[%s248 + $0x8] sm:$0xff]
      %v291 = vld [vmem:[%s259] sm:$0xff]
      %v292 = vld [vmem:[%s259 + $0x8] sm:$0xff]
      %v293 = vld [vmem:[%s259 + $0x10] sm:$0xff]
      %v294 = vld [vmem:[%s259 + $0x18] sm:$0xff]
      %v295 = vld [vmem:[%s259 + $0x20] sm:$0xff]
      %v296 = vld [vmem:[%s259 + $0x28] sm:$0xff]
      %v297 = vld [vmem:[%s259 + $0x30] sm:$0xff]
      %v298 = vld [vmem:[%s259 + $0x38] sm:$0xff]
      %v299 = vld [vmem:[%s259 + $0x40] sm:$0xff]
      %v300 = vld [vmem:[%s259 + $0x48] sm:$0xff]
      %v301 = vld [vmem:[%s259 + $0x50] sm:$0xff]
      %v302 = vld [vmem:[%s259 + $0x58] sm:$0xff]
      %v303 = vld [vmem:[%s259 + $0x60] sm:$0xff]
      %v304 = vld [vmem:[%s259 + $0x68] sm:$0xff]
      %v305 = vld [vmem:[%s259 + $0x70] sm:$0xff]
      %v306 = vld [vmem:[%s259 + $0x78] sm:$0xff]
      %v307 = vld [vmem:[%s259 + $0x80] sm:$0xff]
      %v308 = vld [vmem:[%s259 + $0x88] sm:$0xff]
      %v309 = vld [vmem:[%s259 + $0x90] sm:$0xff]
      %v310 = vld [vmem:[%s259 + $0x98] sm:$0xff]
      %v311 = vld [vmem:[%s259 + $0xa0] sm:$0xff]
      %v312 = vld [vmem:[%s259 + $0xa8] sm:$0xff]
      %v313 = vld [vmem:[%s259 + $0xb0] sm:$0xff]
      %v314 = vld [vmem:[%s259 + $0xb8] sm:$0xff]
      %v315 = vld [vmem:[%s259 + $0xc0] sm:$0xff]
      %v316 = vld [vmem:[%s259 + $0xc8] sm:$0xff]
      %v317 = vld [vmem:[%s259 + $0xd0] sm:$0xff]
      %v318 = vld [vmem:[%s259 + $0xd8] sm:$0xff]
      %v319 = vld [vmem:[%s259 + $0xe0] sm:$0xff]
      %v320 = vld [vmem:[%s259 + $0xe8] sm:$0xff]
      %v321 = vld [vmem:[%s259 + $0xf0] sm:$0xff]
      %v322 = vld [vmem:[%s259 + $0xf8] sm:$0xff]
      %v323 = vld [vmem:[%s259 + $0x100] sm:$0xff]
      %v324 = vld [vmem:[%s259 + $0x108] sm:$0xff]
      %v325 = vld [vmem:[%s259 + $0x110] sm:$0xff]
      %v326 = vld [vmem:[%s259 + $0x118] sm:$0xff]
      %v327 = vld [vmem:[%s259 + $0x120] sm:$0xff]
      %v328 = vld [vmem:[%s259 + $0x128] sm:$0xff]
      %v329 = vld [vmem:[%s259 + $0x130] sm:$0xff]
      %v330 = vld [vmem:[%s259 + $0x138] sm:$0xff]
      %v331 = vld [vmem:[%s259 + $0x140] sm:$0xff]
      %v332 = vld [vmem:[%s259 + $0x148] sm:$0xff]
      %v333 = vld [vmem:[%s259 + $0x150] sm:$0xff]
      %v334 = vld [vmem:[%s259 + $0x158] sm:$0xff]
      %v335 = vld [vmem:[%s259 + $0x160] sm:$0xff]
      %v336 = vld [vmem:[%s259 + $0x168] sm:$0xff]
      %v337 = vld [vmem:[%s259 + $0x170] sm:$0xff]
      %v338 = vld [vmem:[%s259 + $0x178] sm:$0xff]
      %v339 = vld [vmem:[%s259 + $0x180] sm:$0xff]
      %v340 = vld [vmem:[%s259 + $0x188] sm:$0xff]
      %v341 = vld [vmem:[%s259 + $0x190] sm:$0xff]
      %v342 = vld [vmem:[%s259 + $0x198] sm:$0xff]
      %v343 = vld [vmem:[%s259 + $0x1a0] sm:$0xff]
      %v344 = vld [vmem:[%s259 + $0x1a8] sm:$0xff]
      %v345 = vld [vmem:[%s259 + $0x1b0] sm:$0xff]
      %v346 = vld [vmem:[%s259 + $0x1b8] sm:$0xff]
      %v347 = vld [vmem:[%s259 + $0x1c0] sm:$0xff]
      %v348 = vld [vmem:[%s259 + $0x1c8] sm:$0xff]
      %v349 = vld [vmem:[%s259 + $0x1d0] sm:$0xff]
      %v350 = vld [vmem:[%s259 + $0x1d8] sm:$0xff]
      %v351 = vld [vmem:[%s259 + $0x1e0] sm:$0xff]
      %v352 = vld [vmem:[%s259 + $0x1e8] sm:$0xff]
      %v353 = vld [vmem:[%s259 + $0x1f0] sm:$0xff]
      %v354 = vld [vmem:[%s259 + $0x1f8] sm:$0xff]
      %v355 = vld [vmem:[%s259 + $0x200] sm:$0xff]
      %v356 = vld [vmem:[%s259 + $0x208] sm:$0xff]
      %v357 = vld [vmem:[%s259 + $0x210] sm:$0xff]
      %v358 = vld [vmem:[%s259 + $0x218] sm:$0xff]
      %v359 = vld [vmem:[%s259 + $0x220] sm:$0xff]
      %v360 = vld [vmem:[%s259 + $0x228] sm:$0xff]
      %v361 = vld [vmem:[%s259 + $0x230] sm:$0xff]
      %v362 = vld [vmem:[%s259 + $0x238] sm:$0xff]
      %v363 = vld [vmem:[%s259 + $0x240] sm:$0xff]
      %v364 = vld [vmem:[%s259 + $0x248] sm:$0xff]
      %v365 = vld [vmem:[%s259 + $0x250] sm:$0xff]
      %v366 = vld [vmem:[%s259 + $0x258] sm:$0xff]
      %v367 = vld [vmem:[%s259 + $0x260] sm:$0xff]
      %v368 = vld [vmem:[%s259 + $0x268] sm:$0xff]
      %v369 = vld [vmem:[%s259 + $0x270] sm:$0xff]
      %v370 = vld [vmem:[%s259 + $0x278] sm:$0xff]
      %v371 = vld [vmem:[%s259 + $0x280] sm:$0xff]
      %v372 = vld [vmem:[%s259 + $0x288] sm:$0xff]
      %v373 = vld [vmem:[%s259 + $0x290] sm:$0xff]
      %v374 = vld [vmem:[%s259 + $0x298] sm:$0xff]
      %v375 = vld [vmem:[%s259 + $0x2a0] sm:$0xff]
      %v376 = vld [vmem:[%s259 + $0x2a8] sm:$0xff]
      %v377 = vld [vmem:[%s259 + $0x2b0] sm:$0xff]
      %v378 = vld [vmem:[%s259 + $0x2b8] sm:$0xff]
      %v379 = vld [vmem:[%s259 + $0x2c0] sm:$0xff]
      %v380 = vld [vmem:[%s259 + $0x2c8] sm:$0xff]
      %v381 = vld [vmem:[%s259 + $0x2d0] sm:$0xff]
      %v382 = vld [vmem:[%s259 + $0x2d8] sm:$0xff]
      %v383 = vld [vmem:[%s259 + $0x2e0] sm:$0xff]
      %v384 = vld [vmem:[%s259 + $0x2e8] sm:$0xff]
      %v385 = vld [vmem:[%s259 + $0x2f0] sm:$0xff]
      %v386 = vld [vmem:[%s259 + $0x2f8] sm:$0xff]
      %v387 = vld [vmem:[%s259 + $0x300] sm:$0xff]
      %v388 = vld [vmem:[%s259 + $0x308] sm:$0xff]
      %v389 = vld [vmem:[%s259 + $0x310] sm:$0xff]
      %v390 = vld [vmem:[%s259 + $0x318] sm:$0xff]
      %v391 = vld [vmem:[%s259 + $0x320] sm:$0xff]
      %v392 = vld [vmem:[%s259 + $0x328] sm:$0xff]
      %v393 = vld [vmem:[%s259 + $0x330] sm:$0xff]
      %v394 = vld [vmem:[%s259 + $0x338] sm:$0xff]
      %v395 = vld [vmem:[%s259 + $0x340] sm:$0xff]
      %v396 = vld [vmem:[%s259 + $0x348] sm:$0xff]
      %v397 = vld [vmem:[%s259 + $0x350] sm:$0xff]
      %v398 = vld [vmem:[%s259 + $0x358] sm:$0xff]
      %v399 = vld [vmem:[%s259 + $0x360] sm:$0xff]
      %v400 = vld [vmem:[%s259 + $0x368] sm:$0xff]
      %v401 = vld [vmem:[%s259 + $0x370] sm:$0xff]
      %v402 = vld [vmem:[%s259 + $0x378] sm:$0xff]
      %v403 = vld [vmem:[%s259 + $0x380] sm:$0xff]
      %v404 = vld [vmem:[%s259 + $0x388] sm:$0xff]
      %v405 = vld [vmem:[%s259 + $0x390] sm:$0xff]
      %v406 = vld [vmem:[%s259 + $0x398] sm:$0xff]
      %v407 = vld [vmem:[%s259 + $0x3a0] sm:$0xff]
      %v408 = vld [vmem:[%s259 + $0x3a8] sm:$0xff]
      %v409 = vld [vmem:[%s259 + $0x3b0] sm:$0xff]
      %v410 = vld [vmem:[%s259 + $0x3b8] sm:$0xff]
      %v411 = vld [vmem:[%s259 + $0x3c0] sm:$0xff]
      %v412 = vld [vmem:[%s259 + $0x3c8] sm:$0xff]
      %v413 = vld [vmem:[%s259 + $0x3d0] sm:$0xff]
      %v414 = vld [vmem:[%s259 + $0x3d8] sm:$0xff]
      %v415 = vld [vmem:[%s259 + $0x3e0] sm:$0xff]
      %v416 = vld [vmem:[%s259 + $0x3e8] sm:$0xff]
      %v417 = vld [vmem:[%s259 + $0x3f0] sm:$0xff]
      %v418 = vld [vmem:[%s259 + $0x3f8] sm:$0xff]
      %v421 = vunpack.c.l.b16 %v289
      %v422 = vunpack.c.h.b16 %v289
      %v423 = vunpack.c.l.b16 %v290
      %v424 = vunpack.c.h.b16 %v290
      %v425 = vpack.c.b16 %v421, %v421
      %v426 = vpack.c.b16 %v422, %v422
      %v427 = vpack.c.b16 %v423, %v423
      %v428 = vpack.c.b16 %v424, %v424
      %v561 = vunpack.c.l.b16 %v291
      %v562 = vunpack.c.h.b16 %v291
      %v563 = vunpack.c.l.b16 %v292
      %v564 = vunpack.c.h.b16 %v292
      %v565 = vunpack.c.l.b16 %v293
      %v566 = vunpack.c.h.b16 %v293
      %v567 = vunpack.c.l.b16 %v294
      %v568 = vunpack.c.h.b16 %v294
      %v569 = vunpack.c.l.b16 %v295
      %v570 = vunpack.c.h.b16 %v295
      %v571 = vunpack.c.l.b16 %v296
      %v572 = vunpack.c.h.b16 %v296
      %v573 = vunpack.c.l.b16 %v297
      %v574 = vunpack.c.h.b16 %v297
      %v575 = vunpack.c.l.b16 %v298
      %v576 = vunpack.c.h.b16 %v298
      %v577 = vunpack.c.l.b16 %v299
      %v578 = vunpack.c.h.b16 %v299
      %v579 = vunpack.c.l.b16 %v300
      %v580 = vunpack.c.h.b16 %v300
      %v581 = vunpack.c.l.b16 %v301
      %v582 = vunpack.c.h.b16 %v301
      %v583 = vunpack.c.l.b16 %v302
      %v584 = vunpack.c.h.b16 %v302
      %v585 = vunpack.c.l.b16 %v303
      %v586 = vunpack.c.h.b16 %v303
      %v587 = vunpack.c.l.b16 %v304
      %v588 = vunpack.c.h.b16 %v304
      %v589 = vunpack.c.l.b16 %v305
      %v590 = vunpack.c.h.b16 %v305
      %v591 = vunpack.c.l.b16 %v306
      %v592 = vunpack.c.h.b16 %v306
      %v593 = vunpack.c.l.b16 %v307
      %v594 = vunpack.c.h.b16 %v307
      %v595 = vunpack.c.l.b16 %v308
      %v596 = vunpack.c.h.b16 %v308
      %v597 = vunpack.c.l.b16 %v309
      %v598 = vunpack.c.h.b16 %v309
      %v599 = vunpack.c.l.b16 %v310
      %v600 = vunpack.c.h.b16 %v310
      %v601 = vunpack.c.l.b16 %v311
      %v602 = vunpack.c.h.b16 %v311
      %v603 = vunpack.c.l.b16 %v312
      %v604 = vunpack.c.h.b16 %v312
      %v605 = vunpack.c.l.b16 %v313
      %v606 = vunpack.c.h.b16 %v313
      %v607 = vunpack.c.l.b16 %v314
      %v608 = vunpack.c.h.b16 %v314
      %v609 = vunpack.c.l.b16 %v315
      %v610 = vunpack.c.h.b16 %v315
      %v611 = vunpack.c.l.b16 %v316
      %v612 = vunpack.c.h.b16 %v316
      %v613 = vunpack.c.l.b16 %v317
      %v614 = vunpack.c.h.b16 %v317
      %v615 = vunpack.c.l.b16 %v318
      %v616 = vunpack.c.h.b16 %v318
      %v617 = vunpack.c.l.b16 %v319
      %v618 = vunpack.c.h.b16 %v319
      %v619 = vunpack.c.l.b16 %v320
      %v620 = vunpack.c.h.b16 %v320
      %v621 = vunpack.c.l.b16 %v321
      %v622 = vunpack.c.h.b16 %v321
      %v623 = vunpack.c.l.b16 %v322
      %v624 = vunpack.c.h.b16 %v322
      %v625 = vunpack.c.l.b16 %v323
      %v626 = vunpack.c.h.b16 %v323
      %v627 = vunpack.c.l.b16 %v324
      %v628 = vunpack.c.h.b16 %v324
      %v629 = vunpack.c.l.b16 %v325
      %v630 = vunpack.c.h.b16 %v325
      %v631 = vunpack.c.l.b16 %v326
      %v632 = vunpack.c.h.b16 %v326
      %v633 = vunpack.c.l.b16 %v327
      %v634 = vunpack.c.h.b16 %v327
      %v635 = vunpack.c.l.b16 %v328
      %v636 = vunpack.c.h.b16 %v328
      %v637 = vunpack.c.l.b16 %v329
      %v638 = vunpack.c.h.b16 %v329
      %v639 = vunpack.c.l.b16 %v330
      %v640 = vunpack.c.h.b16 %v330
      %v641 = vunpack.c.l.b16 %v331
      %v642 = vunpack.c.h.b16 %v331
      %v643 = vunpack.c.l.b16 %v332
      %v644 = vunpack.c.h.b16 %v332
      %v645 = vunpack.c.l.b16 %v333
      %v646 = vunpack.c.h.b16 %v333
      %v647 = vunpack.c.l.b16 %v334
      %v648 = vunpack.c.h.b16 %v334
      %v649 = vunpack.c.l.b16 %v335
      %v650 = vunpack.c.h.b16 %v335
      %v651 = vunpack.c.l.b16 %v336
      %v652 = vunpack.c.h.b16 %v336
      %v653 = vunpack.c.l.b16 %v337
      %v654 = vunpack.c.h.b16 %v337
      %v655 = vunpack.c.l.b16 %v338
      %v656 = vunpack.c.h.b16 %v338
      %v657 = vunpack.c.l.b16 %v339
      %v658 = vunpack.c.h.b16 %v339
      %v659 = vunpack.c.l.b16 %v340
      %v660 = vunpack.c.h.b16 %v340
      %v661 = vunpack.c.l.b16 %v341
      %v662 = vunpack.c.h.b16 %v341
      %v663 = vunpack.c.l.b16 %v342
      %v664 = vunpack.c.h.b16 %v342
      %v665 = vunpack.c.l.b16 %v343
      %v666 = vunpack.c.h.b16 %v343
      %v667 = vunpack.c.l.b16 %v344
      %v668 = vunpack.c.h.b16 %v344
      %v669 = vunpack.c.l.b16 %v345
      %v670 = vunpack.c.h.b16 %v345
      %v671 = vunpack.c.l.b16 %v346
      %v672 = vunpack.c.h.b16 %v346
      %v673 = vunpack.c.l.b16 %v347
      %v674 = vunpack.c.h.b16 %v347
      %v675 = vunpack.c.l.b16 %v348
      %v676 = vunpack.c.h.b16 %v348
      %v677 = vunpack.c.l.b16 %v349
      %v678 = vunpack.c.h.b16 %v349
      %v679 = vunpack.c.l.b16 %v350
      %v680 = vunpack.c.h.b16 %v350
      %v681 = vunpack.c.l.b16 %v351
      %v682 = vunpack.c.h.b16 %v351
      %v683 = vunpack.c.l.b16 %v352
      %v684 = vunpack.c.h.b16 %v352
      %v685 = vunpack.c.l.b16 %v353
      %v686 = vunpack.c.h.b16 %v353
      %v687 = vunpack.c.l.b16 %v354
      %v688 = vunpack.c.h.b16 %v354
      %v689 = vunpack.c.l.b16 %v355
      %v690 = vunpack.c.h.b16 %v355
      %v691 = vunpack.c.l.b16 %v356
      %v692 = vunpack.c.h.b16 %v356
      %v693 = vunpack.c.l.b16 %v357
      %v694 = vunpack.c.h.b16 %v357
      %v695 = vunpack.c.l.b16 %v358
      %v696 = vunpack.c.h.b16 %v358
      %v697 = vunpack.c.l.b16 %v359
      %v698 = vunpack.c.h.b16 %v359
      %v699 = vunpack.c.l.b16 %v360
      %v700 = vunpack.c.h.b16 %v360
      %v701 = vunpack.c.l.b16 %v361
      %v702 = vunpack.c.h.b16 %v361
      %v703 = vunpack.c.l.b16 %v362
      %v704 = vunpack.c.h.b16 %v362
      %v705 = vunpack.c.l.b16 %v363
      %v706 = vunpack.c.h.b16 %v363
      %v707 = vunpack.c.l.b16 %v364
      %v708 = vunpack.c.h.b16 %v364
      %v709 = vunpack.c.l.b16 %v365
      %v710 = vunpack.c.h.b16 %v365
      %v711 = vunpack.c.l.b16 %v366
      %v712 = vunpack.c.h.b16 %v366
      %v713 = vunpack.c.l.b16 %v367
      %v714 = vunpack.c.h.b16 %v367
      %v715 = vunpack.c.l.b16 %v368
      %v716 = vunpack.c.h.b16 %v368
      %v717 = vunpack.c.l.b16 %v369
      %v718 = vunpack.c.h.b16 %v369
      %v719 = vunpack.c.l.b16 %v370
      %v720 = vunpack.c.h.b16 %v370
      %v721 = vunpack.c.l.b16 %v371
      %v722 = vunpack.c.h.b16 %v371
      %v723 = vunpack.c.l.b16 %v372
      %v724 = vunpack.c.h.b16 %v372
      %v725 = vunpack.c.l.b16 %v373
      %v726 = vunpack.c.h.b16 %v373
      %v727 = vunpack.c.l.b16 %v374
      %v728 = vunpack.c.h.b16 %v374
      %v729 = vunpack.c.l.b16 %v375
      %v730 = vunpack.c.h.b16 %v375
      %v731 = vunpack.c.l.b16 %v376
      %v732 = vunpack.c.h.b16 %v376
      %v733 = vunpack.c.l.b16 %v377
      %v734 = vunpack.c.h.b16 %v377
      %v735 = vunpack.c.l.b16 %v378
      %v736 = vunpack.c.h.b16 %v378
      %v737 = vunpack.c.l.b16 %v379
      %v738 = vunpack.c.h.b16 %v379
      %v739 = vunpack.c.l.b16 %v380
      %v740 = vunpack.c.h.b16 %v380
      %v741 = vunpack.c.l.b16 %v381
      %v742 = vunpack.c.h.b16 %v381
      %v743 = vunpack.c.l.b16 %v382
      %v744 = vunpack.c.h.b16 %v382
      %v745 = vunpack.c.l.b16 %v383
      %v746 = vunpack.c.h.b16 %v383
      %v747 = vunpack.c.l.b16 %v384
      %v748 = vunpack.c.h.b16 %v384
      %v749 = vunpack.c.l.b16 %v385
      %v750 = vunpack.c.h.b16 %v385
      %v751 = vunpack.c.l.b16 %v386
      %v752 = vunpack.c.h.b16 %v386
      %v753 = vunpack.c.l.b16 %v387
      %v754 = vunpack.c.h.b16 %v387
      %v755 = vunpack.c.l.b16 %v388
      %v756 = vunpack.c.h.b16 %v388
      %v757 = vunpack.c.l.b16 %v389
      %v758 = vunpack.c.h.b16 %v389
      %v759 = vunpack.c.l.b16 %v390
      %v760 = vunpack.c.h.b16 %v390
      %v761 = vunpack.c.l.b16 %v391
      %v762 = vunpack.c.h.b16 %v391
      %v763 = vunpack.c.l.b16 %v392
      %v764 = vunpack.c.h.b16 %v392
      %v765 = vunpack.c.l.b16 %v393
      %v766 = vunpack.c.h.b16 %v393
      %v767 = vunpack.c.l.b16 %v394
      %v768 = vunpack.c.h.b16 %v394
      %v769 = vunpack.c.l.b16 %v395
      %v770 = vunpack.c.h.b16 %v395
      %v771 = vunpack.c.l.b16 %v396
      %v772 = vunpack.c.h.b16 %v396
      %v773 = vunpack.c.l.b16 %v397
      %v774 = vunpack.c.h.b16 %v397
      %v775 = vunpack.c.l.b16 %v398
      %v776 = vunpack.c.h.b16 %v398
      %v777 = vunpack.c.l.b16 %v399
      %v778 = vunpack.c.h.b16 %v399
      %v779 = vunpack.c.l.b16 %v400
      %v780 = vunpack.c.h.b16 %v400
      %v781 = vunpack.c.l.b16 %v401
      %v782 = vunpack.c.h.b16 %v401
      %v783 = vunpack.c.l.b16 %v402
      %v784 = vunpack.c.h.b16 %v402
      %v785 = vunpack.c.l.b16 %v403
      %v786 = vunpack.c.h.b16 %v403
      %v787 = vunpack.c.l.b16 %v404
      %v788 = vunpack.c.h.b16 %v404
      %v789 = vunpack.c.l.b16 %v405
      %v790 = vunpack.c.h.b16 %v405
      %v791 = vunpack.c.l.b16 %v406
      %v792 = vunpack.c.h.b16 %v406
      %v793 = vunpack.c.l.b16 %v407
      %v794 = vunpack.c.h.b16 %v407
      %v795 = vunpack.c.l.b16 %v408
      %v796 = vunpack.c.h.b16 %v408
      %v797 = vunpack.c.l.b16 %v409
      %v798 = vunpack.c.h.b16 %v409
      %v799 = vunpack.c.l.b16 %v410
      %v800 = vunpack.c.h.b16 %v410
      %v801 = vunpack.c.l.b16 %v411
      %v802 = vunpack.c.h.b16 %v411
      %v803 = vunpack.c.l.b16 %v412
      %v804 = vunpack.c.h.b16 %v412
      %v805 = vunpack.c.l.b16 %v413
      %v806 = vunpack.c.h.b16 %v413
      %v807 = vunpack.c.l.b16 %v414
      %v808 = vunpack.c.h.b16 %v414
      %v809 = vunpack.c.l.b16 %v415
      %v810 = vunpack.c.h.b16 %v415
      %v811 = vunpack.c.l.b16 %v416
      %v812 = vunpack.c.h.b16 %v416
      %v813 = vunpack.c.l.b16 %v417
      %v814 = vunpack.c.h.b16 %v417
      %v815 = vunpack.c.l.b16 %v418
      %v816 = vunpack.c.h.b16 %v418
      %v817 = vpack.c.b16 %v565, %v561
      %v818 = vpack.c.b16 %v566, %v562
      %v819 = vpack.c.b16 %v567, %v563
      %v820 = vpack.c.b16 %v568, %v564
      %v821 = vpack.c.b16 %v573, %v569
      %v822 = vpack.c.b16 %v574, %v570
      %v823 = vpack.c.b16 %v575, %v571
      %v824 = vpack.c.b16 %v576, %v572
      %v825 = vpack.c.b16 %v581, %v577
      %v826 = vpack.c.b16 %v582, %v578
      %v827 = vpack.c.b16 %v583, %v579
      %v828 = vpack.c.b16 %v584, %v580
      %v829 = vpack.c.b16 %v589, %v585
      %v830 = vpack.c.b16 %v590, %v586
      %v831 = vpack.c.b16 %v591, %v587
      %v832 = vpack.c.b16 %v592, %v588
      %v833 = vpack.c.b16 %v597, %v593
      %v834 = vpack.c.b16 %v598, %v594
      %v835 = vpack.c.b16 %v599, %v595
      %v836 = vpack.c.b16 %v600, %v596
      %v837 = vpack.c.b16 %v605, %v601
      %v838 = vpack.c.b16 %v606, %v602
      %v839 = vpack.c.b16 %v607, %v603
      %v840 = vpack.c.b16 %v608, %v604
      %v841 = vpack.c.b16 %v613, %v609
      %v842 = vpack.c.b16 %v614, %v610
      %v843 = vpack.c.b16 %v615, %v611
      %v844 = vpack.c.b16 %v616, %v612
      %v845 = vpack.c.b16 %v621, %v617
      %v846 = vpack.c.b16 %v622, %v618
      %v847 = vpack.c.b16 %v623, %v619
      %v848 = vpack.c.b16 %v624, %v620
      %v849 = vpack.c.b16 %v629, %v625
      %v850 = vpack.c.b16 %v630, %v626
      %v851 = vpack.c.b16 %v631, %v627
      %v852 = vpack.c.b16 %v632, %v628
      %v853 = vpack.c.b16 %v637, %v633
      %v854 = vpack.c.b16 %v638, %v634
      %v855 = vpack.c.b16 %v639, %v635
      %v856 = vpack.c.b16 %v640, %v636
      %v857 = vpack.c.b16 %v645, %v641
      %v858 = vpack.c.b16 %v646, %v642
      %v859 = vpack.c.b16 %v647, %v643
      %v860 = vpack.c.b16 %v648, %v644
      %v861 = vpack.c.b16 %v653, %v649
      %v862 = vpack.c.b16 %v654, %v650
      %v863 = vpack.c.b16 %v655, %v651
      %v864 = vpack.c.b16 %v656, %v652
      %v865 = vpack.c.b16 %v661, %v657
      %v866 = vpack.c.b16 %v662, %v658
      %v867 = vpack.c.b16 %v663, %v659
      %v868 = vpack.c.b16 %v664, %v660
      %v869 = vpack.c.b16 %v669, %v665
      %v870 = vpack.c.b16 %v670, %v666
      %v871 = vpack.c.b16 %v671, %v667
      %v872 = vpack.c.b16 %v672, %v668
      %v873 = vpack.c.b16 %v677, %v673
      %v874 = vpack.c.b16 %v678, %v674
      %v875 = vpack.c.b16 %v679, %v675
      %v876 = vpack.c.b16 %v680, %v676
      %v877 = vpack.c.b16 %v685, %v681
      %v878 = vpack.c.b16 %v686, %v682
      %v879 = vpack.c.b16 %v687, %v683
      %v880 = vpack.c.b16 %v688, %v684
      %v881 = vpack.c.b16 %v693, %v689
      %v882 = vpack.c.b16 %v694, %v690
      %v883 = vpack.c.b16 %v695, %v691
      %v884 = vpack.c.b16 %v696, %v692
      %v885 = vpack.c.b16 %v701, %v697
      %v886 = vpack.c.b16 %v702, %v698
      %v887 = vpack.c.b16 %v703, %v699
      %v888 = vpack.c.b16 %v704, %v700
      %v889 = vpack.c.b16 %v709, %v705
      %v890 = vpack.c.b16 %v710, %v706
      %v891 = vpack.c.b16 %v711, %v707
      %v892 = vpack.c.b16 %v712, %v708
      %v893 = vpack.c.b16 %v717, %v713
      %v894 = vpack.c.b16 %v718, %v714
      %v895 = vpack.c.b16 %v719, %v715
      %v896 = vpack.c.b16 %v720, %v716
      %v897 = vpack.c.b16 %v725, %v721
      %v898 = vpack.c.b16 %v726, %v722
      %v899 = vpack.c.b16 %v727, %v723
      %v900 = vpack.c.b16 %v728, %v724
      %v901 = vpack.c.b16 %v733, %v729
      %v902 = vpack.c.b16 %v734, %v730
      %v903 = vpack.c.b16 %v735, %v731
      %v904 = vpack.c.b16 %v736, %v732
      %v905 = vpack.c.b16 %v741, %v737
      %v906 = vpack.c.b16 %v742, %v738
      %v907 = vpack.c.b16 %v743, %v739
      %v908 = vpack.c.b16 %v744, %v740
      %v909 = vpack.c.b16 %v749, %v745
      %v910 = vpack.c.b16 %v750, %v746
      %v911 = vpack.c.b16 %v751, %v747
      %v912 = vpack.c.b16 %v752, %v748
      %v913 = vpack.c.b16 %v757, %v753
      %v914 = vpack.c.b16 %v758, %v754
      %v915 = vpack.c.b16 %v759, %v755
      %v916 = vpack.c.b16 %v760, %v756
      %v917 = vpack.c.b16 %v765, %v761
      %v918 = vpack.c.b16 %v766, %v762
      %v919 = vpack.c.b16 %v767, %v763
      %v920 = vpack.c.b16 %v768, %v764
      %v921 = vpack.c.b16 %v773, %v769
      %v922 = vpack.c.b16 %v774, %v770
      %v923 = vpack.c.b16 %v775, %v771
      %v924 = vpack.c.b16 %v776, %v772
      %v925 = vpack.c.b16 %v781, %v777
      %v926 = vpack.c.b16 %v782, %v778
      %v927 = vpack.c.b16 %v783, %v779
      %v928 = vpack.c.b16 %v784, %v780
      %v929 = vpack.c.b16 %v789, %v785
      %v930 = vpack.c.b16 %v790, %v786
      %v931 = vpack.c.b16 %v791, %v787
      %v932 = vpack.c.b16 %v792, %v788
      %v933 = vpack.c.b16 %v797, %v793
      %v934 = vpack.c.b16 %v798, %v794
      %v935 = vpack.c.b16 %v799, %v795
      %v936 = vpack.c.b16 %v800, %v796
      %v937 = vpack.c.b16 %v805, %v801
      %v938 = vpack.c.b16 %v806, %v802
      %v939 = vpack.c.b16 %v807, %v803
      %v940 = vpack.c.b16 %v808, %v804
      %v941 = vpack.c.b16 %v813, %v809
      %v942 = vpack.c.b16 %v814, %v810
      %v943 = vpack.c.b16 %v815, %v811
      %v944 = vpack.c.b16 %v816, %v812
      %1073 = vmatprep.subr.bf16.mxu0 %v818
      %1074 = vmatpush1.bf16.msra.mxu0 %v817
      %1075 = vmatprep.subr.bf16.mxu0 %v822
      %1076 = vmatpush1.bf16.msra.mxu0 %v821
      %1077 = vmatprep.subr.bf16.mxu0 %v826
      %1078 = vmatpush1.bf16.msra.mxu0 %v825
      %1079 = vmatprep.subr.bf16.mxu0 %v830
      %1080 = vmatpush1.bf16.msra.mxu0 %v829
      %1081 = vmatprep.subr.bf16.mxu0 %v834
      %1082 = vmatpush1.bf16.msra.mxu0 %v833
      %1083 = vmatprep.subr.bf16.mxu0 %v838
      %1084 = vmatpush1.bf16.msra.mxu0 %v837
      %1085 = vmatprep.subr.bf16.mxu0 %v842
      %1086 = vmatpush1.bf16.msra.mxu0 %v841
      %1087 = vmatprep.subr.bf16.mxu0 %v846
      %1088 = vmatpush1.bf16.msra.mxu0 %v845
      %1089 = vmatprep.subr.bf16.mxu0 %v850
      %1090 = vmatpush1.bf16.msra.mxu0 %v849
      %1091 = vmatprep.subr.bf16.mxu0 %v854
      %1092 = vmatpush1.bf16.msra.mxu0 %v853
      %1093 = vmatprep.subr.bf16.mxu0 %v858
      %1094 = vmatpush1.bf16.msra.mxu0 %v857
      %1095 = vmatprep.subr.bf16.mxu0 %v862
      %1096 = vmatpush1.bf16.msra.mxu0 %v861
      %1097 = vmatprep.subr.bf16.mxu0 %v866
      %1098 = vmatpush1.bf16.msra.mxu0 %v865
      %1099 = vmatprep.subr.bf16.mxu0 %v870
      %1100 = vmatpush1.bf16.msra.mxu0 %v869
      %1101 = vmatprep.subr.bf16.mxu0 %v874
      %1102 = vmatpush1.bf16.msra.mxu0 %v873
      %1103 = vmatprep.subr.bf16.mxu0 %v878
      %1104 = vmatpush1.bf16.msra.mxu0 %v877
      %1105 = vmatprep.mubr.bf16.mxu0 %v426
      %1106 = vmatmul.mubr.bf16.gmra.mrb[0].mxu0 %v425
      %v1107 = vpop.f32.mrb[0].mxu0
      %v1108 = vadd.f32 0.0, %v1107
      %v1109 = vpop.f32.mrb[0].mxu0
      %v1110 = vadd.f32 0.0, %v1109
      %v1111 = vpop.f32.mrb[0].mxu0
      %v1112 = vpop.f32.mrb[0].mxu0
      %1113 = vdwg.mxu0
      %1114 = vmatprep.subr.bf16.mxu0 %v882
      %1115 = vmatpush1.bf16.msra.mxu0 %v881
      %1116 = vmatprep.subr.bf16.mxu0 %v886
      %1117 = vmatpush1.bf16.msra.mxu0 %v885
      %1118 = vmatprep.subr.bf16.mxu0 %v890
      %1119 = vmatpush1.bf16.msra.mxu0 %v889
      %1120 = vmatprep.subr.bf16.mxu0 %v894
      %1121 = vmatpush1.bf16.msra.mxu0 %v893
      %1122 = vmatprep.subr.bf16.mxu0 %v898
      %1123 = vmatpush1.bf16.msra.mxu0 %v897
      %1124 = vmatprep.subr.bf16.mxu0 %v902
      %1125 = vmatpush1.bf16.msra.mxu0 %v901
      %1126 = vmatprep.subr.bf16.mxu0 %v906
      %1127 = vmatpush1.bf16.msra.mxu0 %v905
      %1128 = vmatprep.subr.bf16.mxu0 %v910
      %1129 = vmatpush1.bf16.msra.mxu0 %v909
      %1130 = vmatprep.subr.bf16.mxu0 %v914
      %1131 = vmatpush1.bf16.msra.mxu0 %v913
      %1132 = vmatprep.subr.bf16.mxu0 %v918
      %1133 = vmatpush1.bf16.msra.mxu0 %v917
      %1134 = vmatprep.subr.bf16.mxu0 %v922
      %1135 = vmatpush1.bf16.msra.mxu0 %v921
      %1136 = vmatprep.subr.bf16.mxu0 %v926
      %1137 = vmatpush1.bf16.msra.mxu0 %v925
      %1138 = vmatprep.subr.bf16.mxu0 %v930
      %1139 = vmatpush1.bf16.msra.mxu0 %v929
      %1140 = vmatprep.subr.bf16.mxu0 %v934
      %1141 = vmatpush1.bf16.msra.mxu0 %v933
      %1142 = vmatprep.subr.bf16.mxu0 %v938
      %1143 = vmatpush1.bf16.msra.mxu0 %v937
      %1144 = vmatprep.subr.bf16.mxu0 %v942
      %1145 = vmatpush1.bf16.msra.mxu0 %v941
      %1146 = vmatprep.mubr.bf16.mxu0 %v428
      %1147 = vmatmul.mubr.bf16.gmra.mrb[0].mxu0 %v427
      %v1148 = vpop.f32.mrb[0].mxu0
      %v1149 = vadd.f32 %v1108, %v1148
      %v1150 = vpop.f32.mrb[0].mxu0
      %v1151 = vadd.f32 %v1110, %v1150
      %v1152 = vpop.f32.mrb[0].mxu0
      %v1153 = vpop.f32.mrb[0].mxu0
      %1154 = vdwg.mxu0
      %1155 = vmatprep.subr.bf16.mxu0 %v820
      %1156 = vmatpush1.bf16.msra.mxu0 %v819
      %1157 = vmatprep.subr.bf16.mxu0 %v824
      %1158 = vmatpush1.bf16.msra.mxu0 %v823
      %1159 = vmatprep.subr.bf16.mxu0 %v828
      %1160 = vmatpush1.bf16.msra.mxu0 %v827
      %1161 = vmatprep.subr.bf16.mxu0 %v832
      %1162 = vmatpush1.bf16.msra.mxu0 %v831
      %1163 = vmatprep.subr.bf16.mxu0 %v836
      %1164 = vmatpush1.bf16.msra.mxu0 %v835
      %1165 = vmatprep.subr.bf16.mxu0 %v840
      %1166 = vmatpush1.bf16.msra.mxu0 %v839
      %1167 = vmatprep.subr.bf16.mxu0 %v844
      %1168 = vmatpush1.bf16.msra.mxu0 %v843
      %1169 = vmatprep.subr.bf16.mxu0 %v848
      %1170 = vmatpush1.bf16.msra.mxu0 %v847
      %1171 = vmatprep.subr.bf16.mxu0 %v852
      %1172 = vmatpush1.bf16.msra.mxu0 %v851
      %1173 = vmatprep.subr.bf16.mxu0 %v856
      %1174 = vmatpush1.bf16.msra.mxu0 %v855
      %1175 = vmatprep.subr.bf16.mxu0 %v860
      %1176 = vmatpush1.bf16.msra.mxu0 %v859
      %1177 = vmatprep.subr.bf16.mxu0 %v864
      %1178 = vmatpush1.bf16.msra.mxu0 %v863
      %1179 = vmatprep.subr.bf16.mxu0 %v868
      %1180 = vmatpush1.bf16.msra.mxu0 %v867
      %1181 = vmatprep.subr.bf16.mxu0 %v872
      %1182 = vmatpush1.bf16.msra.mxu0 %v871
      %1183 = vmatprep.subr.bf16.mxu0 %v876
      %1184 = vmatpush1.bf16.msra.mxu0 %v875
      %1185 = vmatprep.subr.bf16.mxu0 %v880
      %1186 = vmatpush1.bf16.msra.mxu0 %v879
      %1187 = vmatprep.mubr.bf16.mxu0 %v426
      %1188 = vmatmul.mubr.bf16.gmra.mrb[0].mxu0 %v425
      %v1189 = vpop.f32.mrb[0].mxu0
      %v1190 = vadd.f32 0.0, %v1189
      %v1191 = vpop.f32.mrb[0].mxu0
      %v1192 = vadd.f32 0.0, %v1191
      %v1193 = vpop.f32.mrb[0].mxu0
      %v1194 = vpop.f32.mrb[0].mxu0
      %1195 = vdwg.mxu0
      %1196 = vmatprep.subr.bf16.mxu0 %v884
      %1197 = vmatpush1.bf16.msra.mxu0 %v883
      %1198 = vmatprep.subr.bf16.mxu0 %v888
      %1199 = vmatpush1.bf16.msra.mxu0 %v887
      %1200 = vmatprep.subr.bf16.mxu0 %v892
      %1201 = vmatpush1.bf16.msra.mxu0 %v891
      %1202 = vmatprep.subr.bf16.mxu0 %v896
      %1203 = vmatpush1.bf16.msra.mxu0 %v895
      %1204 = vmatprep.subr.bf16.mxu0 %v900
      %1205 = vmatpush1.bf16.msra.mxu0 %v899
      %1206 = vmatprep.subr.bf16.mxu0 %v904
      %1207 = vmatpush1.bf16.msra.mxu0 %v903
      %1208 = vmatprep.subr.bf16.mxu0 %v908
      %1209 = vmatpush1.bf16.msra.mxu0 %v907
      %1210 = vmatprep.subr.bf16.mxu0 %v912
      %1211 = vmatpush1.bf16.msra.mxu0 %v911
      %1212 = vmatprep.subr.bf16.mxu0 %v916
      %1213 = vmatpush1.bf16.msra.mxu0 %v915
      %1214 = vmatprep.subr.bf16.mxu0 %v920
      %1215 = vmatpush1.bf16.msra.mxu0 %v919
      %1216 = vmatprep.subr.bf16.mxu0 %v924
      %1217 = vmatpush1.bf16.msra.mxu0 %v923
      %1218 = vmatprep.subr.bf16.mxu0 %v928
      %1219 = vmatpush1.bf16.msra.mxu0 %v927
      %1220 = vmatprep.subr.bf16.mxu0 %v932
      %1221 = vmatpush1.bf16.msra.mxu0 %v931
      %1222 = vmatprep.subr.bf16.mxu0 %v936
      %1223 = vmatpush1.bf16.msra.mxu0 %v935
      %1224 = vmatprep.subr.bf16.mxu0 %v940
      %1225 = vmatpush1.bf16.msra.mxu0 %v939
      %1226 = vmatprep.subr.bf16.mxu0 %v944
      %1227 = vmatpush1.bf16.msra.mxu0 %v943
      %1228 = vmatprep.mubr.bf16.mxu0 %v428
      %1229 = vmatmul.mubr.bf16.gmra.mrb[0].mxu0 %v427
      %v1230 = vpop.f32.mrb[0].mxu0
      %v1231 = vadd.f32 %v1190, %v1230
      %v1232 = vpop.f32.mrb[0].mxu0
      %v1233 = vadd.f32 %v1192, %v1232
      %v1234 = vpop.f32.mrb[0].mxu0
      %v1235 = vpop.f32.mrb[0].mxu0
      %1236 = vdwg.mxu0
      %v1237 = vadd.f32 %v285, %v1149
      %v1238 = vadd.f32 %v286, %v1151
      %v1239 = vadd.f32 %v287, %v1231
      %v1240 = vadd.f32 %v288, %v1233
      %1241 = vst [vmem:[#allocation2] sm:$0xff] %v1237
      %1242 = vst [vmem:[#allocation2 + $0x8] sm:$0xff] %v1238
      %1243 = vst [vmem:[#allocation2 + $0x10] sm:$0xff] %v1239
      %1244 = vst [vmem:[#allocation2 + $0x18] sm:$0xff] %v1240
      %p1245 = scmp.eq.s32.totalorder %s21, 6
      // Predicated region
      $region37: #{dqn_forward.8} parent=31 // pred_check
        %p1246 = pneg %p1245
      $region38: #{dqn_forward.8} parent=31 // pred_check_branch
        %1248 = sbr.rel (%p1246) target = $region40
      $region39: #{dqn_forward.8} parent=31 // pred_region
        %v1249 = vld [vmem:[#allocation2] sm:$0xff]
        %v1250 = vld [vmem:[#allocation2 + $0x8] sm:$0xff]
        %v1251 = vld [vmem:[#allocation2 + $0x10] sm:$0xff]
        %v1252 = vld [vmem:[#allocation2 + $0x18] sm:$0xff]
        %v1253 = vld [vmem:[%s265] sm:$0xf]
        %v1255 = vlaneseq
        %v1256 = vshrl.u32 %v1255, 7
        %v1257 = vsub.s32 0, %v1256
        %v1258 = vrot.slane %v1253, %v1257
        %v1259 = vlaneseq
        %v1260 = vshrl.u32 %v1259, 7
        %v1261 = vsub.s32 1, %v1260
        %v1262 = vrot.slane %v1253, %v1261
        %v1263 = vlaneseq
        %v1264 = vshrl.u32 %v1263, 7
        %v1265 = vsub.s32 2, %v1264
        %v1266 = vrot.slane %v1253, %v1265
        %v1267 = vlaneseq
        %v1268 = vshrl.u32 %v1267, 7
        %v1269 = vsub.s32 3, %v1268
        %v1270 = vrot.slane %v1253, %v1269
        %v1275 = vadd.f32 %v1249, %v1258
        %v1276 = vadd.f32 %v1250, %v1262
        %v1277 = vadd.f32 %v1251, %v1266
        %v1278 = vadd.f32 %v1252, %v1270
        %v1279 = vmax.f32 %v1275, 0.0
        %v1280 = vmax.f32 %v1276, 0.0
        %v1281 = vmax.f32 %v1277, 0.0
        %v1282 = vmax.f32 %v1278, 0.0
        %1283 = vst [vmem:[%s275] sm:$0xff] %v1279
        %1284 = vst [vmem:[%s275 + $0x8] sm:$0xff] %v1280
        %1285 = vst [vmem:[%s275 + $0x10] sm:$0xff] %v1281
        %1286 = vst [vmem:[%s275 + $0x18] sm:$0xff] %v1282
      $region40: #{dqn_forward.8} parent=31 // pred_fallthru
        _
      %s1287 = smul.u32 4, %s20
      %p1288 = scmp.lt.s32.totalorder %s19, 0
      %s1289 = scalar_select %p1288, %s19, 0
      %p1290 = scmp.lt.s32.totalorder %s1287, 3
      %s1291 = scalar_select %p1290, %s1287, 3
      %s1292 = smul.addr %s1289, 4
      %s1293 = sadd.s32 %s1291, %s1292
      %s1294 = smul.addr %s1293, 8
      %s1295 = scalar_lea.vmem %s3, %s1294
      // Predicated region
      $region41: #{dqn_forward.8} parent=31 // pred_check
        %p1296 = pneg %p135
      $region42: #{dqn_forward.8} parent=31 // pred_check_branch
        %1298 = sbr.rel (%p1296) target = $region44
      $region43: #{dqn_forward.8} parent=31 // pred_region
        %s1299 = smul.u32 4, %s20
      $region44: #{dqn_forward.8} parent=31 // pred_fallthru
        _
      // Predicated region
      $region45: #{dqn_forward.8} parent=31 // pred_check
        %p1300 = pneg %p135
      $region46: #{dqn_forward.8} parent=31 // pred_check_branch
        %1302 = sbr.rel (%p1300) target = $region48
      $region47: #{dqn_forward.8} parent=31 // pred_region
        %s1303 = smul.u32 4, %s20
        %p1304 = scmp.lt.s32.totalorder %s19, 0
        %s1305 = scalar_select %p1304, %s19, 0
        %p1306 = scmp.lt.s32.totalorder %s1303, 3
        %s1307 = scalar_select %p1306, %s1303, 3
        %s1308 = smul.addr %s1305, 4
        %s1309 = sadd.s32 %s1307, %s1308
        %s1310 = smul.addr %s1309, 8
        %s1311 = scalar_lea.vmem %s3, %s1310
      $region48: #{dqn_forward.8} parent=31 // pred_fallthru
        _
    $region32: #{dqn_forward.8} parent=5 // pred_fallthru
      _
    %p1312 = scmp.le.s32.totalorder 2, %s9
    // Predicated region
    $region49: #{dqn_forward.8} parent=5 // pred_check
      %p1313 = pneg %p1312
    $region50: #{dqn_forward.8} parent=5 // pred_check_branch
      %1315 = sbr.rel (%p1313) target = $region52
    $region51: #{dqn_forward.8} parent=5 // pred_region
      %s1316 = ssub.s32 %s9, 2
    $region52: #{dqn_forward.8} parent=5 // pred_fallthru
      _
  $region6: #{dqn_forward.8} parent=0 // loop_footer
    %s13 = sadd.s32 1, %s9
  $region7: #{dqn_forward.8} parent=0 // loop_footer_branch
    %8 = sbr.rel target = $region3
  $region8: #{dqn_forward.8} parent=0 // loop_exit
    _

// kernel: dqn_forward.9
$region0: #{dqn_forward.9}
  #allocation0 [shape = 'u32[]', space=smem, size = 0x4, offset = 0x4, fixed_abs, tag = 'smem constant byte address 0x4 - core index']
  #allocation1 [shape = 'u32[144,128]{1,0:T(1,128)}', space=vmem, size = 0x12000, scoped, tag = 'internal scratch']
  #allocation2 [shape = 'f32[8,128]{1,0:T(8,128)}', space=vmem, size = 0x1000, scoped, tag = 'scratch operand']
  %s0 = inlined_call_operand.vmem [shape: bf16[8,512], index: 0, kind: input, shape index: {}]
  %s1 = inlined_call_operand.vmem [shape: bf16[512,128], index: 1, kind: input, shape index: {}]
  %s2 = inlined_call_operand.vmem [shape: f32[1,128], index: 2, kind: input, shape index: {}]
  %s3 = inlined_call_operand.vmem [shape: f32[8,128], index: 3, kind: output, shape index: {}]
  %s4 = sld [smem:[#allocation0]]
  $region30: #{dqn_forward.9} parent=0
    _
  %s6 = ssub.s32 1, %s4
  %s7 = scalar_select 0, %s6, %s4
  // Predicated region
  $region2: #{dqn_forward.9} parent=0 // pred_check
    _
  $region3: #{dqn_forward.9} parent=0 // pred_check_branch
    %9 = sbr.rel (0) target = $region5
  $region4: #{dqn_forward.9} parent=0 // pred_region
    _
  $region5: #{dqn_forward.9} parent=0 // pred_fallthru
    _
  // Predicated region
  $region6: #{dqn_forward.9} parent=0 // pred_check
    _
  $region7: #{dqn_forward.9} parent=0 // pred_check_branch
    %11 = sbr.rel (0) target = $region9
  $region8: #{dqn_forward.9} parent=0 // pred_region
    _
  $region9: #{dqn_forward.9} parent=0 // pred_fallthru
    _
  // Predicated region
  $region10: #{dqn_forward.9} parent=0 // pred_check
    _
  $region11: #{dqn_forward.9} parent=0 // pred_check_branch
    %13 = sbr.rel (0) target = $region13
  $region12: #{dqn_forward.9} parent=0 // pred_region
    _
  $region13: #{dqn_forward.9} parent=0 // pred_fallthru
    _
  %p15 = scmp.eq.s32.totalorder 0, 0
  // Predicated region
  $region14: #{dqn_forward.9} parent=0 // pred_check
    %p16 = pneg %p15
  $region15: #{dqn_forward.9} parent=0 // pred_check_branch
    %18 = sbr.rel (%p16) target = $region17
  $region16: #{dqn_forward.9} parent=0 // pred_region
    %19 = vst [vmem:[#allocation2] sm:$0xff] 0.0
  $region17: #{dqn_forward.9} parent=0 // pred_fallthru
    _
  %v20 = vld [vmem:[#allocation2] sm:$0xff]
  %v21 = vld [vmem:[%s0] sm:$0xff]
  %v22 = vld [vmem:[%s0 + $0x8] sm:$0xff]
  %v23 = vld [vmem:[%s1] sm:$0xf]
  %v24 = vld [vmem:[%s1 + $0x4] sm:$0xf]
  %v25 = vld [vmem:[%s1 + $0x8] sm:$0xf]
  %v26 = vld [vmem:[%s1 + $0xc] sm:$0xf]
  %v27 = vld [vmem:[%s1 + $0x10] sm:$0xf]
  %v28 = vld [vmem:[%s1 + $0x14] sm:$0xf]
  %v29 = vld [vmem:[%s1 + $0x18] sm:$0xf]
  %v30 = vld [vmem:[%s1 + $0x1c] sm:$0xf]
  %v31 = vld [vmem:[%s1 + $0x20] sm:$0xf]
  %v32 = vld [vmem:[%s1 + $0x24] sm:$0xf]
  %v33 = vld [vmem:[%s1 + $0x28] sm:$0xf]
  %v34 = vld [vmem:[%s1 + $0x2c] sm:$0xf]
  %v35 = vld [vmem:[%s1 + $0x30] sm:$0xf]
  %v36 = vld [vmem:[%s1 + $0x34] sm:$0xf]
  %v37 = vld [vmem:[%s1 + $0x38] sm:$0xf]
  %v38 = vld [vmem:[%s1 + $0x3c] sm:$0xf]
  %v39 = vld [vmem:[%s1 + $0x40] sm:$0xf]
  %v40 = vld [vmem:[%s1 + $0x44] sm:$0xf]
  %v41 = vld [vmem:[%s1 + $0x48] sm:$0xf]
  %v42 = vld [vmem:[%s1 + $0x4c] sm:$0xf]
  %v43 = vld [vmem:[%s1 + $0x50] sm:$0xf]
  %v44 = vld [vmem:[%s1 + $0x54] sm:$0xf]
  %v45 = vld [vmem:[%s1 + $0x58] sm:$0xf]
  %v46 = vld [vmem:[%s1 + $0x5c] sm:$0xf]
  %v47 = vld [vmem:[%s1 + $0x60] sm:$0xf]
  %v48 = vld [vmem:[%s1 + $0x64] sm:$0xf]
  %v49 = vld [vmem:[%s1 + $0x68] sm:$0xf]
  %v50 = vld [vmem:[%s1 + $0x6c] sm:$0xf]
  %v51 = vld [vmem:[%s1 + $0x70] sm:$0xf]
  %v52 = vld [vmem:[%s1 + $0x74] sm:$0xf]
  %v53 = vld [vmem:[%s1 + $0x78] sm:$0xf]
  %v54 = vld [vmem:[%s1 + $0x7c] sm:$0xf]
  %v55 = vld [vmem:[%s1 + $0x80] sm:$0xf]
  %v56 = vld [vmem:[%s1 + $0x84] sm:$0xf]
  %v57 = vld [vmem:[%s1 + $0x88] sm:$0xf]
  %v58 = vld [vmem:[%s1 + $0x8c] sm:$0xf]
  %v59 = vld [vmem:[%s1 + $0x90] sm:$0xf]
  %v60 = vld [vmem:[%s1 + $0x94] sm:$0xf]
  %v61 = vld [vmem:[%s1 + $0x98] sm:$0xf]
  %v62 = vld [vmem:[%s1 + $0x9c] sm:$0xf]
  %v63 = vld [vmem:[%s1 + $0xa0] sm:$0xf]
  %v64 = vld [vmem:[%s1 + $0xa4] sm:$0xf]
  %v65 = vld [vmem:[%s1 + $0xa8] sm:$0xf]
  %v66 = vld [vmem:[%s1 + $0xac] sm:$0xf]
  %v67 = vld [vmem:[%s1 + $0xb0] sm:$0xf]
  %v68 = vld [vmem:[%s1 + $0xb4] sm:$0xf]
  %v69 = vld [vmem:[%s1 + $0xb8] sm:$0xf]
  %v70 = vld [vmem:[%s1 + $0xbc] sm:$0xf]
  %v71 = vld [vmem:[%s1 + $0xc0] sm:$0xf]
  %v72 = vld [vmem:[%s1 + $0xc4] sm:$0xf]
  %v73 = vld [vmem:[%s1 + $0xc8] sm:$0xf]
  %v74 = vld [vmem:[%s1 + $0xcc] sm:$0xf]
  %v75 = vld [vmem:[%s1 + $0xd0] sm:$0xf]
  %v76 = vld [vmem:[%s1 + $0xd4] sm:$0xf]
  %v77 = vld [vmem:[%s1 + $0xd8] sm:$0xf]
  %v78 = vld [vmem:[%s1 + $0xdc] sm:$0xf]
  %v79 = vld [vmem:[%s1 + $0xe0] sm:$0xf]
  %v80 = vld [vmem:[%s1 + $0xe4] sm:$0xf]
  %v81 = vld [vmem:[%s1 + $0xe8] sm:$0xf]
  %v82 = vld [vmem:[%s1 + $0xec] sm:$0xf]
  %v83 = vld [vmem:[%s1 + $0xf0] sm:$0xf]
  %v84 = vld [vmem:[%s1 + $0xf4] sm:$0xf]
  %v85 = vld [vmem:[%s1 + $0xf8] sm:$0xf]
  %v86 = vld [vmem:[%s1 + $0xfc] sm:$0xf]
  %v89 = vunpack.c.l.b16 %v21
  %v90 = vunpack.c.h.b16 %v21
  %v91 = vunpack.c.l.b16 %v22
  %v92 = vunpack.c.h.b16 %v22
  %v93 = vpack.c.b16 %v89, %v89
  %v94 = vpack.c.b16 %v90, %v90
  %v95 = vpack.c.b16 %v91, %v91
  %v96 = vpack.c.b16 %v92, %v92
  %v165 = vunpack.c.l.b16 %v23
  %v166 = vunpack.c.l.b16 %v24
  %v167 = vunpack.c.l.b16 %v25
  %v168 = vunpack.c.l.b16 %v26
  %v169 = vunpack.c.l.b16 %v27
  %v170 = vunpack.c.l.b16 %v28
  %v171 = vunpack.c.l.b16 %v29
  %v172 = vunpack.c.l.b16 %v30
  %v173 = vunpack.c.l.b16 %v31
  %v174 = vunpack.c.l.b16 %v32
  %v175 = vunpack.c.l.b16 %v33
  %v176 = vunpack.c.l.b16 %v34
  %v177 = vunpack.c.l.b16 %v35
  %v178 = vunpack.c.l.b16 %v36
  %v179 = vunpack.c.l.b16 %v37
  %v180 = vunpack.c.l.b16 %v38
  %v181 = vunpack.c.l.b16 %v39
  %v182 = vunpack.c.l.b16 %v40
  %v183 = vunpack.c.l.b16 %v41
  %v184 = vunpack.c.l.b16 %v42
  %v185 = vunpack.c.l.b16 %v43
  %v186 = vunpack.c.l.b16 %v44
  %v187 = vunpack.c.l.b16 %v45
  %v188 = vunpack.c.l.b16 %v46
  %v189 = vunpack.c.l.b16 %v47
  %v190 = vunpack.c.l.b16 %v48
  %v191 = vunpack.c.l.b16 %v49
  %v192 = vunpack.c.l.b16 %v50
  %v193 = vunpack.c.l.b16 %v51
  %v194 = vunpack.c.l.b16 %v52
  %v195 = vunpack.c.l.b16 %v53
  %v196 = vunpack.c.l.b16 %v54
  %v197 = vunpack.c.l.b16 %v55
  %v198 = vunpack.c.l.b16 %v56
  %v199 = vunpack.c.l.b16 %v57
  %v200 = vunpack.c.l.b16 %v58
  %v201 = vunpack.c.l.b16 %v59
  %v202 = vunpack.c.l.b16 %v60
  %v203 = vunpack.c.l.b16 %v61
  %v204 = vunpack.c.l.b16 %v62
  %v205 = vunpack.c.l.b16 %v63
  %v206 = vunpack.c.l.b16 %v64
  %v207 = vunpack.c.l.b16 %v65
  %v208 = vunpack.c.l.b16 %v66
  %v209 = vunpack.c.l.b16 %v67
  %v210 = vunpack.c.l.b16 %v68
  %v211 = vunpack.c.l.b16 %v69
  %v212 = vunpack.c.l.b16 %v70
  %v213 = vunpack.c.l.b16 %v71
  %v214 = vunpack.c.l.b16 %v72
  %v215 = vunpack.c.l.b16 %v73
  %v216 = vunpack.c.l.b16 %v74
  %v217 = vunpack.c.l.b16 %v75
  %v218 = vunpack.c.l.b16 %v76
  %v219 = vunpack.c.l.b16 %v77
  %v220 = vunpack.c.l.b16 %v78
  %v221 = vunpack.c.l.b16 %v79
  %v222 = vunpack.c.l.b16 %v80
  %v223 = vunpack.c.l.b16 %v81
  %v224 = vunpack.c.l.b16 %v82
  %v225 = vunpack.c.l.b16 %v83
  %v226 = vunpack.c.l.b16 %v84
  %v227 = vunpack.c.l.b16 %v85
  %v228 = vunpack.c.l.b16 %v86
  %v229 = vpack.c.b16 %v166, %v165
  %v230 = vpack.c.b16 %v168, %v167
  %v231 = vpack.c.b16 %v170, %v169
  %v232 = vpack.c.b16 %v172, %v171
  %v233 = vpack.c.b16 %v174, %v173
  %v234 = vpack.c.b16 %v176, %v175
  %v235 = vpack.c.b16 %v178, %v177
  %v236 = vpack.c.b16 %v180, %v179
  %v237 = vpack.c.b16 %v182, %v181
  %v238 = vpack.c.b16 %v184, %v183
  %v239 = vpack.c.b16 %v186, %v185
  %v240 = vpack.c.b16 %v188, %v187
  %v241 = vpack.c.b16 %v190, %v189
  %v242 = vpack.c.b16 %v192, %v191
  %v243 = vpack.c.b16 %v194, %v193
  %v244 = vpack.c.b16 %v196, %v195
  %v245 = vpack.c.b16 %v198, %v197
  %v246 = vpack.c.b16 %v200, %v199
  %v247 = vpack.c.b16 %v202, %v201
  %v248 = vpack.c.b16 %v204, %v203
  %v249 = vpack.c.b16 %v206, %v205
  %v250 = vpack.c.b16 %v208, %v207
  %v251 = vpack.c.b16 %v210, %v209
  %v252 = vpack.c.b16 %v212, %v211
  %v253 = vpack.c.b16 %v214, %v213
  %v254 = vpack.c.b16 %v216, %v215
  %v255 = vpack.c.b16 %v218, %v217
  %v256 = vpack.c.b16 %v220, %v219
  %v257 = vpack.c.b16 %v222, %v221
  %v258 = vpack.c.b16 %v224, %v223
  %v259 = vpack.c.b16 %v226, %v225
  %v260 = vpack.c.b16 %v228, %v227
  %293 = vmatprep.subr.bf16.mxu0 0
  %294 = vmatpush1.bf16.msra.mxu0 %v229
  %295 = vmatprep.subr.bf16.mxu0 0
  %296 = vmatpush1.bf16.msra.mxu0 %v230
  %297 = vmatprep.subr.bf16.mxu0 0
  %298 = vmatpush1.bf16.msra.mxu0 %v231
  %299 = vmatprep.subr.bf16.mxu0 0
  %300 = vmatpush1.bf16.msra.mxu0 %v232
  %301 = vmatprep.subr.bf16.mxu0 0
  %302 = vmatpush1.bf16.msra.mxu0 %v233
  %303 = vmatprep.subr.bf16.mxu0 0
  %304 = vmatpush1.bf16.msra.mxu0 %v234
  %305 = vmatprep.subr.bf16.mxu0 0
  %306 = vmatpush1.bf16.msra.mxu0 %v235
  %307 = vmatprep.subr.bf16.mxu0 0
  %308 = vmatpush1.bf16.msra.mxu0 %v236
  %309 = vmatprep.subr.bf16.mxu0 0
  %310 = vmatpush1.bf16.msra.mxu0 %v237
  %311 = vmatprep.subr.bf16.mxu0 0
  %312 = vmatpush1.bf16.msra.mxu0 %v238
  %313 = vmatprep.subr.bf16.mxu0 0
  %314 = vmatpush1.bf16.msra.mxu0 %v239
  %315 = vmatprep.subr.bf16.mxu0 0
  %316 = vmatpush1.bf16.msra.mxu0 %v240
  %317 = vmatprep.subr.bf16.mxu0 0
  %318 = vmatpush1.bf16.msra.mxu0 %v241
  %319 = vmatprep.subr.bf16.mxu0 0
  %320 = vmatpush1.bf16.msra.mxu0 %v242
  %321 = vmatprep.subr.bf16.mxu0 0
  %322 = vmatpush1.bf16.msra.mxu0 %v243
  %323 = vmatprep.subr.bf16.mxu0 0
  %324 = vmatpush1.bf16.msra.mxu0 %v244
  %325 = vmatprep.mubr.bf16.mxu0 %v94
  %326 = vmatmul.mubr.bf16.gmra.mrb[0].mxu0 %v93
  %v327 = vpop.f32.mrb[0].mxu0
  %v328 = vadd.f32 0.0, %v327
  %v329 = vpop.f32.mrb[0].mxu0
  %v330 = vpop.f32.mrb[0].mxu0
  %v331 = vpop.f32.mrb[0].mxu0
  %332 = vdwg.mxu0
  %333 = vmatprep.subr.bf16.mxu0 0
  %334 = vmatpush1.bf16.msra.mxu0 %v245
  %335 = vmatprep.subr.bf16.mxu0 0
  %336 = vmatpush1.bf16.msra.mxu0 %v246
  %337 = vmatprep.subr.bf16.mxu0 0
  %338 = vmatpush1.bf16.msra.mxu0 %v247
  %339 = vmatprep.subr.bf16.mxu0 0
  %340 = vmatpush1.bf16.msra.mxu0 %v248
  %341 = vmatprep.subr.bf16.mxu0 0
  %342 = vmatpush1.bf16.msra.mxu0 %v249
  %343 = vmatprep.subr.bf16.mxu0 0
  %344 = vmatpush1.bf16.msra.mxu0 %v250
  %345 = vmatprep.subr.bf16.mxu0 0
  %346 = vmatpush1.bf16.msra.mxu0 %v251
  %347 = vmatprep.subr.bf16.mxu0 0
  %348 = vmatpush1.bf16.msra.mxu0 %v252
  %349 = vmatprep.subr.bf16.mxu0 0
  %350 = vmatpush1.bf16.msra.mxu0 %v253
  %351 = vmatprep.subr.bf16.mxu0 0
  %352 = vmatpush1.bf16.msra.mxu0 %v254
  %353 = vmatprep.subr.bf16.mxu0 0
  %354 = vmatpush1.bf16.msra.mxu0 %v255
  %355 = vmatprep.subr.bf16.mxu0 0
  %356 = vmatpush1.bf16.msra.mxu0 %v256
  %357 = vmatprep.subr.bf16.mxu0 0
  %358 = vmatpush1.bf16.msra.mxu0 %v257
  %359 = vmatprep.subr.bf16.mxu0 0
  %360 = vmatpush1.bf16.msra.mxu0 %v258
  %361 = vmatprep.subr.bf16.mxu0 0
  %362 = vmatpush1.bf16.msra.mxu0 %v259
  %363 = vmatprep.subr.bf16.mxu0 0
  %364 = vmatpush1.bf16.msra.mxu0 %v260
  %365 = vmatprep.mubr.bf16.mxu0 %v96
  %366 = vmatmul.mubr.bf16.gmra.mrb[0].mxu0 %v95
  %v367 = vpop.f32.mrb[0].mxu0
  %v368 = vadd.f32 %v328, %v367
  %v369 = vpop.f32.mrb[0].mxu0
  %v370 = vpop.f32.mrb[0].mxu0
  %v371 = vpop.f32.mrb[0].mxu0
  %372 = vdwg.mxu0
  %v373 = vadd.f32 %v20, %v368
  %374 = vst [vmem:[#allocation2] sm:$0xff] %v373
  // Predicated region
  $region18: #{dqn_forward.9} parent=0 // pred_check
    %p375 = pneg %p15
  $region19: #{dqn_forward.9} parent=0 // pred_check_branch
    %377 = sbr.rel (%p375) target = $region21
  $region20: #{dqn_forward.9} parent=0 // pred_region
    %v378 = vld [vmem:[#allocation2] sm:$0xff]
    %v379 = vld [vmem:[%s2] sm:$0x1]
    %v381 = vlaneseq
    %v382 = vshrl.u32 %v381, 7
    %v383 = vsub.s32 0, %v382
    %v384 = vrot.slane %v379, %v383
    %v386 = vadd.f32 %v378, %v384
    %387 = vst [vmem:[%s3] sm:$0xff] %v386
  $region21: #{dqn_forward.9} parent=0 // pred_fallthru
    _
  // Predicated region
  $region22: #{dqn_forward.9} parent=0 // pred_check
    _
  $region23: #{dqn_forward.9} parent=0 // pred_check_branch
    %389 = sbr.rel (0) target = $region25
  $region24: #{dqn_forward.9} parent=0 // pred_region
    _
  $region25: #{dqn_forward.9} parent=0 // pred_fallthru
    _
  // Predicated region
  $region26: #{dqn_forward.9} parent=0 // pred_check
    _
  $region27: #{dqn_forward.9} parent=0 // pred_check_branch
    %391 = sbr.rel (0) target = $region29
  $region28: #{dqn_forward.9} parent=0 // pred_region
    _
  $region29: #{dqn_forward.9} parent=0 // pred_fallthru
    _

</llo_original>
